<compile_context>
chip_gen: v7x
topology: tpu7x:2x2x1
jax: 0.10.0
libtpu: 0.0.40
codegen_flags: <defaults>
</compile_context>

<pallas_src>
import functools

import jax
import jax.numpy as jnp
from jax.experimental import pallas as pl
from jax.experimental.pallas import tpu as pltpu


# ------------------------------------------------------------------ kernels

def _phase_conv_kernel(w_ref, p_ref, y_ref, *stat_refs, act):
    """One output phase: y = act(W_phase[Cout, K'] @ patches_phase[K', M]).

    Optionally emits per-channel sum / sum-of-squares (BatchNorm statistics)
    as side outputs so the activation is not re-read from HBM for stats.
    """
    y = jnp.dot(w_ref[0], p_ref[0], preferred_element_type=jnp.float32)
    if act == "tanh":
        y = jnp.tanh(y)
    y_ref[0] = y
    if stat_refs:
        ssum_ref, ssq_ref = stat_refs
        ssum_ref[0] = jnp.sum(y, axis=1, keepdims=True)
        ssq_ref[0] = jnp.sum(y * y, axis=1, keepdims=True)


def phase_conv(wT, pT, *, act=None, with_stats=False):
    """wT: [P, Cout, K'], pT: [P, K', M]  ->  (y [P, Cout, M], [sum, sumsq]).

    P is the phase axis (grid, 'parallel'); blocks are full trailing slabs so
    the lane axis of every store is M (lane-dense for the large layers).
    """
    P, Cout, Kp = wT.shape
    _, _, M = pT.shape

    out_shape = [jax.ShapeDtypeStruct((P, Cout, M), jnp.float32)]
    out_specs = [pl.BlockSpec((1, Cout, M), lambda p: (p, 0, 0))]
    if with_stats:
        out_shape += [jax.ShapeDtypeStruct((P, Cout, 1), jnp.float32)] * 2
        out_specs += [pl.BlockSpec((1, Cout, 1), lambda p: (p, 0, 0))] * 2

    kernel = functools.partial(_phase_conv_kernel, act=act)
    return pl.pallas_call(
        kernel,
        out_shape=tuple(out_shape),
        grid=(P,),
        in_specs=[
            pl.BlockSpec((1, Cout, Kp), lambda p: (p, 0, 0)),
            pl.BlockSpec((1, Kp, M), lambda p: (p, 0, 0)),
        ],
        out_specs=tuple(out_specs),
        compiler_params=pltpu.CompilerParams(
            dimension_semantics=("parallel",)),
    )(wT, pT)


def _affine_relu_kernel(x_ref, s_ref, b_ref, o_ref):
    o_ref[...] = jnp.maximum(x_ref[...] * s_ref[...] + b_ref[...], 0.0)


def pallas_affine_relu(x, scale, bias):
    """x: [C, M] channels-first (lane-dense); scale/bias: [C, 1].
    y = relu(x * scale + bias)  — fused BatchNorm affine + ReLU."""
    C, M = x.shape
    tm = M
    for cand in (2048, 1024, 512):           # tile lanes only if M is large
        if M > cand and M % cand == 0:
            tm = cand
            break
    return pl.pallas_call(
        _affine_relu_kernel,
        out_shape=jax.ShapeDtypeStruct((C, M), jnp.float32),
        grid=(M // tm,),
        in_specs=[
            pl.BlockSpec((C, tm), lambda i: (0, i)),
            pl.BlockSpec((C, 1), lambda i: (0, 0)),
            pl.BlockSpec((C, 1), lambda i: (0, 0)),
        ],
        out_specs=pl.BlockSpec((C, tm), lambda i: (0, i)),
        compiler_params=pltpu.CompilerParams(
            dimension_semantics=("parallel",)),
    )(x, scale, bias)


# ------------------------------------------------------------------ layer glue

def _bn_scale_bias(total_sum, total_sq, count):
    """BatchNorm2d training-mode (biased var, eps=1e-5, gamma=1, beta=0)."""
    mean = total_sum / count
    var = jnp.maximum(total_sq / count - mean * mean, 0.0)
    scale = 1.0 / jnp.sqrt(var + 1e-5)       # gamma = 1
    bias = -mean * scale                     # beta  = 0
    return scale, bias


def affine_relu_cm(act_cm, scale, bias):
    C, N, H, W = act_cm.shape
    flat = act_cm.reshape(C, N * H * W)
    out = pallas_affine_relu(flat, scale.reshape(C, 1), bias.reshape(C, 1))
    return out.reshape(C, N, H, W)


def deconv_s2(act_cm, w, *, act_name=None, with_stats=False):
    """ConvTranspose2d(k=4, stride=2, pad=1), input in [Cin, N, H, W] layout.

    Phase decomposition: output pixel (2a+pi, 2b+pj) only depends on the 2x2
    real-input window around (a, b), with kernel taps kh = 3 - 2*th - pi,
    kw = 3 - 2*tw - pj.  Each phase is a [Cout, 4*Cin] @ [4*Cin, N*H*W]
    matmul — no structural zeros.
    """
    Cin, N, H, W = act_cm.shape
    Cout = w.shape[1]
    M = N * H * W

    xp = jnp.pad(act_cm, ((0, 0), (0, 0), (1, 1), (1, 1)))   # [Cin, N, H+2, W+2]

    slabs, wrows = [], []
    for pi in range(2):
        for pj in range(2):
            wt = []
            for th in range(2):
                for tw in range(2):
                    dh, dw = pi + th, pj + tw
                    kh, kw = 3 - 2 * th - pi, 3 - 2 * tw - pj
                    slabs.append(xp[:, :, dh:dh + H, dw:dw + W].reshape(Cin, M))
                    wt.append(w[:, :, kh, kw])                 # [Cin, Cout]
            wrows.append(jnp.concatenate(wt, axis=0).T)        # [Cout, 4*Cin]

    pT = jnp.concatenate(slabs, axis=0).reshape(4, 4 * Cin, M)  # [4, 4Cin, M]
    wT = jnp.stack(wrows, axis=0)                               # [4, Cout, 4Cin]

    outs = phase_conv(wT, pT, act=act_name, with_stats=with_stats)
    y = outs[0]                                                 # [4, Cout, M]

    # Interleave phases: out[c, n, 2a+pi, 2b+pj] = y[2*pi+pj, c, (n,a,b)]
    out = jnp.transpose(
        y.reshape(2, 2, Cout, N, H, W), (2, 3, 4, 0, 5, 1)
    ).reshape(Cout, N, 2 * H, 2 * W)

    if with_stats:
        return out, outs[1], outs[2]
    return out


# ------------------------------------------------------------------ generator

def init_generator_params(key, nz, ngf, nc):
    """DCGAN-style init N(0, 0.02). ConvTranspose2d weight layout is
    (in_channels, out_channels, 4, 4), bias=False."""
    shapes = [
        (nz,      ngf * 8, 4, 4),
        (ngf * 8, ngf * 4, 4, 4),
        (ngf * 4, ngf * 2, 4, 4),
        (ngf * 2, ngf,     4, 4),
        (ngf,     nc,      4, 4),
    ]
    keys = jax.random.split(key, len(shapes))
    return [0.02 * jax.random.normal(k, s, jnp.float32)
            for k, s in zip(keys, shapes)]


def generator_forward(x_nchw, params):
    """x_nchw: [N, nz, 1, 1] -> [N, nc, 64, 64]  (matches PyTorch Generator)."""
    w1, w2, w3, w4, w5 = params
    N, nz = x_nchw.shape[0], x_nchw.shape[1]
    x2 = x_nchw.reshape(N, nz).astype(jnp.float32)

    # ---- layer 1: ConvTranspose2d(nz, ngf*8, 4, 1, 0) on a 1x1 input.
    #      out[c, n, kh, kw] = sum_i x[n, i] * w1[i, c, kh, kw]
    C1 = w1.shape[1]
    w1_mat = jnp.transpose(w1, (1, 2, 3, 0)).reshape(1, C1 * 16, nz)
    x_pT = x2.T.reshape(1, nz, N)
    y1, s1, q1 = phase_conv(w1_mat, x_pT, act=None, with_stats=True)
    act = jnp.transpose(y1[0].reshape(C1, 4, 4, N), (0, 3, 1, 2))   # [C1,N,4,4]
    tot_s = s1[0, :, 0].reshape(C1, 16).sum(axis=1)
    tot_q = q1[0, :, 0].reshape(C1, 16).sum(axis=1)
    scale, bias = _bn_scale_bias(tot_s, tot_q, count=N * 16)
    act = affine_relu_cm(act, scale, bias)

    # ---- layers 2-4: stride-2 deconv + fused BN stats + fused affine/ReLU.
    for w in (w2, w3, w4):
        out, ssum, ssq = deconv_s2(act, w, act_name=None, with_stats=True)
        count = out.shape[1] * out.shape[2] * out.shape[3]
        scale, bias = _bn_scale_bias(ssum.sum(axis=0)[:, 0],
                                     ssq.sum(axis=0)[:, 0], count)
        act = affine_relu_cm(out, scale, bias)

    # ---- layer 5: stride-2 deconv with tanh fused into the matmul epilogue.
    out = deconv_s2(act, w5, act_name="tanh", with_stats=False)     # [nc,N,64,64]

    return jnp.transpose(out, (1, 0, 2, 3))                          # NCHW


# ------------------------------------------------------------------ main

if __name__ == "__main__":
    nz, ngf, nc, batch = 32, 8, 3, 2

    key = jax.random.PRNGKey(0)
    k_x, k_w = jax.random.split(key)
    x = jax.random.normal(k_x, (batch, nz, 1, 1), jnp.float32)   # NCHW latent
    params = init_generator_params(k_w, nz, ngf, nc)

    out = jax.jit(generator_forward)(x, params)
    out = jax.block_until_ready(out)

    assert out.shape == (batch, nc, 64, 64), out.shape
    assert out.dtype == jnp.float32
    assert bool(jnp.all(jnp.isfinite(out)))
    assert bool(jnp.all(jnp.abs(out) <= 1.0))     # tanh range

    print("KERNEL_OK")
</pallas_src>

<mosaic_0001>
module attributes {stable_mosaic.version = 11 : i64} {
  func.func @_phase_conv_kernel(%arg0: i32, %arg1: memref<1x1024x32xf32, #tpu.memory_space<vmem>>, %arg2: memref<1x32x2xf32, #tpu.memory_space<vmem>>, %arg3: memref<1x1024x2xf32, #tpu.memory_space<vmem>>, %arg4: memref<1x1024x1xf32, #tpu.memory_space<vmem>>, %arg5: memref<1x1024x1xf32, #tpu.memory_space<vmem>>) attributes {dimension_semantics = [#tpu.dimension_semantics<parallel>], iteration_bounds = array<i64: 1>, scalar_prefetch = 0 : i64, scratch_operands = 0 : i64, tpu.core_type = #tpu.core_type<tc>, window_params = [{transform_indices = @transform_0, window_bounds = array<i64: 1, 1024, 32>}, {transform_indices = @transform_1, window_bounds = array<i64: 1, 32, 2>}, {transform_indices = @transform_2, window_bounds = array<i64: 1, 1024, 2>}, {transform_indices = @transform_3, window_bounds = array<i64: 1, 1024, 1>}, {transform_indices = @transform_4, window_bounds = array<i64: 1, 1024, 1>}]} {
    %c0 = arith.constant 0 : index
    %c0_0 = arith.constant 0 : index
    %c0_1 = arith.constant 0 : index
    %0 = vector.load %arg1[%c0, %c0_0, %c0_1] : memref<1x1024x32xf32, #tpu.memory_space<vmem>>, vector<1x1024x32xf32>
    %1 = vector.shape_cast %0 : vector<1x1024x32xf32> to vector<1024x32xf32>
    %c0_2 = arith.constant 0 : index
    %c0_3 = arith.constant 0 : index
    %c0_4 = arith.constant 0 : index
    %2 = vector.load %arg2[%c0_2, %c0_3, %c0_4] : memref<1x32x2xf32, #tpu.memory_space<vmem>>, vector<1x32x2xf32>
    %3 = vector.shape_cast %2 : vector<1x32x2xf32> to vector<32x2xf32>
    %cst = arith.constant dense<0.000000e+00> : vector<1024x2xf32>
    %4 = tpu.matmul %1, %3, %cst {dimension_numbers = #tpu.dot_dimension_numbers<[1], [0], [0], [1], [0, 0, 1, 1], [], []>} : vector<1024x32xf32>, vector<32x2xf32>, vector<1024x2xf32> -> vector<1024x2xf32>
    %c0_5 = arith.constant 0 : index
    %c0_6 = arith.constant 0 : index
    %c0_7 = arith.constant 0 : index
    %5 = vector.load %arg3[%c0_5, %c0_6, %c0_7] : memref<1x1024x2xf32, #tpu.memory_space<vmem>>, vector<1x1024x2xf32>
    %6 = vector.shape_cast %5 : vector<1x1024x2xf32> to vector<1024x2xf32>
    %7 = vector.shape_cast %4 : vector<1024x2xf32> to vector<1x1024x2xf32>
    tpu.vector_store %arg3[%c0_5, %c0_6, %c0_7], %7 {strides = array<i32>} : memref<1x1024x2xf32, #tpu.memory_space<vmem>>, vector<1x1024x2xf32>,
    %cst_8 = arith.constant dense<0.000000e+00> : vector<1024xf32>
    %8 = vector.multi_reduction <add>, %4, %cst_8 [1] : vector<1024x2xf32> to vector<1024xf32>
    %9 = vector.shape_cast %8 : vector<1024xf32> to vector<1024x1xf32>
    %c0_9 = arith.constant 0 : index
    %c0_10 = arith.constant 0 : index
    %c0_11 = arith.constant 0 : index
    %10 = vector.load %arg4[%c0_9, %c0_10, %c0_11] : memref<1x1024x1xf32, #tpu.memory_space<vmem>>, vector<1x1024x1xf32>
    %11 = vector.shape_cast %10 : vector<1x1024x1xf32> to vector<1024x1xf32>
    %12 = vector.shape_cast %9 : vector<1024x1xf32> to vector<1x1024x1xf32>
    tpu.vector_store %arg4[%c0_9, %c0_10, %c0_11], %12 {strides = array<i32>} : memref<1x1024x1xf32, #tpu.memory_space<vmem>>, vector<1x1024x1xf32>,
    %13 = arith.mulf %4, %4 : vector<1024x2xf32>
    %cst_12 = arith.constant dense<0.000000e+00> : vector<1024xf32>
    %14 = vector.multi_reduction <add>, %13, %cst_12 [1] : vector<1024x2xf32> to vector<1024xf32>
    %15 = vector.shape_cast %14 : vector<1024xf32> to vector<1024x1xf32>
    %c0_13 = arith.constant 0 : index
    %c0_14 = arith.constant 0 : index
    %c0_15 = arith.constant 0 : index
    %16 = vector.load %arg5[%c0_13, %c0_14, %c0_15] : memref<1x1024x1xf32, #tpu.memory_space<vmem>>, vector<1x1024x1xf32>
    %17 = vector.shape_cast %16 : vector<1x1024x1xf32> to vector<1024x1xf32>
    %18 = vector.shape_cast %15 : vector<1024x1xf32> to vector<1x1024x1xf32>
    tpu.vector_store %arg5[%c0_13, %c0_14, %c0_15], %18 {strides = array<i32>} : memref<1x1024x1xf32, #tpu.memory_space<vmem>>, vector<1x1024x1xf32>,
    return
  }
  func.func @transform_0(%arg0: i32) -> (i32, i32, i32) {
    %c0_i32 = arith.constant 0 : i32
    %c0_i32_0 = arith.constant 0 : i32
    %c0_i32_1 = arith.constant 0 : i32
    return %arg0, %c0_i32, %c0_i32_0 : i32, i32, i32
  }
  func.func @transform_1(%arg0: i32) -> (i32, i32, i32) {
    %c0_i32 = arith.constant 0 : i32
    %c0_i32_0 = arith.constant 0 : i32
    %c0_i32_1 = arith.constant 0 : i32
    return %arg0, %c0_i32, %c0_i32_0 : i32, i32, i32
  }
  func.func @transform_2(%arg0: i32) -> (i32, i32, i32) {
    %c0_i32 = arith.constant 0 : i32
    %c0_i32_0 = arith.constant 0 : i32
    %c0_i32_1 = arith.constant 0 : i32
    return %arg0, %c0_i32, %c0_i32_0 : i32, i32, i32
  }
  func.func @transform_3(%arg0: i32) -> (i32, i32, i32) {
    %c0_i32 = arith.constant 0 : i32
    %c0_i32_0 = arith.constant 0 : i32
    %c0_i32_1 = arith.constant 0 : i32
    return %arg0, %c0_i32, %c0_i32_0 : i32, i32, i32
  }
  func.func @transform_4(%arg0: i32) -> (i32, i32, i32) {
    %c0_i32 = arith.constant 0 : i32
    %c0_i32_0 = arith.constant 0 : i32
    %c0_i32_1 = arith.constant 0 : i32
    return %arg0, %c0_i32, %c0_i32_0 : i32, i32, i32
  }
}

module attributes {stable_mosaic.version = 11 : i64} {
  func.func @_affine_relu_kernel(%arg0: i32, %arg1: memref<64x32xf32, #tpu.memory_space<vmem>>, %arg2: memref<64x1xf32, #tpu.memory_space<vmem>>, %arg3: memref<64x1xf32, #tpu.memory_space<vmem>>, %arg4: memref<64x32xf32, #tpu.memory_space<vmem>>) attributes {dimension_semantics = [#tpu.dimension_semantics<parallel>], iteration_bounds = array<i64: 1>, scalar_prefetch = 0 : i64, scratch_operands = 0 : i64, tpu.core_type = #tpu.core_type<tc>, window_params = [{transform_indices = @transform_0, window_bounds = array<i64: 64, 32>}, {pipeline_mode = #tpu.pipeline_mode<synchronous>, transform_indices = @transform_1, window_bounds = array<i64: 64, 1>}, {pipeline_mode = #tpu.pipeline_mode<synchronous>, transform_indices = @transform_2, window_bounds = array<i64: 64, 1>}, {transform_indices = @transform_3, window_bounds = array<i64: 64, 32>}]} {
    %c0 = arith.constant 0 : index
    %c0_0 = arith.constant 0 : index
    %0 = vector.load %arg1[%c0, %c0_0] : memref<64x32xf32, #tpu.memory_space<vmem>>, vector<64x32xf32>
    %c0_1 = arith.constant 0 : index
    %c0_2 = arith.constant 0 : index
    %1 = vector.load %arg2[%c0_1, %c0_2] : memref<64x1xf32, #tpu.memory_space<vmem>>, vector<64x1xf32>
    %2 = vector.broadcast %1 : vector<64x1xf32> to vector<64x32xf32>
    %3 = arith.mulf %0, %2 : vector<64x32xf32>
    %c0_3 = arith.constant 0 : index
    %c0_4 = arith.constant 0 : index
    %4 = vector.load %arg3[%c0_3, %c0_4] : memref<64x1xf32, #tpu.memory_space<vmem>>, vector<64x1xf32>
    %5 = vector.broadcast %4 : vector<64x1xf32> to vector<64x32xf32>
    %6 = arith.addf %3, %5 : vector<64x32xf32>
    %cst = arith.constant 0.000000e+00 : f32
    %7 = vector.broadcast %cst : f32 to vector<64x32xf32>
    %8 = arith.maximumf %6, %7 : vector<64x32xf32>
    %c0_5 = arith.constant 0 : index
    %c0_6 = arith.constant 0 : index
    %9 = vector.load %arg4[%c0_5, %c0_6] : memref<64x32xf32, #tpu.memory_space<vmem>>, vector<64x32xf32>
    tpu.vector_store %arg4[%c0_5, %c0_6], %8 {strides = array<i32>} : memref<64x32xf32, #tpu.memory_space<vmem>>, vector<64x32xf32>,
    return
  }
  func.func @transform_0(%arg0: i32) -> (i32, i32) {
    %c0_i32 = arith.constant 0 : i32
    %c0_i32_0 = arith.constant 0 : i32
    return %c0_i32, %arg0 : i32, i32
  }
  func.func @transform_1(%arg0: i32) -> (i32, i32) {
    %c0_i32 = arith.constant 0 : i32
    %c0_i32_0 = arith.constant 0 : i32
    %c0_i32_1 = arith.constant 0 : i32
    return %c0_i32, %c0_i32_0 : i32, i32
  }
  func.func @transform_2(%arg0: i32) -> (i32, i32) {
    %c0_i32 = arith.constant 0 : i32
    %c0_i32_0 = arith.constant 0 : i32
    %c0_i32_1 = arith.constant 0 : i32
    return %c0_i32, %c0_i32_0 : i32, i32
  }
  func.func @transform_3(%arg0: i32) -> (i32, i32) {
    %c0_i32 = arith.constant 0 : i32
    %c0_i32_0 = arith.constant 0 : i32
    return %c0_i32, %arg0 : i32, i32
  }
}

module attributes {stable_mosaic.version = 11 : i64} {
  func.func @_phase_conv_kernel(%arg0: i32, %arg1: memref<1x32x256xf32, #tpu.memory_space<vmem>>, %arg2: memref<1x256x32xf32, #tpu.memory_space<vmem>>, %arg3: memref<1x32x32xf32, #tpu.memory_space<vmem>>, %arg4: memref<1x32x1xf32, #tpu.memory_space<vmem>>, %arg5: memref<1x32x1xf32, #tpu.memory_space<vmem>>) attributes {dimension_semantics = [#tpu.dimension_semantics<parallel>], iteration_bounds = array<i64: 4>, scalar_prefetch = 0 : i64, scratch_operands = 0 : i64, tpu.core_type = #tpu.core_type<tc>, window_params = [{transform_indices = @transform_0, window_bounds = array<i64: 1, 32, 256>}, {transform_indices = @transform_1, window_bounds = array<i64: 1, 256, 32>}, {transform_indices = @transform_2, window_bounds = array<i64: 1, 32, 32>}, {transform_indices = @transform_3, window_bounds = array<i64: 1, 32, 1>}, {transform_indices = @transform_4, window_bounds = array<i64: 1, 32, 1>}]} {
    %c0 = arith.constant 0 : index
    %c0_0 = arith.constant 0 : index
    %c0_1 = arith.constant 0 : index
    %0 = vector.load %arg1[%c0, %c0_0, %c0_1] : memref<1x32x256xf32, #tpu.memory_space<vmem>>, vector<1x32x256xf32>
    %1 = vector.shape_cast %0 : vector<1x32x256xf32> to vector<32x256xf32>
    %c0_2 = arith.constant 0 : index
    %c0_3 = arith.constant 0 : index
    %c0_4 = arith.constant 0 : index
    %2 = vector.load %arg2[%c0_2, %c0_3, %c0_4] : memref<1x256x32xf32, #tpu.memory_space<vmem>>, vector<1x256x32xf32>
    %3 = vector.shape_cast %2 : vector<1x256x32xf32> to vector<256x32xf32>
    %cst = arith.constant dense<0.000000e+00> : vector<32x32xf32>
    %4 = tpu.matmul %1, %3, %cst {dimension_numbers = #tpu.dot_dimension_numbers<[1], [0], [0], [1], [0, 0, 1, 1], [], []>} : vector<32x256xf32>, vector<256x32xf32>, vector<32x32xf32> -> vector<32x32xf32>
    %c0_5 = arith.constant 0 : index
    %c0_6 = arith.constant 0 : index
    %c0_7 = arith.constant 0 : index
    %5 = vector.load %arg3[%c0_5, %c0_6, %c0_7] : memref<1x32x32xf32, #tpu.memory_space<vmem>>, vector<1x32x32xf32>
    %6 = vector.shape_cast %5 : vector<1x32x32xf32> to vector<32x32xf32>
    %7 = vector.shape_cast %4 : vector<32x32xf32> to vector<1x32x32xf32>
    tpu.vector_store %arg3[%c0_5, %c0_6, %c0_7], %7 {strides = array<i32>} : memref<1x32x32xf32, #tpu.memory_space<vmem>>, vector<1x32x32xf32>,
    %cst_8 = arith.constant dense<0.000000e+00> : vector<32xf32>
    %8 = vector.multi_reduction <add>, %4, %cst_8 [1] : vector<32x32xf32> to vector<32xf32>
    %9 = vector.shape_cast %8 : vector<32xf32> to vector<32x1xf32>
    %c0_9 = arith.constant 0 : index
    %c0_10 = arith.constant 0 : index
    %c0_11 = arith.constant 0 : index
    %10 = vector.load %arg4[%c0_9, %c0_10, %c0_11] : memref<1x32x1xf32, #tpu.memory_space<vmem>>, vector<1x32x1xf32>
    %11 = vector.shape_cast %10 : vector<1x32x1xf32> to vector<32x1xf32>
    %12 = vector.shape_cast %9 : vector<32x1xf32> to vector<1x32x1xf32>
    tpu.vector_store %arg4[%c0_9, %c0_10, %c0_11], %12 {strides = array<i32>} : memref<1x32x1xf32, #tpu.memory_space<vmem>>, vector<1x32x1xf32>,
    %13 = arith.mulf %4, %4 : vector<32x32xf32>
    %cst_12 = arith.constant dense<0.000000e+00> : vector<32xf32>
    %14 = vector.multi_reduction <add>, %13, %cst_12 [1] : vector<32x32xf32> to vector<32xf32>
    %15 = vector.shape_cast %14 : vector<32xf32> to vector<32x1xf32>
    %c0_13 = arith.constant 0 : index
    %c0_14 = arith.constant 0 : index
    %c0_15 = arith.constant 0 : index
    %16 = vector.load %arg5[%c0_13, %c0_14, %c0_15] : memref<1x32x1xf32, #tpu.memory_space<vmem>>, vector<1x32x1xf32>
    %17 = vector.shape_cast %16 : vector<1x32x1xf32> to vector<32x1xf32>
    %18 = vector.shape_cast %15 : vector<32x1xf32> to vector<1x32x1xf32>
    tpu.vector_store %arg5[%c0_13, %c0_14, %c0_15], %18 {strides = array<i32>} : memref<1x32x1xf32, #tpu.memory_space<vmem>>, vector<1x32x1xf32>,
    return
  }
  func.func @transform_0(%arg0: i32) -> (i32, i32, i32) {
    %c0_i32 = arith.constant 0 : i32
    %c0_i32_0 = arith.constant 0 : i32
    %c0_i32_1 = arith.constant 0 : i32
    return %arg0, %c0_i32, %c0_i32_0 : i32, i32, i32
  }
  func.func @transform_1(%arg0: i32) -> (i32, i32, i32) {
    %c0_i32 = arith.constant 0 : i32
    %c0_i32_0 = arith.constant 0 : i32
    %c0_i32_1 = arith.constant 0 : i32
    return %arg0, %c0_i32, %c0_i32_0 : i32, i32, i32
  }
  func.func @transform_2(%arg0: i32) -> (i32, i32, i32) {
    %c0_i32 = arith.constant 0 : i32
    %c0_i32_0 = arith.constant 0 : i32
    %c0_i32_1 = arith.constant 0 : i32
    return %arg0, %c0_i32, %c0_i32_0 : i32, i32, i32
  }
  func.func @transform_3(%arg0: i32) -> (i32, i32, i32) {
    %c0_i32 = arith.constant 0 : i32
    %c0_i32_0 = arith.constant 0 : i32
    %c0_i32_1 = arith.constant 0 : i32
    return %arg0, %c0_i32, %c0_i32_0 : i32, i32, i32
  }
  func.func @transform_4(%arg0: i32) -> (i32, i32, i32) {
    %c0_i32 = arith.constant 0 : i32
    %c0_i32_0 = arith.constant 0 : i32
    %c0_i32_1 = arith.constant 0 : i32
    return %arg0, %c0_i32, %c0_i32_0 : i32, i32, i32
  }
}

module attributes {stable_mosaic.version = 11 : i64} {
  func.func @_affine_relu_kernel(%arg0: i32, %arg1: memref<32x128xf32, #tpu.memory_space<vmem>>, %arg2: memref<32x1xf32, #tpu.memory_space<vmem>>, %arg3: memref<32x1xf32, #tpu.memory_space<vmem>>, %arg4: memref<32x128xf32, #tpu.memory_space<vmem>>) attributes {dimension_semantics = [#tpu.dimension_semantics<parallel>], iteration_bounds = array<i64: 1>, scalar_prefetch = 0 : i64, scratch_operands = 0 : i64, tpu.core_type = #tpu.core_type<tc>, window_params = [{transform_indices = @transform_0, window_bounds = array<i64: 32, 128>}, {pipeline_mode = #tpu.pipeline_mode<synchronous>, transform_indices = @transform_1, window_bounds = array<i64: 32, 1>}, {pipeline_mode = #tpu.pipeline_mode<synchronous>, transform_indices = @transform_2, window_bounds = array<i64: 32, 1>}, {transform_indices = @transform_3, window_bounds = array<i64: 32, 128>}]} {
    %c0 = arith.constant 0 : index
    %c0_0 = arith.constant 0 : index
    %0 = vector.load %arg1[%c0, %c0_0] : memref<32x128xf32, #tpu.memory_space<vmem>>, vector<32x128xf32>
    %c0_1 = arith.constant 0 : index
    %c0_2 = arith.constant 0 : index
    %1 = vector.load %arg2[%c0_1, %c0_2] : memref<32x1xf32, #tpu.memory_space<vmem>>, vector<32x1xf32>
    %2 = vector.broadcast %1 : vector<32x1xf32> to vector<32x128xf32>
    %3 = arith.mulf %0, %2 : vector<32x128xf32>
    %c0_3 = arith.constant 0 : index
    %c0_4 = arith.constant 0 : index
    %4 = vector.load %arg3[%c0_3, %c0_4] : memref<32x1xf32, #tpu.memory_space<vmem>>, vector<32x1xf32>
    %5 = vector.broadcast %4 : vector<32x1xf32> to vector<32x128xf32>
    %6 = arith.addf %3, %5 : vector<32x128xf32>
    %cst = arith.constant 0.000000e+00 : f32
    %7 = vector.broadcast %cst : f32 to vector<32x128xf32>
    %8 = arith.maximumf %6, %7 : vector<32x128xf32>
    %c0_5 = arith.constant 0 : index
    %c0_6 = arith.constant 0 : index
    %9 = vector.load %arg4[%c0_5, %c0_6] : memref<32x128xf32, #tpu.memory_space<vmem>>, vector<32x128xf32>
    tpu.vector_store %arg4[%c0_5, %c0_6], %8 {strides = array<i32>} : memref<32x128xf32, #tpu.memory_space<vmem>>, vector<32x128xf32>,
    return
  }
  func.func @transform_0(%arg0: i32) -> (i32, i32) {
    %c0_i32 = arith.constant 0 : i32
    %c0_i32_0 = arith.constant 0 : i32
    return %c0_i32, %arg0 : i32, i32
  }
  func.func @transform_1(%arg0: i32) -> (i32, i32) {
    %c0_i32 = arith.constant 0 : i32
    %c0_i32_0 = arith.constant 0 : i32
    %c0_i32_1 = arith.constant 0 : i32
    return %c0_i32, %c0_i32_0 : i32, i32
  }
  func.func @transform_2(%arg0: i32) -> (i32, i32) {
    %c0_i32 = arith.constant 0 : i32
    %c0_i32_0 = arith.constant 0 : i32
    %c0_i32_1 = arith.constant 0 : i32
    return %c0_i32, %c0_i32_0 : i32, i32
  }
  func.func @transform_3(%arg0: i32) -> (i32, i32) {
    %c0_i32 = arith.constant 0 : i32
    %c0_i32_0 = arith.constant 0 : i32
    return %c0_i32, %arg0 : i32, i32
  }
}

module attributes {stable_mosaic.version = 11 : i64} {
  func.func @_phase_conv_kernel(%arg0: i32, %arg1: memref<1x16x128xf32, #tpu.memory_space<vmem>>, %arg2: memref<1x128x128xf32, #tpu.memory_space<vmem>>, %arg3: memref<1x16x128xf32, #tpu.memory_space<vmem>>, %arg4: memref<1x16x1xf32, #tpu.memory_space<vmem>>, %arg5: memref<1x16x1xf32, #tpu.memory_space<vmem>>) attributes {dimension_semantics = [#tpu.dimension_semantics<parallel>], iteration_bounds = array<i64: 4>, scalar_prefetch = 0 : i64, scratch_operands = 0 : i64, tpu.core_type = #tpu.core_type<tc>, window_params = [{transform_indices = @transform_0, window_bounds = array<i64: 1, 16, 128>}, {transform_indices = @transform_1, window_bounds = array<i64: 1, 128, 128>}, {transform_indices = @transform_2, window_bounds = array<i64: 1, 16, 128>}, {transform_indices = @transform_3, window_bounds = array<i64: 1, 16, 1>}, {transform_indices = @transform_4, window_bounds = array<i64: 1, 16, 1>}]} {
    %c0 = arith.constant 0 : index
    %c0_0 = arith.constant 0 : index
    %c0_1 = arith.constant 0 : index
    %0 = vector.load %arg1[%c0, %c0_0, %c0_1] : memref<1x16x128xf32, #tpu.memory_space<vmem>>, vector<1x16x128xf32>
    %1 = vector.shape_cast %0 : vector<1x16x128xf32> to vector<16x128xf32>
    %c0_2 = arith.constant 0 : index
    %c0_3 = arith.constant 0 : index
    %c0_4 = arith.constant 0 : index
    %2 = vector.load %arg2[%c0_2, %c0_3, %c0_4] : memref<1x128x128xf32, #tpu.memory_space<vmem>>, vector<1x128x128xf32>
    %3 = vector.shape_cast %2 : vector<1x128x128xf32> to vector<128x128xf32>
    %cst = arith.constant dense<0.000000e+00> : vector<16x128xf32>
    %4 = tpu.matmul %1, %3, %cst {dimension_numbers = #tpu.dot_dimension_numbers<[1], [0], [0], [1], [0, 0, 1, 1], [], []>} : vector<16x128xf32>, vector<128x128xf32>, vector<16x128xf32> -> vector<16x128xf32>
    %c0_5 = arith.constant 0 : index
    %c0_6 = arith.constant 0 : index
    %c0_7 = arith.constant 0 : index
    %5 = vector.load %arg3[%c0_5, %c0_6, %c0_7] : memref<1x16x128xf32, #tpu.memory_space<vmem>>, vector<1x16x128xf32>
    %6 = vector.shape_cast %5 : vector<1x16x128xf32> to vector<16x128xf32>
    %7 = vector.shape_cast %4 : vector<16x128xf32> to vector<1x16x128xf32>
    tpu.vector_store %arg3[%c0_5, %c0_6, %c0_7], %7 {strides = array<i32>} : memref<1x16x128xf32, #tpu.memory_space<vmem>>, vector<1x16x128xf32>,
    %cst_8 = arith.constant dense<0.000000e+00> : vector<16xf32>
    %8 = vector.multi_reduction <add>, %4, %cst_8 [1] : vector<16x128xf32> to vector<16xf32>
    %9 = vector.shape_cast %8 : vector<16xf32> to vector<16x1xf32>
    %c0_9 = arith.constant 0 : index
    %c0_10 = arith.constant 0 : index
    %c0_11 = arith.constant 0 : index
    %10 = vector.load %arg4[%c0_9, %c0_10, %c0_11] : memref<1x16x1xf32, #tpu.memory_space<vmem>>, vector<1x16x1xf32>
    %11 = vector.shape_cast %10 : vector<1x16x1xf32> to vector<16x1xf32>
    %12 = vector.shape_cast %9 : vector<16x1xf32> to vector<1x16x1xf32>
    tpu.vector_store %arg4[%c0_9, %c0_10, %c0_11], %12 {strides = array<i32>} : memref<1x16x1xf32, #tpu.memory_space<vmem>>, vector<1x16x1xf32>,
    %13 = arith.mulf %4, %4 : vector<16x128xf32>
    %cst_12 = arith.constant dense<0.000000e+00> : vector<16xf32>
    %14 = vector.multi_reduction <add>, %13, %cst_12 [1] : vector<16x128xf32> to vector<16xf32>
    %15 = vector.shape_cast %14 : vector<16xf32> to vector<16x1xf32>
    %c0_13 = arith.constant 0 : index
    %c0_14 = arith.constant 0 : index
    %c0_15 = arith.constant 0 : index
    %16 = vector.load %arg5[%c0_13, %c0_14, %c0_15] : memref<1x16x1xf32, #tpu.memory_space<vmem>>, vector<1x16x1xf32>
    %17 = vector.shape_cast %16 : vector<1x16x1xf32> to vector<16x1xf32>
    %18 = vector.shape_cast %15 : vector<16x1xf32> to vector<1x16x1xf32>
    tpu.vector_store %arg5[%c0_13, %c0_14, %c0_15], %18 {strides = array<i32>} : memref<1x16x1xf32, #tpu.memory_space<vmem>>, vector<1x16x1xf32>,
    return
  }
  func.func @transform_0(%arg0: i32) -> (i32, i32, i32) {
    %c0_i32 = arith.constant 0 : i32
    %c0_i32_0 = arith.constant 0 : i32
    %c0_i32_1 = arith.constant 0 : i32
    return %arg0, %c0_i32, %c0_i32_0 : i32, i32, i32
  }
  func.func @transform_1(%arg0: i32) -> (i32, i32, i32) {
    %c0_i32 = arith.constant 0 : i32
    %c0_i32_0 = arith.constant 0 : i32
    %c0_i32_1 = arith.constant 0 : i32
    return %arg0, %c0_i32, %c0_i32_0 : i32, i32, i32
  }
  func.func @transform_2(%arg0: i32) -> (i32, i32, i32) {
    %c0_i32 = arith.constant 0 : i32
    %c0_i32_0 = arith.constant 0 : i32
    %c0_i32_1 = arith.constant 0 : i32
    return %arg0, %c0_i32, %c0_i32_0 : i32, i32, i32
  }
  func.func @transform_3(%arg0: i32) -> (i32, i32, i32) {
    %c0_i32 = arith.constant 0 : i32
    %c0_i32_0 = arith.constant 0 : i32
    %c0_i32_1 = arith.constant 0 : i32
    return %arg0, %c0_i32, %c0_i32_0 : i32, i32, i32
  }
  func.func @transform_4(%arg0: i32) -> (i32, i32, i32) {
    %c0_i32 = arith.constant 0 : i32
    %c0_i32_0 = arith.constant 0 : i32
    %c0_i32_1 = arith.constant 0 : i32
    return %arg0, %c0_i32, %c0_i32_0 : i32, i32, i32
  }
}

module attributes {stable_mosaic.version = 11 : i64} {
  func.func @_affine_relu_kernel(%arg0: i32, %arg1: memref<16x512xf32, #tpu.memory_space<vmem>>, %arg2: memref<16x1xf32, #tpu.memory_space<vmem>>, %arg3: memref<16x1xf32, #tpu.memory_space<vmem>>, %arg4: memref<16x512xf32, #tpu.memory_space<vmem>>) attributes {dimension_semantics = [#tpu.dimension_semantics<parallel>], iteration_bounds = array<i64: 1>, scalar_prefetch = 0 : i64, scratch_operands = 0 : i64, tpu.core_type = #tpu.core_type<tc>, window_params = [{transform_indices = @transform_0, window_bounds = array<i64: 16, 512>}, {pipeline_mode = #tpu.pipeline_mode<synchronous>, transform_indices = @transform_1, window_bounds = array<i64: 16, 1>}, {pipeline_mode = #tpu.pipeline_mode<synchronous>, transform_indices = @transform_2, window_bounds = array<i64: 16, 1>}, {transform_indices = @transform_3, window_bounds = array<i64: 16, 512>}]} {
    %c0 = arith.constant 0 : index
    %c0_0 = arith.constant 0 : index
    %0 = vector.load %arg1[%c0, %c0_0] : memref<16x512xf32, #tpu.memory_space<vmem>>, vector<16x512xf32>
    %c0_1 = arith.constant 0 : index
    %c0_2 = arith.constant 0 : index
    %1 = vector.load %arg2[%c0_1, %c0_2] : memref<16x1xf32, #tpu.memory_space<vmem>>, vector<16x1xf32>
    %2 = vector.broadcast %1 : vector<16x1xf32> to vector<16x512xf32>
    %3 = arith.mulf %0, %2 : vector<16x512xf32>
    %c0_3 = arith.constant 0 : index
    %c0_4 = arith.constant 0 : index
    %4 = vector.load %arg3[%c0_3, %c0_4] : memref<16x1xf32, #tpu.memory_space<vmem>>, vector<16x1xf32>
    %5 = vector.broadcast %4 : vector<16x1xf32> to vector<16x512xf32>
    %6 = arith.addf %3, %5 : vector<16x512xf32>
    %cst = arith.constant 0.000000e+00 : f32
    %7 = vector.broadcast %cst : f32 to vector<16x512xf32>
    %8 = arith.maximumf %6, %7 : vector<16x512xf32>
    %c0_5 = arith.constant 0 : index
    %c0_6 = arith.constant 0 : index
    %9 = vector.load %arg4[%c0_5, %c0_6] : memref<16x512xf32, #tpu.memory_space<vmem>>, vector<16x512xf32>
    tpu.vector_store %arg4[%c0_5, %c0_6], %8 {strides = array<i32>} : memref<16x512xf32, #tpu.memory_space<vmem>>, vector<16x512xf32>,
    return
  }
  func.func @transform_0(%arg0: i32) -> (i32, i32) {
    %c0_i32 = arith.constant 0 : i32
    %c0_i32_0 = arith.constant 0 : i32
    return %c0_i32, %arg0 : i32, i32
  }
  func.func @transform_1(%arg0: i32) -> (i32, i32) {
    %c0_i32 = arith.constant 0 : i32
    %c0_i32_0 = arith.constant 0 : i32
    %c0_i32_1 = arith.constant 0 : i32
    return %c0_i32, %c0_i32_0 : i32, i32
  }
  func.func @transform_2(%arg0: i32) -> (i32, i32) {
    %c0_i32 = arith.constant 0 : i32
    %c0_i32_0 = arith.constant 0 : i32
    %c0_i32_1 = arith.constant 0 : i32
    return %c0_i32, %c0_i32_0 : i32, i32
  }
  func.func @transform_3(%arg0: i32) -> (i32, i32) {
    %c0_i32 = arith.constant 0 : i32
    %c0_i32_0 = arith.constant 0 : i32
    return %c0_i32, %arg0 : i32, i32
  }
}

module attributes {stable_mosaic.version = 11 : i64} {
  func.func @_phase_conv_kernel(%arg0: i32, %arg1: memref<1x8x64xf32, #tpu.memory_space<vmem>>, %arg2: memref<1x64x512xf32, #tpu.memory_space<vmem>>, %arg3: memref<1x8x512xf32, #tpu.memory_space<vmem>>, %arg4: memref<1x8x1xf32, #tpu.memory_space<vmem>>, %arg5: memref<1x8x1xf32, #tpu.memory_space<vmem>>) attributes {dimension_semantics = [#tpu.dimension_semantics<parallel>], iteration_bounds = array<i64: 4>, scalar_prefetch = 0 : i64, scratch_operands = 0 : i64, tpu.core_type = #tpu.core_type<tc>, window_params = [{transform_indices = @transform_0, window_bounds = array<i64: 1, 8, 64>}, {transform_indices = @transform_1, window_bounds = array<i64: 1, 64, 512>}, {transform_indices = @transform_2, window_bounds = array<i64: 1, 8, 512>}, {transform_indices = @transform_3, window_bounds = array<i64: 1, 8, 1>}, {transform_indices = @transform_4, window_bounds = array<i64: 1, 8, 1>}]} {
    %c0 = arith.constant 0 : index
    %c0_0 = arith.constant 0 : index
    %c0_1 = arith.constant 0 : index
    %0 = vector.load %arg1[%c0, %c0_0, %c0_1] : memref<1x8x64xf32, #tpu.memory_space<vmem>>, vector<1x8x64xf32>
    %1 = vector.shape_cast %0 : vector<1x8x64xf32> to vector<8x64xf32>
    %c0_2 = arith.constant 0 : index
    %c0_3 = arith.constant 0 : index
    %c0_4 = arith.constant 0 : index
    %2 = vector.load %arg2[%c0_2, %c0_3, %c0_4] : memref<1x64x512xf32, #tpu.memory_space<vmem>>, vector<1x64x512xf32>
    %3 = vector.shape_cast %2 : vector<1x64x512xf32> to vector<64x512xf32>
    %cst = arith.constant dense<0.000000e+00> : vector<8x512xf32>
    %4 = tpu.matmul %1, %3, %cst {dimension_numbers = #tpu.dot_dimension_numbers<[1], [0], [0], [1], [0, 0, 1, 1], [], []>} : vector<8x64xf32>, vector<64x512xf32>, vector<8x512xf32> -> vector<8x512xf32>
    %c0_5 = arith.constant 0 : index
    %c0_6 = arith.constant 0 : index
    %c0_7 = arith.constant 0 : index
    %5 = vector.load %arg3[%c0_5, %c0_6, %c0_7] : memref<1x8x512xf32, #tpu.memory_space<vmem>>, vector<1x8x512xf32>
    %6 = vector.shape_cast %5 : vector<1x8x512xf32> to vector<8x512xf32>
    %7 = vector.shape_cast %4 : vector<8x512xf32> to vector<1x8x512xf32>
    tpu.vector_store %arg3[%c0_5, %c0_6, %c0_7], %7 {strides = array<i32>} : memref<1x8x512xf32, #tpu.memory_space<vmem>>, vector<1x8x512xf32>,
    %cst_8 = arith.constant dense<0.000000e+00> : vector<8xf32>
    %8 = vector.multi_reduction <add>, %4, %cst_8 [1] : vector<8x512xf32> to vector<8xf32>
    %9 = vector.shape_cast %8 : vector<8xf32> to vector<8x1xf32>
    %c0_9 = arith.constant 0 : index
    %c0_10 = arith.constant 0 : index
    %c0_11 = arith.constant 0 : index
    %10 = vector.load %arg4[%c0_9, %c0_10, %c0_11] : memref<1x8x1xf32, #tpu.memory_space<vmem>>, vector<1x8x1xf32>
    %11 = vector.shape_cast %10 : vector<1x8x1xf32> to vector<8x1xf32>
    %12 = vector.shape_cast %9 : vector<8x1xf32> to vector<1x8x1xf32>
    tpu.vector_store %arg4[%c0_9, %c0_10, %c0_11], %12 {strides = array<i32>} : memref<1x8x1xf32, #tpu.memory_space<vmem>>, vector<1x8x1xf32>,
    %13 = arith.mulf %4, %4 : vector<8x512xf32>
    %cst_12 = arith.constant dense<0.000000e+00> : vector<8xf32>
    %14 = vector.multi_reduction <add>, %13, %cst_12 [1] : vector<8x512xf32> to vector<8xf32>
    %15 = vector.shape_cast %14 : vector<8xf32> to vector<8x1xf32>
    %c0_13 = arith.constant 0 : index
    %c0_14 = arith.constant 0 : index
    %c0_15 = arith.constant 0 : index
    %16 = vector.load %arg5[%c0_13, %c0_14, %c0_15] : memref<1x8x1xf32, #tpu.memory_space<vmem>>, vector<1x8x1xf32>
    %17 = vector.shape_cast %16 : vector<1x8x1xf32> to vector<8x1xf32>
    %18 = vector.shape_cast %15 : vector<8x1xf32> to vector<1x8x1xf32>
    tpu.vector_store %arg5[%c0_13, %c0_14, %c0_15], %18 {strides = array<i32>} : memref<1x8x1xf32, #tpu.memory_space<vmem>>, vector<1x8x1xf32>,
    return
  }
  func.func @transform_0(%arg0: i32) -> (i32, i32, i32) {
    %c0_i32 = arith.constant 0 : i32
    %c0_i32_0 = arith.constant 0 : i32
    %c0_i32_1 = arith.constant 0 : i32
    return %arg0, %c0_i32, %c0_i32_0 : i32, i32, i32
  }
  func.func @transform_1(%arg0: i32) -> (i32, i32, i32) {
    %c0_i32 = arith.constant 0 : i32
    %c0_i32_0 = arith.constant 0 : i32
    %c0_i32_1 = arith.constant 0 : i32
    return %arg0, %c0_i32, %c0_i32_0 : i32, i32, i32
  }
  func.func @transform_2(%arg0: i32) -> (i32, i32, i32) {
    %c0_i32 = arith.constant 0 : i32
    %c0_i32_0 = arith.constant 0 : i32
    %c0_i32_1 = arith.constant 0 : i32
    return %arg0, %c0_i32, %c0_i32_0 : i32, i32, i32
  }
  func.func @transform_3(%arg0: i32) -> (i32, i32, i32) {
    %c0_i32 = arith.constant 0 : i32
    %c0_i32_0 = arith.constant 0 : i32
    %c0_i32_1 = arith.constant 0 : i32
    return %arg0, %c0_i32, %c0_i32_0 : i32, i32, i32
  }
  func.func @transform_4(%arg0: i32) -> (i32, i32, i32) {
    %c0_i32 = arith.constant 0 : i32
    %c0_i32_0 = arith.constant 0 : i32
    %c0_i32_1 = arith.constant 0 : i32
    return %arg0, %c0_i32, %c0_i32_0 : i32, i32, i32
  }
}

module attributes {stable_mosaic.version = 11 : i64} {
  func.func @_affine_relu_kernel(%arg0: i32, %arg1: memref<8x1024xf32, #tpu.memory_space<vmem>>, %arg2: memref<8x1xf32, #tpu.memory_space<vmem>>, %arg3: memref<8x1xf32, #tpu.memory_space<vmem>>, %arg4: memref<8x1024xf32, #tpu.memory_space<vmem>>) attributes {dimension_semantics = [#tpu.dimension_semantics<parallel>], iteration_bounds = array<i64: 2>, scalar_prefetch = 0 : i64, scratch_operands = 0 : i64, tpu.core_type = #tpu.core_type<tc>, window_params = [{transform_indices = @transform_0, window_bounds = array<i64: 8, 1024>}, {pipeline_mode = #tpu.pipeline_mode<synchronous>, transform_indices = @transform_1, window_bounds = array<i64: 8, 1>}, {pipeline_mode = #tpu.pipeline_mode<synchronous>, transform_indices = @transform_2, window_bounds = array<i64: 8, 1>}, {transform_indices = @transform_3, window_bounds = array<i64: 8, 1024>}]} {
    %c0 = arith.constant 0 : index
    %c0_0 = arith.constant 0 : index
    %0 = vector.load %arg1[%c0, %c0_0] : memref<8x1024xf32, #tpu.memory_space<vmem>>, vector<8x1024xf32>
    %c0_1 = arith.constant 0 : index
    %c0_2 = arith.constant 0 : index
    %1 = vector.load %arg2[%c0_1, %c0_2] : memref<8x1xf32, #tpu.memory_space<vmem>>, vector<8x1xf32>
    %2 = vector.broadcast %1 : vector<8x1xf32> to vector<8x1024xf32>
    %3 = arith.mulf %0, %2 : vector<8x1024xf32>
    %c0_3 = arith.constant 0 : index
    %c0_4 = arith.constant 0 : index
    %4 = vector.load %arg3[%c0_3, %c0_4] : memref<8x1xf32, #tpu.memory_space<vmem>>, vector<8x1xf32>
    %5 = vector.broadcast %4 : vector<8x1xf32> to vector<8x1024xf32>
    %6 = arith.addf %3, %5 : vector<8x1024xf32>
    %cst = arith.constant 0.000000e+00 : f32
    %7 = vector.broadcast %cst : f32 to vector<8x1024xf32>
    %8 = arith.maximumf %6, %7 : vector<8x1024xf32>
    %c0_5 = arith.constant 0 : index
    %c0_6 = arith.constant 0 : index
    %9 = vector.load %arg4[%c0_5, %c0_6] : memref<8x1024xf32, #tpu.memory_space<vmem>>, vector<8x1024xf32>
    tpu.vector_store %arg4[%c0_5, %c0_6], %8 {strides = array<i32>} : memref<8x1024xf32, #tpu.memory_space<vmem>>, vector<8x1024xf32>,
    return
  }
  func.func @transform_0(%arg0: i32) -> (i32, i32) {
    %c0_i32 = arith.constant 0 : i32
    %c0_i32_0 = arith.constant 0 : i32
    return %c0_i32, %arg0 : i32, i32
  }
  func.func @transform_1(%arg0: i32) -> (i32, i32) {
    %c0_i32 = arith.constant 0 : i32
    %c0_i32_0 = arith.constant 0 : i32
    %c0_i32_1 = arith.constant 0 : i32
    return %c0_i32, %c0_i32_0 : i32, i32
  }
  func.func @transform_2(%arg0: i32) -> (i32, i32) {
    %c0_i32 = arith.constant 0 : i32
    %c0_i32_0 = arith.constant 0 : i32
    %c0_i32_1 = arith.constant 0 : i32
    return %c0_i32, %c0_i32_0 : i32, i32
  }
  func.func @transform_3(%arg0: i32) -> (i32, i32) {
    %c0_i32 = arith.constant 0 : i32
    %c0_i32_0 = arith.constant 0 : i32
    return %c0_i32, %arg0 : i32, i32
  }
}

module attributes {stable_mosaic.version = 11 : i64} {
  func.func @_phase_conv_kernel(%arg0: i32, %arg1: memref<1x3x32xf32, #tpu.memory_space<vmem>>, %arg2: memref<1x32x2048xf32, #tpu.memory_space<vmem>>, %arg3: memref<1x3x2048xf32, #tpu.memory_space<vmem>>) attributes {dimension_semantics = [#tpu.dimension_semantics<parallel>], iteration_bounds = array<i64: 4>, scalar_prefetch = 0 : i64, scratch_operands = 0 : i64, tpu.core_type = #tpu.core_type<tc>, window_params = [{transform_indices = @transform_0, window_bounds = array<i64: 1, 3, 32>}, {transform_indices = @transform_1, window_bounds = array<i64: 1, 32, 2048>}, {transform_indices = @transform_2, window_bounds = array<i64: 1, 3, 2048>}]} {
    %c0 = arith.constant 0 : index
    %c0_0 = arith.constant 0 : index
    %c0_1 = arith.constant 0 : index
    %0 = vector.load %arg1[%c0, %c0_0, %c0_1] : memref<1x3x32xf32, #tpu.memory_space<vmem>>, vector<1x3x32xf32>
    %1 = vector.shape_cast %0 : vector<1x3x32xf32> to vector<3x32xf32>
    %c0_2 = arith.constant 0 : index
    %c0_3 = arith.constant 0 : index
    %c0_4 = arith.constant 0 : index
    %2 = vector.load %arg2[%c0_2, %c0_3, %c0_4] : memref<1x32x2048xf32, #tpu.memory_space<vmem>>, vector<1x32x2048xf32>
    %3 = vector.shape_cast %2 : vector<1x32x2048xf32> to vector<32x2048xf32>
    %cst = arith.constant dense<0.000000e+00> : vector<3x2048xf32>
    %4 = tpu.matmul %1, %3, %cst {dimension_numbers = #tpu.dot_dimension_numbers<[1], [0], [0], [1], [0, 0, 1, 1], [], []>} : vector<3x32xf32>, vector<32x2048xf32>, vector<3x2048xf32> -> vector<3x2048xf32>
    %5 = math.tanh %4 : vector<3x2048xf32>
    %c0_5 = arith.constant 0 : index
    %c0_6 = arith.constant 0 : index
    %c0_7 = arith.constant 0 : index
    %6 = vector.load %arg3[%c0_5, %c0_6, %c0_7] : memref<1x3x2048xf32, #tpu.memory_space<vmem>>, vector<1x3x2048xf32>
    %7 = vector.shape_cast %6 : vector<1x3x2048xf32> to vector<3x2048xf32>
    %8 = vector.shape_cast %5 : vector<3x2048xf32> to vector<1x3x2048xf32>
    tpu.vector_store %arg3[%c0_5, %c0_6, %c0_7], %8 {strides = array<i32>} : memref<1x3x2048xf32, #tpu.memory_space<vmem>>, vector<1x3x2048xf32>,
    return
  }
  func.func @transform_0(%arg0: i32) -> (i32, i32, i32) {
    %c0_i32 = arith.constant 0 : i32
    %c0_i32_0 = arith.constant 0 : i32
    %c0_i32_1 = arith.constant 0 : i32
    return %arg0, %c0_i32, %c0_i32_0 : i32, i32, i32
  }
  func.func @transform_1(%arg0: i32) -> (i32, i32, i32) {
    %c0_i32 = arith.constant 0 : i32
    %c0_i32_0 = arith.constant 0 : i32
    %c0_i32_1 = arith.constant 0 : i32
    return %arg0, %c0_i32, %c0_i32_0 : i32, i32, i32
  }
  func.func @transform_2(%arg0: i32) -> (i32, i32, i32) {
    %c0_i32 = arith.constant 0 : i32
    %c0_i32_0 = arith.constant 0 : i32
    %c0_i32_1 = arith.constant 0 : i32
    return %arg0, %c0_i32, %c0_i32_0 : i32, i32, i32
  }
}

</mosaic_0001>

<llo_original>
// kernel: squeeze.74
$region0: #{squeeze.74}
  %s0 = inlined_call_operand.vmem [shape: f32[1024], index: 0, kind: input, shape index: {}]
  %s1 = inlined_call_operand.vmem [shape: f32[64,16], index: 1, kind: output, shape index: {}]
  %v2 = vld [vmem:[%s0] sm:$0xff]
  %vm3 = vcmask 130048
  %4 = vst.msk [vmem:[%s1] ss:$8 sm:$0xf] %vm3, %v2
  %5 = vst.msk [vmem:[%s1] ss:$8 sm:$0xf0] %vm3, %v2
  %v6 = vld [vmem:[%s0] sm:$0xff]
  %7 = vrot.lane.b32.xlu0 %v6, 112
  %v8 = vpop.permute.xlu0 %7
  %vm9 = vcmask 130048
  %s10 = scalar_lea.vmem %s1, 1
  %11 = vst.msk [vmem:[%s10] ss:$8 sm:$0xf] %vm9, %v8
  %s12 = scalar_lea.vmem %s1, 1
  %13 = vst.msk [vmem:[%s12] ss:$8 sm:$0xf0] %vm9, %v8
  %v14 = vld [vmem:[%s0] sm:$0xff]
  %15 = vrot.lane.b32.xlu0 %v14, 96
  %v16 = vpop.permute.xlu0 %15
  %vm17 = vcmask 130048
  %s18 = scalar_lea.vmem %s1, 2
  %19 = vst.msk [vmem:[%s18] ss:$8 sm:$0xf] %vm17, %v16
  %s20 = scalar_lea.vmem %s1, 2
  %21 = vst.msk [vmem:[%s20] ss:$8 sm:$0xf0] %vm17, %v16
  %v22 = vld [vmem:[%s0] sm:$0xff]
  %23 = vrot.lane.b32.xlu0 %v22, 80
  %v24 = vpop.permute.xlu0 %23
  %vm25 = vcmask 130048
  %s26 = scalar_lea.vmem %s1, 3
  %27 = vst.msk [vmem:[%s26] ss:$8 sm:$0xf] %vm25, %v24
  %s28 = scalar_lea.vmem %s1, 3
  %29 = vst.msk [vmem:[%s28] ss:$8 sm:$0xf0] %vm25, %v24
  %v30 = vld [vmem:[%s0] sm:$0xff]
  %31 = vrot.lane.b32.xlu0 %v30, 64
  %v32 = vpop.permute.xlu0 %31
  %vm33 = vcmask 130048
  %s34 = scalar_lea.vmem %s1, 4
  %35 = vst.msk [vmem:[%s34] ss:$8 sm:$0xf] %vm33, %v32
  %s36 = scalar_lea.vmem %s1, 4
  %37 = vst.msk [vmem:[%s36] ss:$8 sm:$0xf0] %vm33, %v32
  %v38 = vld [vmem:[%s0] sm:$0xff]
  %39 = vrot.lane.b32.xlu0 %v38, 48
  %v40 = vpop.permute.xlu0 %39
  %vm41 = vcmask 130048
  %s42 = scalar_lea.vmem %s1, 5
  %43 = vst.msk [vmem:[%s42] ss:$8 sm:$0xf] %vm41, %v40
  %s44 = scalar_lea.vmem %s1, 5
  %45 = vst.msk [vmem:[%s44] ss:$8 sm:$0xf0] %vm41, %v40
  %v46 = vld [vmem:[%s0] sm:$0xff]
  %47 = vrot.lane.b32.xlu0 %v46, 32
  %v48 = vpop.permute.xlu0 %47
  %vm49 = vcmask 130048
  %s50 = scalar_lea.vmem %s1, 6
  %51 = vst.msk [vmem:[%s50] ss:$8 sm:$0xf] %vm49, %v48
  %s52 = scalar_lea.vmem %s1, 6
  %53 = vst.msk [vmem:[%s52] ss:$8 sm:$0xf0] %vm49, %v48
  %v54 = vld [vmem:[%s0] sm:$0xff]
  %55 = vrot.lane.b32.xlu0 %v54, 16
  %v56 = vpop.permute.xlu0 %55
  %vm57 = vcmask 130048
  %s58 = scalar_lea.vmem %s1, 7
  %59 = vst.msk [vmem:[%s58] ss:$8 sm:$0xf] %vm57, %v56
  %s60 = scalar_lea.vmem %s1, 7
  %61 = vst.msk [vmem:[%s60] ss:$8 sm:$0xf0] %vm57, %v56

// kernel: generator_forward.10
$region0: #{generator_forward.10}
  #allocation0 [shape = 'u32[]', space=smem, size = 0x4, offset = 0x4, fixed_abs, tag = 'smem constant byte address 0x4 - core index']
  #allocation1 [shape = 'u32[144,128]{1,0:T(1,128)}', space=vmem, size = 0x12000, scoped, tag = 'internal scratch']
  %s0 = inlined_call_operand.vmem [shape: f32[64,32], index: 0, kind: input, shape index: {}]
  %s1 = inlined_call_operand.vmem [shape: f32[64,1], index: 1, kind: input, shape index: {}]
  %s2 = inlined_call_operand.vmem [shape: f32[64,1], index: 2, kind: input, shape index: {}]
  %s3 = inlined_call_operand.vmem [shape: f32[64,32], index: 3, kind: output, shape index: {}]
  %s4 = sld [smem:[#allocation0]]
  $region22: #{generator_forward.10} parent=0
    _
  %s6 = ssub.s32 1, %s4
  %s7 = scalar_select 0, %s6, %s4
  // Predicated region
  $region2: #{generator_forward.10} parent=0 // pred_check
    _
  $region3: #{generator_forward.10} parent=0 // pred_check_branch
    %9 = sbr.rel (0) target = $region5
  $region4: #{generator_forward.10} parent=0 // pred_region
    _
  $region5: #{generator_forward.10} parent=0 // pred_fallthru
    _
  // Predicated region
  $region6: #{generator_forward.10} parent=0 // pred_check
    _
  $region7: #{generator_forward.10} parent=0 // pred_check_branch
    %11 = sbr.rel (0) target = $region9
  $region8: #{generator_forward.10} parent=0 // pred_region
    _
  $region9: #{generator_forward.10} parent=0 // pred_fallthru
    _
  // Predicated region
  $region10: #{generator_forward.10} parent=0 // pred_check
    _
  $region11: #{generator_forward.10} parent=0 // pred_check_branch
    %13 = sbr.rel (0) target = $region13
  $region12: #{generator_forward.10} parent=0 // pred_region
    _
  $region13: #{generator_forward.10} parent=0 // pred_fallthru
    _
  %v14 = vld [vmem:[%s0] sm:$0xff]
  %v15 = vld [vmem:[%s0 + $0x8] sm:$0xff]
  %v16 = vld [vmem:[%s0 + $0x10] sm:$0xff]
  %v17 = vld [vmem:[%s0 + $0x18] sm:$0xff]
  %v18 = vld [vmem:[%s0 + $0x20] sm:$0xff]
  %v19 = vld [vmem:[%s0 + $0x28] sm:$0xff]
  %v20 = vld [vmem:[%s0 + $0x30] sm:$0xff]
  %v21 = vld [vmem:[%s0 + $0x38] sm:$0xff]
  %v22 = vld [vmem:[%s1] sm:$0xff]
  %v23 = vld [vmem:[%s1 + $0x8] sm:$0xff]
  %v24 = vld [vmem:[%s1 + $0x10] sm:$0xff]
  %v25 = vld [vmem:[%s1 + $0x18] sm:$0xff]
  %v26 = vld [vmem:[%s1 + $0x20] sm:$0xff]
  %v27 = vld [vmem:[%s1 + $0x28] sm:$0xff]
  %v28 = vld [vmem:[%s1 + $0x30] sm:$0xff]
  %v29 = vld [vmem:[%s1 + $0x38] sm:$0xff]
  %31 = vset.pattern.permute.xlu0 0
  %32 = vperm.xlu0 %31, %v22
  %v33 = vpop.permute.xlu0 %32
  %36 = vset.pattern.permute.xlu0 0
  %37 = vperm.xlu0 %36, %v23
  %v38 = vpop.permute.xlu0 %37
  %41 = vset.pattern.permute.xlu0 0
  %42 = vperm.xlu0 %41, %v24
  %v43 = vpop.permute.xlu0 %42
  %46 = vset.pattern.permute.xlu0 0
  %47 = vperm.xlu0 %46, %v25
  %v48 = vpop.permute.xlu0 %47
  %51 = vset.pattern.permute.xlu0 0
  %52 = vperm.xlu0 %51, %v26
  %v53 = vpop.permute.xlu0 %52
  %56 = vset.pattern.permute.xlu0 0
  %57 = vperm.xlu0 %56, %v27
  %v58 = vpop.permute.xlu0 %57
  %61 = vset.pattern.permute.xlu0 0
  %62 = vperm.xlu0 %61, %v28
  %v63 = vpop.permute.xlu0 %62
  %66 = vset.pattern.permute.xlu0 0
  %67 = vperm.xlu0 %66, %v29
  %v68 = vpop.permute.xlu0 %67
  %v70 = vmul.f32 %v14, %v33
  %v71 = vmul.f32 %v15, %v38
  %v72 = vmul.f32 %v16, %v43
  %v73 = vmul.f32 %v17, %v48
  %v74 = vmul.f32 %v18, %v53
  %v75 = vmul.f32 %v19, %v58
  %v76 = vmul.f32 %v20, %v63
  %v77 = vmul.f32 %v21, %v68
  %v78 = vld [vmem:[%s2] sm:$0xff]
  %v79 = vld [vmem:[%s2 + $0x8] sm:$0xff]
  %v80 = vld [vmem:[%s2 + $0x10] sm:$0xff]
  %v81 = vld [vmem:[%s2 + $0x18] sm:$0xff]
  %v82 = vld [vmem:[%s2 + $0x20] sm:$0xff]
  %v83 = vld [vmem:[%s2 + $0x28] sm:$0xff]
  %v84 = vld [vmem:[%s2 + $0x30] sm:$0xff]
  %v85 = vld [vmem:[%s2 + $0x38] sm:$0xff]
  %87 = vset.pattern.permute.xlu0 0
  %88 = vperm.xlu0 %87, %v78
  %v89 = vpop.permute.xlu0 %88
  %92 = vset.pattern.permute.xlu0 0
  %93 = vperm.xlu0 %92, %v79
  %v94 = vpop.permute.xlu0 %93
  %97 = vset.pattern.permute.xlu0 0
  %98 = vperm.xlu0 %97, %v80
  %v99 = vpop.permute.xlu0 %98
  %102 = vset.pattern.permute.xlu0 0
  %103 = vperm.xlu0 %102, %v81
  %v104 = vpop.permute.xlu0 %103
  %107 = vset.pattern.permute.xlu0 0
  %108 = vperm.xlu0 %107, %v82
  %v109 = vpop.permute.xlu0 %108
  %112 = vset.pattern.permute.xlu0 0
  %113 = vperm.xlu0 %112, %v83
  %v114 = vpop.permute.xlu0 %113
  %117 = vset.pattern.permute.xlu0 0
  %118 = vperm.xlu0 %117, %v84
  %v119 = vpop.permute.xlu0 %118
  %122 = vset.pattern.permute.xlu0 0
  %123 = vperm.xlu0 %122, %v85
  %v124 = vpop.permute.xlu0 %123
  %v126 = vadd.f32 %v70, %v89
  %v127 = vadd.f32 %v71, %v94
  %v128 = vadd.f32 %v72, %v99
  %v129 = vadd.f32 %v73, %v104
  %v130 = vadd.f32 %v74, %v109
  %v131 = vadd.f32 %v75, %v114
  %v132 = vadd.f32 %v76, %v119
  %v133 = vadd.f32 %v77, %v124
  %v134 = vmax.f32 %v126, 0.0
  %v135 = vmax.f32 %v127, 0.0
  %v136 = vmax.f32 %v128, 0.0
  %v137 = vmax.f32 %v129, 0.0
  %v138 = vmax.f32 %v130, 0.0
  %v139 = vmax.f32 %v131, 0.0
  %v140 = vmax.f32 %v132, 0.0
  %v141 = vmax.f32 %v133, 0.0
  %vm142 = vcmask 261120
  %143 = vst.msk [vmem:[%s3] sm:$0xff] %vm142, %v134
  %144 = vst.msk [vmem:[%s3 + $0x8] sm:$0xff] %vm142, %v135
  %145 = vst.msk [vmem:[%s3 + $0x10] sm:$0xff] %vm142, %v136
  %146 = vst.msk [vmem:[%s3 + $0x18] sm:$0xff] %vm142, %v137
  %147 = vst.msk [vmem:[%s3 + $0x20] sm:$0xff] %vm142, %v138
  %148 = vst.msk [vmem:[%s3 + $0x28] sm:$0xff] %vm142, %v139
  %149 = vst.msk [vmem:[%s3 + $0x30] sm:$0xff] %vm142, %v140
  %150 = vst.msk [vmem:[%s3 + $0x38] sm:$0xff] %vm142, %v141
  // Predicated region
  $region14: #{generator_forward.10} parent=0 // pred_check
    _
  $region15: #{generator_forward.10} parent=0 // pred_check_branch
    %152 = sbr.rel (0) target = $region17
  $region16: #{generator_forward.10} parent=0 // pred_region
    _
  $region17: #{generator_forward.10} parent=0 // pred_fallthru
    _
  // Predicated region
  $region18: #{generator_forward.10} parent=0 // pred_check
    _
  $region19: #{generator_forward.10} parent=0 // pred_check_branch
    %154 = sbr.rel (0) target = $region21
  $region20: #{generator_forward.10} parent=0 // pred_region
    _
  $region21: #{generator_forward.10} parent=0 // pred_fallthru
    _

// kernel: generator_forward.9
$region0: #{generator_forward.9}
  #allocation0 [shape = 'u32[]', space=smem, size = 0x4, offset = 0x4, fixed_abs, tag = 'smem constant byte address 0x4 - core index']
  #allocation1 [shape = 'u32[144,128]{1,0:T(1,128)}', space=vmem, size = 0x12000, scoped, tag = 'internal scratch']
  %s0 = inlined_call_operand.vmem [shape: f32[1,1024,32], index: 0, kind: input, shape index: {}]
  %s1 = inlined_call_operand.vmem [shape: f32[1,32,2], index: 1, kind: input, shape index: {}]
  %s2 = inlined_call_operand.vmem [shape: f32[1,1024,2], index: 2, kind: output, shape index: {0}]
  %s3 = inlined_call_operand.vmem [shape: f32[1,1024,1], index: 3, kind: output, shape index: {1}]
  %s4 = inlined_call_operand.vmem [shape: f32[1,1024,1], index: 4, kind: output, shape index: {2}]
  %5 = xla_tuple %s2, %s3, %s4
  %s6 = sld [smem:[#allocation0]]
  $region34: #{generator_forward.9} parent=0
    _
  %s8 = ssub.s32 1, %s6
  %s9 = scalar_select 0, %s8, %s6
  // Predicated region
  $region2: #{generator_forward.9} parent=0 // pred_check
    _
  $region3: #{generator_forward.9} parent=0 // pred_check_branch
    %11 = sbr.rel (0) target = $region5
  $region4: #{generator_forward.9} parent=0 // pred_region
    _
  $region5: #{generator_forward.9} parent=0 // pred_fallthru
    _
  // Predicated region
  $region6: #{generator_forward.9} parent=0 // pred_check
    _
  $region7: #{generator_forward.9} parent=0 // pred_check_branch
    %13 = sbr.rel (0) target = $region9
  $region8: #{generator_forward.9} parent=0 // pred_region
    _
  $region9: #{generator_forward.9} parent=0 // pred_fallthru
    _
  %v14 = vld [vmem:[%s0] sm:$0xff]
  %v15 = vld [vmem:[%s0 + $0x8] sm:$0xff]
  %v16 = vld [vmem:[%s0 + $0x10] sm:$0xff]
  %v17 = vld [vmem:[%s0 + $0x18] sm:$0xff]
  %v18 = vld [vmem:[%s0 + $0x20] sm:$0xff]
  %v19 = vld [vmem:[%s0 + $0x28] sm:$0xff]
  %v20 = vld [vmem:[%s0 + $0x30] sm:$0xff]
  %v21 = vld [vmem:[%s0 + $0x38] sm:$0xff]
  %v22 = vld [vmem:[%s0 + $0x40] sm:$0xff]
  %v23 = vld [vmem:[%s0 + $0x48] sm:$0xff]
  %v24 = vld [vmem:[%s0 + $0x50] sm:$0xff]
  %v25 = vld [vmem:[%s0 + $0x58] sm:$0xff]
  %v26 = vld [vmem:[%s0 + $0x60] sm:$0xff]
  %v27 = vld [vmem:[%s0 + $0x68] sm:$0xff]
  %v28 = vld [vmem:[%s0 + $0x70] sm:$0xff]
  %v29 = vld [vmem:[%s0 + $0x78] sm:$0xff]
  %v30 = vld [vmem:[%s0 + $0x80] sm:$0xff]
  %v31 = vld [vmem:[%s0 + $0x88] sm:$0xff]
  %v32 = vld [vmem:[%s0 + $0x90] sm:$0xff]
  %v33 = vld [vmem:[%s0 + $0x98] sm:$0xff]
  %v34 = vld [vmem:[%s0 + $0xa0] sm:$0xff]
  %v35 = vld [vmem:[%s0 + $0xa8] sm:$0xff]
  %v36 = vld [vmem:[%s0 + $0xb0] sm:$0xff]
  %v37 = vld [vmem:[%s0 + $0xb8] sm:$0xff]
  %v38 = vld [vmem:[%s0 + $0xc0] sm:$0xff]
  %v39 = vld [vmem:[%s0 + $0xc8] sm:$0xff]
  %v40 = vld [vmem:[%s0 + $0xd0] sm:$0xff]
  %v41 = vld [vmem:[%s0 + $0xd8] sm:$0xff]
  %v42 = vld [vmem:[%s0 + $0xe0] sm:$0xff]
  %v43 = vld [vmem:[%s0 + $0xe8] sm:$0xff]
  %v44 = vld [vmem:[%s0 + $0xf0] sm:$0xff]
  %v45 = vld [vmem:[%s0 + $0xf8] sm:$0xff]
  %v46 = vld [vmem:[%s0 + $0x100] sm:$0xff]
  %v47 = vld [vmem:[%s0 + $0x108] sm:$0xff]
  %v48 = vld [vmem:[%s0 + $0x110] sm:$0xff]
  %v49 = vld [vmem:[%s0 + $0x118] sm:$0xff]
  %v50 = vld [vmem:[%s0 + $0x120] sm:$0xff]
  %v51 = vld [vmem:[%s0 + $0x128] sm:$0xff]
  %v52 = vld [vmem:[%s0 + $0x130] sm:$0xff]
  %v53 = vld [vmem:[%s0 + $0x138] sm:$0xff]
  %v54 = vld [vmem:[%s0 + $0x140] sm:$0xff]
  %v55 = vld [vmem:[%s0 + $0x148] sm:$0xff]
  %v56 = vld [vmem:[%s0 + $0x150] sm:$0xff]
  %v57 = vld [vmem:[%s0 + $0x158] sm:$0xff]
  %v58 = vld [vmem:[%s0 + $0x160] sm:$0xff]
  %v59 = vld [vmem:[%s0 + $0x168] sm:$0xff]
  %v60 = vld [vmem:[%s0 + $0x170] sm:$0xff]
  %v61 = vld [vmem:[%s0 + $0x178] sm:$0xff]
  %v62 = vld [vmem:[%s0 + $0x180] sm:$0xff]
  %v63 = vld [vmem:[%s0 + $0x188] sm:$0xff]
  %v64 = vld [vmem:[%s0 + $0x190] sm:$0xff]
  %v65 = vld [vmem:[%s0 + $0x198] sm:$0xff]
  %v66 = vld [vmem:[%s0 + $0x1a0] sm:$0xff]
  %v67 = vld [vmem:[%s0 + $0x1a8] sm:$0xff]
  %v68 = vld [vmem:[%s0 + $0x1b0] sm:$0xff]
  %v69 = vld [vmem:[%s0 + $0x1b8] sm:$0xff]
  %v70 = vld [vmem:[%s0 + $0x1c0] sm:$0xff]
  %v71 = vld [vmem:[%s0 + $0x1c8] sm:$0xff]
  %v72 = vld [vmem:[%s0 + $0x1d0] sm:$0xff]
  %v73 = vld [vmem:[%s0 + $0x1d8] sm:$0xff]
  %v74 = vld [vmem:[%s0 + $0x1e0] sm:$0xff]
  %v75 = vld [vmem:[%s0 + $0x1e8] sm:$0xff]
  %v76 = vld [vmem:[%s0 + $0x1f0] sm:$0xff]
  %v77 = vld [vmem:[%s0 + $0x1f8] sm:$0xff]
  %v78 = vld [vmem:[%s0 + $0x200] sm:$0xff]
  %v79 = vld [vmem:[%s0 + $0x208] sm:$0xff]
  %v80 = vld [vmem:[%s0 + $0x210] sm:$0xff]
  %v81 = vld [vmem:[%s0 + $0x218] sm:$0xff]
  %v82 = vld [vmem:[%s0 + $0x220] sm:$0xff]
  %v83 = vld [vmem:[%s0 + $0x228] sm:$0xff]
  %v84 = vld [vmem:[%s0 + $0x230] sm:$0xff]
  %v85 = vld [vmem:[%s0 + $0x238] sm:$0xff]
  %v86 = vld [vmem:[%s0 + $0x240] sm:$0xff]
  %v87 = vld [vmem:[%s0 + $0x248] sm:$0xff]
  %v88 = vld [vmem:[%s0 + $0x250] sm:$0xff]
  %v89 = vld [vmem:[%s0 + $0x258] sm:$0xff]
  %v90 = vld [vmem:[%s0 + $0x260] sm:$0xff]
  %v91 = vld [vmem:[%s0 + $0x268] sm:$0xff]
  %v92 = vld [vmem:[%s0 + $0x270] sm:$0xff]
  %v93 = vld [vmem:[%s0 + $0x278] sm:$0xff]
  %v94 = vld [vmem:[%s0 + $0x280] sm:$0xff]
  %v95 = vld [vmem:[%s0 + $0x288] sm:$0xff]
  %v96 = vld [vmem:[%s0 + $0x290] sm:$0xff]
  %v97 = vld [vmem:[%s0 + $0x298] sm:$0xff]
  %v98 = vld [vmem:[%s0 + $0x2a0] sm:$0xff]
  %v99 = vld [vmem:[%s0 + $0x2a8] sm:$0xff]
  %v100 = vld [vmem:[%s0 + $0x2b0] sm:$0xff]
  %v101 = vld [vmem:[%s0 + $0x2b8] sm:$0xff]
  %v102 = vld [vmem:[%s0 + $0x2c0] sm:$0xff]
  %v103 = vld [vmem:[%s0 + $0x2c8] sm:$0xff]
  %v104 = vld [vmem:[%s0 + $0x2d0] sm:$0xff]
  %v105 = vld [vmem:[%s0 + $0x2d8] sm:$0xff]
  %v106 = vld [vmem:[%s0 + $0x2e0] sm:$0xff]
  %v107 = vld [vmem:[%s0 + $0x2e8] sm:$0xff]
  %v108 = vld [vmem:[%s0 + $0x2f0] sm:$0xff]
  %v109 = vld [vmem:[%s0 + $0x2f8] sm:$0xff]
  %v110 = vld [vmem:[%s0 + $0x300] sm:$0xff]
  %v111 = vld [vmem:[%s0 + $0x308] sm:$0xff]
  %v112 = vld [vmem:[%s0 + $0x310] sm:$0xff]
  %v113 = vld [vmem:[%s0 + $0x318] sm:$0xff]
  %v114 = vld [vmem:[%s0 + $0x320] sm:$0xff]
  %v115 = vld [vmem:[%s0 + $0x328] sm:$0xff]
  %v116 = vld [vmem:[%s0 + $0x330] sm:$0xff]
  %v117 = vld [vmem:[%s0 + $0x338] sm:$0xff]
  %v118 = vld [vmem:[%s0 + $0x340] sm:$0xff]
  %v119 = vld [vmem:[%s0 + $0x348] sm:$0xff]
  %v120 = vld [vmem:[%s0 + $0x350] sm:$0xff]
  %v121 = vld [vmem:[%s0 + $0x358] sm:$0xff]
  %v122 = vld [vmem:[%s0 + $0x360] sm:$0xff]
  %v123 = vld [vmem:[%s0 + $0x368] sm:$0xff]
  %v124 = vld [vmem:[%s0 + $0x370] sm:$0xff]
  %v125 = vld [vmem:[%s0 + $0x378] sm:$0xff]
  %v126 = vld [vmem:[%s0 + $0x380] sm:$0xff]
  %v127 = vld [vmem:[%s0 + $0x388] sm:$0xff]
  %v128 = vld [vmem:[%s0 + $0x390] sm:$0xff]
  %v129 = vld [vmem:[%s0 + $0x398] sm:$0xff]
  %v130 = vld [vmem:[%s0 + $0x3a0] sm:$0xff]
  %v131 = vld [vmem:[%s0 + $0x3a8] sm:$0xff]
  %v132 = vld [vmem:[%s0 + $0x3b0] sm:$0xff]
  %v133 = vld [vmem:[%s0 + $0x3b8] sm:$0xff]
  %v134 = vld [vmem:[%s0 + $0x3c0] sm:$0xff]
  %v135 = vld [vmem:[%s0 + $0x3c8] sm:$0xff]
  %v136 = vld [vmem:[%s0 + $0x3d0] sm:$0xff]
  %v137 = vld [vmem:[%s0 + $0x3d8] sm:$0xff]
  %v138 = vld [vmem:[%s0 + $0x3e0] sm:$0xff]
  %v139 = vld [vmem:[%s0 + $0x3e8] sm:$0xff]
  %v140 = vld [vmem:[%s0 + $0x3f0] sm:$0xff]
  %v141 = vld [vmem:[%s0 + $0x3f8] sm:$0xff]
  %v142 = vld [vmem:[%s1] sm:$0xff]
  %v143 = vld [vmem:[%s1 + $0x8] sm:$0xff]
  %v144 = vld [vmem:[%s1 + $0x10] sm:$0xff]
  %v145 = vld [vmem:[%s1 + $0x18] sm:$0xff]
  %vm146 = vcmask 261120
  %v148 = vsel %vm146, %v14, 0
  %v151 = vsel %vm146, %v15, 0
  %v154 = vsel %vm146, %v16, 0
  %v157 = vsel %vm146, %v17, 0
  %v160 = vsel %vm146, %v18, 0
  %v163 = vsel %vm146, %v19, 0
  %v166 = vsel %vm146, %v20, 0
  %v169 = vsel %vm146, %v21, 0
  %v172 = vsel %vm146, %v22, 0
  %v175 = vsel %vm146, %v23, 0
  %v178 = vsel %vm146, %v24, 0
  %v181 = vsel %vm146, %v25, 0
  %v184 = vsel %vm146, %v26, 0
  %v187 = vsel %vm146, %v27, 0
  %v190 = vsel %vm146, %v28, 0
  %v193 = vsel %vm146, %v29, 0
  %v196 = vsel %vm146, %v30, 0
  %v199 = vsel %vm146, %v31, 0
  %v202 = vsel %vm146, %v32, 0
  %v205 = vsel %vm146, %v33, 0
  %v208 = vsel %vm146, %v34, 0
  %v211 = vsel %vm146, %v35, 0
  %v214 = vsel %vm146, %v36, 0
  %v217 = vsel %vm146, %v37, 0
  %v220 = vsel %vm146, %v38, 0
  %v223 = vsel %vm146, %v39, 0
  %v226 = vsel %vm146, %v40, 0
  %v229 = vsel %vm146, %v41, 0
  %v232 = vsel %vm146, %v42, 0
  %v235 = vsel %vm146, %v43, 0
  %v238 = vsel %vm146, %v44, 0
  %v241 = vsel %vm146, %v45, 0
  %v244 = vsel %vm146, %v46, 0
  %v247 = vsel %vm146, %v47, 0
  %v250 = vsel %vm146, %v48, 0
  %v253 = vsel %vm146, %v49, 0
  %v256 = vsel %vm146, %v50, 0
  %v259 = vsel %vm146, %v51, 0
  %v262 = vsel %vm146, %v52, 0
  %v265 = vsel %vm146, %v53, 0
  %v268 = vsel %vm146, %v54, 0
  %v271 = vsel %vm146, %v55, 0
  %v274 = vsel %vm146, %v56, 0
  %v277 = vsel %vm146, %v57, 0
  %v280 = vsel %vm146, %v58, 0
  %v283 = vsel %vm146, %v59, 0
  %v286 = vsel %vm146, %v60, 0
  %v289 = vsel %vm146, %v61, 0
  %v292 = vsel %vm146, %v62, 0
  %v295 = vsel %vm146, %v63, 0
  %v298 = vsel %vm146, %v64, 0
  %v301 = vsel %vm146, %v65, 0
  %v304 = vsel %vm146, %v66, 0
  %v307 = vsel %vm146, %v67, 0
  %v310 = vsel %vm146, %v68, 0
  %v313 = vsel %vm146, %v69, 0
  %v316 = vsel %vm146, %v70, 0
  %v319 = vsel %vm146, %v71, 0
  %v322 = vsel %vm146, %v72, 0
  %v325 = vsel %vm146, %v73, 0
  %v328 = vsel %vm146, %v74, 0
  %v331 = vsel %vm146, %v75, 0
  %v334 = vsel %vm146, %v76, 0
  %v337 = vsel %vm146, %v77, 0
  %v340 = vsel %vm146, %v78, 0
  %v343 = vsel %vm146, %v79, 0
  %v346 = vsel %vm146, %v80, 0
  %v349 = vsel %vm146, %v81, 0
  %v352 = vsel %vm146, %v82, 0
  %v355 = vsel %vm146, %v83, 0
  %v358 = vsel %vm146, %v84, 0
  %v361 = vsel %vm146, %v85, 0
  %v364 = vsel %vm146, %v86, 0
  %v367 = vsel %vm146, %v87, 0
  %v370 = vsel %vm146, %v88, 0
  %v373 = vsel %vm146, %v89, 0
  %v376 = vsel %vm146, %v90, 0
  %v379 = vsel %vm146, %v91, 0
  %v382 = vsel %vm146, %v92, 0
  %v385 = vsel %vm146, %v93, 0
  %v388 = vsel %vm146, %v94, 0
  %v391 = vsel %vm146, %v95, 0
  %v394 = vsel %vm146, %v96, 0
  %v397 = vsel %vm146, %v97, 0
  %v400 = vsel %vm146, %v98, 0
  %v403 = vsel %vm146, %v99, 0
  %v406 = vsel %vm146, %v100, 0
  %v409 = vsel %vm146, %v101, 0
  %v412 = vsel %vm146, %v102, 0
  %v415 = vsel %vm146, %v103, 0
  %v418 = vsel %vm146, %v104, 0
  %v421 = vsel %vm146, %v105, 0
  %v424 = vsel %vm146, %v106, 0
  %v427 = vsel %vm146, %v107, 0
  %v430 = vsel %vm146, %v108, 0
  %v433 = vsel %vm146, %v109, 0
  %v436 = vsel %vm146, %v110, 0
  %v439 = vsel %vm146, %v111, 0
  %v442 = vsel %vm146, %v112, 0
  %v445 = vsel %vm146, %v113, 0
  %v448 = vsel %vm146, %v114, 0
  %v451 = vsel %vm146, %v115, 0
  %v454 = vsel %vm146, %v116, 0
  %v457 = vsel %vm146, %v117, 0
  %v460 = vsel %vm146, %v118, 0
  %v463 = vsel %vm146, %v119, 0
  %v466 = vsel %vm146, %v120, 0
  %v469 = vsel %vm146, %v121, 0
  %v472 = vsel %vm146, %v122, 0
  %v475 = vsel %vm146, %v123, 0
  %v478 = vsel %vm146, %v124, 0
  %v481 = vsel %vm146, %v125, 0
  %v484 = vsel %vm146, %v126, 0
  %v487 = vsel %vm146, %v127, 0
  %v490 = vsel %vm146, %v128, 0
  %v493 = vsel %vm146, %v129, 0
  %v496 = vsel %vm146, %v130, 0
  %v499 = vsel %vm146, %v131, 0
  %v502 = vsel %vm146, %v132, 0
  %v505 = vsel %vm146, %v133, 0
  %v508 = vsel %vm146, %v134, 0
  %v511 = vsel %vm146, %v135, 0
  %v514 = vsel %vm146, %v136, 0
  %v517 = vsel %vm146, %v137, 0
  %v520 = vsel %vm146, %v138, 0
  %v523 = vsel %vm146, %v139, 0
  %v526 = vsel %vm146, %v140, 0
  %v529 = vsel %vm146, %v141, 0
  %531 = vmatprep.subr.mxu0 0.0
  %532 = vmatpush1.msra.mxu0 %v142
  %533 = vmatprep.subr.mxu0 0.0
  %534 = vmatpush1.msra.mxu0 %v143
  %535 = vmatprep.subr.mxu0 0.0
  %536 = vmatpush1.msra.mxu0 %v144
  %537 = vmatprep.subr.mxu0 0.0
  %538 = vmatpush1.msra.mxu0 %v145
  %539 = vmatprep.subr.mxu0 0.0
  %540 = vmatpush1.msra.mxu0 0.0
  %541 = vmatprep.subr.mxu0 0.0
  %542 = vmatpush1.msra.mxu0 0.0
  %543 = vmatprep.subr.mxu0 0.0
  %544 = vmatpush1.msra.mxu0 0.0
  %545 = vmatprep.subr.mxu0 0.0
  %546 = vmatpush1.msra.mxu0 0.0
  %547 = vmatprep.subr.mxu0 0.0
  %548 = vmatpush1.msra.mxu0 0.0
  %549 = vmatprep.subr.mxu0 0.0
  %550 = vmatpush1.msra.mxu0 0.0
  %551 = vmatprep.subr.mxu0 0.0
  %552 = vmatpush1.msra.mxu0 0.0
  %553 = vmatprep.subr.mxu0 0.0
  %554 = vmatpush1.msra.mxu0 0.0
  %555 = vmatprep.subr.mxu0 0.0
  %556 = vmatpush1.msra.mxu0 0.0
  %557 = vmatprep.subr.mxu0 0.0
  %558 = vmatpush1.msra.mxu0 0.0
  %559 = vmatprep.subr.mxu0 0.0
  %560 = vmatpush1.msra.mxu0 0.0
  %561 = vmatprep.subr.mxu0 0.0
  %562 = vmatpush1.msra.mxu0 0.0
  %563 = vmatprep.subr.mxu0 0.0
  %564 = vmatpush1.msra.mxu0 0.0
  %565 = vmatprep.subr.mxu0 0.0
  %566 = vmatpush1.msra.mxu0 0.0
  %567 = vmatprep.subr.mxu0 0.0
  %568 = vmatpush1.msra.mxu0 0.0
  %569 = vmatprep.subr.mxu0 0.0
  %570 = vmatpush1.msra.mxu0 0.0
  %571 = vmatprep.subr.mxu0 0.0
  %572 = vmatpush1.msra.mxu0 0.0
  %573 = vmatprep.subr.mxu0 0.0
  %574 = vmatpush1.msra.mxu0 0.0
  %575 = vmatprep.subr.mxu0 0.0
  %576 = vmatpush1.msra.mxu0 0.0
  %577 = vmatprep.subr.mxu0 0.0
  %578 = vmatpush1.msra.mxu0 0.0
  %579 = vmatprep.subr.mxu0 0.0
  %580 = vmatpush1.msra.mxu0 0.0
  %581 = vmatprep.subr.mxu0 0.0
  %582 = vmatpush1.msra.mxu0 0.0
  %583 = vmatprep.subr.mxu0 0.0
  %584 = vmatpush1.msra.mxu0 0.0
  %585 = vmatprep.subr.mxu0 0.0
  %586 = vmatpush1.msra.mxu0 0.0
  %587 = vmatprep.subr.mxu0 0.0
  %588 = vmatpush1.msra.mxu0 0.0
  %589 = vmatprep.subr.mxu0 0.0
  %590 = vmatpush1.msra.mxu0 0.0
  %591 = vmatprep.subr.mxu0 0.0
  %592 = vmatpush1.msra.mxu0 0.0
  %593 = vmatprep.subr.mxu0 0.0
  %594 = vmatpush1.msra.mxu0 0.0
  %595 = vmatprep.mubr.f32.mxu0 0.0
  %596 = vmatmul.mubr.f32.gmra.mrb[0].mxu0 %v148
  %v597 = vpop.f32.mrb[0].mxu0
  %v598 = vadd.f32 0.0, %v597
  %v599 = vpop.f32.mrb[0].mxu0
  %600 = vmatprep.mubr.f32.mxu0 0.0
  %601 = vmatmul.mubr.f32.gmra.mrb[0].mxu0 %v151
  %v602 = vpop.f32.mrb[0].mxu0
  %v603 = vadd.f32 0.0, %v602
  %v604 = vpop.f32.mrb[0].mxu0
  %605 = vmatprep.mubr.f32.mxu0 0.0
  %606 = vmatmul.mubr.f32.gmra.mrb[0].mxu0 %v154
  %v607 = vpop.f32.mrb[0].mxu0
  %v608 = vadd.f32 0.0, %v607
  %v609 = vpop.f32.mrb[0].mxu0
  %610 = vmatprep.mubr.f32.mxu0 0.0
  %611 = vmatmul.mubr.f32.gmra.mrb[0].mxu0 %v157
  %v612 = vpop.f32.mrb[0].mxu0
  %v613 = vadd.f32 0.0, %v612
  %v614 = vpop.f32.mrb[0].mxu0
  %615 = vmatprep.mubr.f32.mxu0 0.0
  %616 = vmatmul.mubr.f32.gmra.mrb[0].mxu0 %v160
  %v617 = vpop.f32.mrb[0].mxu0
  %v618 = vadd.f32 0.0, %v617
  %v619 = vpop.f32.mrb[0].mxu0
  %620 = vmatprep.mubr.f32.mxu0 0.0
  %621 = vmatmul.mubr.f32.gmra.mrb[0].mxu0 %v163
  %v622 = vpop.f32.mrb[0].mxu0
  %v623 = vadd.f32 0.0, %v622
  %v624 = vpop.f32.mrb[0].mxu0
  %625 = vmatprep.mubr.f32.mxu0 0.0
  %626 = vmatmul.mubr.f32.gmra.mrb[0].mxu0 %v166
  %v627 = vpop.f32.mrb[0].mxu0
  %v628 = vadd.f32 0.0, %v627
  %v629 = vpop.f32.mrb[0].mxu0
  %630 = vmatprep.mubr.f32.mxu0 0.0
  %631 = vmatmul.mubr.f32.gmra.mrb[0].mxu0 %v169
  %v632 = vpop.f32.mrb[0].mxu0
  %v633 = vadd.f32 0.0, %v632
  %v634 = vpop.f32.mrb[0].mxu0
  %635 = vmatprep.mubr.f32.mxu0 0.0
  %636 = vmatmul.mubr.f32.gmra.mrb[0].mxu0 %v172
  %v637 = vpop.f32.mrb[0].mxu0
  %v638 = vadd.f32 0.0, %v637
  %v639 = vpop.f32.mrb[0].mxu0
  %640 = vmatprep.mubr.f32.mxu0 0.0
  %641 = vmatmul.mubr.f32.gmra.mrb[0].mxu0 %v175
  %v642 = vpop.f32.mrb[0].mxu0
  %v643 = vadd.f32 0.0, %v642
  %v644 = vpop.f32.mrb[0].mxu0
  %645 = vmatprep.mubr.f32.mxu0 0.0
  %646 = vmatmul.mubr.f32.gmra.mrb[0].mxu0 %v178
  %v647 = vpop.f32.mrb[0].mxu0
  %v648 = vadd.f32 0.0, %v647
  %v649 = vpop.f32.mrb[0].mxu0
  %650 = vmatprep.mubr.f32.mxu0 0.0
  %651 = vmatmul.mubr.f32.gmra.mrb[0].mxu0 %v181
  %v652 = vpop.f32.mrb[0].mxu0
  %v653 = vadd.f32 0.0, %v652
  %v654 = vpop.f32.mrb[0].mxu0
  %655 = vmatprep.mubr.f32.mxu0 0.0
  %656 = vmatmul.mubr.f32.gmra.mrb[0].mxu0 %v184
  %v657 = vpop.f32.mrb[0].mxu0
  %v658 = vadd.f32 0.0, %v657
  %v659 = vpop.f32.mrb[0].mxu0
  %660 = vmatprep.mubr.f32.mxu0 0.0
  %661 = vmatmul.mubr.f32.gmra.mrb[0].mxu0 %v187
  %v662 = vpop.f32.mrb[0].mxu0
  %v663 = vadd.f32 0.0, %v662
  %v664 = vpop.f32.mrb[0].mxu0
  %665 = vmatprep.mubr.f32.mxu0 0.0
  %666 = vmatmul.mubr.f32.gmra.mrb[0].mxu0 %v190
  %v667 = vpop.f32.mrb[0].mxu0
  %v668 = vadd.f32 0.0, %v667
  %v669 = vpop.f32.mrb[0].mxu0
  %670 = vmatprep.mubr.f32.mxu0 0.0
  %671 = vmatmul.mubr.f32.gmra.mrb[0].mxu0 %v193
  %v672 = vpop.f32.mrb[0].mxu0
  %v673 = vadd.f32 0.0, %v672
  %v674 = vpop.f32.mrb[0].mxu0
  %675 = vmatprep.mubr.f32.mxu0 0.0
  %676 = vmatmul.mubr.f32.gmra.mrb[0].mxu0 %v196
  %v677 = vpop.f32.mrb[0].mxu0
  %v678 = vadd.f32 0.0, %v677
  %v679 = vpop.f32.mrb[0].mxu0
  %680 = vmatprep.mubr.f32.mxu0 0.0
  %681 = vmatmul.mubr.f32.gmra.mrb[0].mxu0 %v199
  %v682 = vpop.f32.mrb[0].mxu0
  %v683 = vadd.f32 0.0, %v682
  %v684 = vpop.f32.mrb[0].mxu0
  %685 = vmatprep.mubr.f32.mxu0 0.0
  %686 = vmatmul.mubr.f32.gmra.mrb[0].mxu0 %v202
  %v687 = vpop.f32.mrb[0].mxu0
  %v688 = vadd.f32 0.0, %v687
  %v689 = vpop.f32.mrb[0].mxu0
  %690 = vmatprep.mubr.f32.mxu0 0.0
  %691 = vmatmul.mubr.f32.gmra.mrb[0].mxu0 %v205
  %v692 = vpop.f32.mrb[0].mxu0
  %v693 = vadd.f32 0.0, %v692
  %v694 = vpop.f32.mrb[0].mxu0
  %695 = vmatprep.mubr.f32.mxu0 0.0
  %696 = vmatmul.mubr.f32.gmra.mrb[0].mxu0 %v208
  %v697 = vpop.f32.mrb[0].mxu0
  %v698 = vadd.f32 0.0, %v697
  %v699 = vpop.f32.mrb[0].mxu0
  %700 = vmatprep.mubr.f32.mxu0 0.0
  %701 = vmatmul.mubr.f32.gmra.mrb[0].mxu0 %v211
  %v702 = vpop.f32.mrb[0].mxu0
  %v703 = vadd.f32 0.0, %v702
  %v704 = vpop.f32.mrb[0].mxu0
  %705 = vmatprep.mubr.f32.mxu0 0.0
  %706 = vmatmul.mubr.f32.gmra.mrb[0].mxu0 %v214
  %v707 = vpop.f32.mrb[0].mxu0
  %v708 = vadd.f32 0.0, %v707
  %v709 = vpop.f32.mrb[0].mxu0
  %710 = vmatprep.mubr.f32.mxu0 0.0
  %711 = vmatmul.mubr.f32.gmra.mrb[0].mxu0 %v217
  %v712 = vpop.f32.mrb[0].mxu0
  %v713 = vadd.f32 0.0, %v712
  %v714 = vpop.f32.mrb[0].mxu0
  %715 = vmatprep.mubr.f32.mxu0 0.0
  %716 = vmatmul.mubr.f32.gmra.mrb[0].mxu0 %v220
  %v717 = vpop.f32.mrb[0].mxu0
  %v718 = vadd.f32 0.0, %v717
  %v719 = vpop.f32.mrb[0].mxu0
  %720 = vmatprep.mubr.f32.mxu0 0.0
  %721 = vmatmul.mubr.f32.gmra.mrb[0].mxu0 %v223
  %v722 = vpop.f32.mrb[0].mxu0
  %v723 = vadd.f32 0.0, %v722
  %v724 = vpop.f32.mrb[0].mxu0
  %725 = vmatprep.mubr.f32.mxu0 0.0
  %726 = vmatmul.mubr.f32.gmra.mrb[0].mxu0 %v226
  %v727 = vpop.f32.mrb[0].mxu0
  %v728 = vadd.f32 0.0, %v727
  %v729 = vpop.f32.mrb[0].mxu0
  %730 = vmatprep.mubr.f32.mxu0 0.0
  %731 = vmatmul.mubr.f32.gmra.mrb[0].mxu0 %v229
  %v732 = vpop.f32.mrb[0].mxu0
  %v733 = vadd.f32 0.0, %v732
  %v734 = vpop.f32.mrb[0].mxu0
  %735 = vmatprep.mubr.f32.mxu0 0.0
  %736 = vmatmul.mubr.f32.gmra.mrb[0].mxu0 %v232
  %v737 = vpop.f32.mrb[0].mxu0
  %v738 = vadd.f32 0.0, %v737
  %v739 = vpop.f32.mrb[0].mxu0
  %740 = vmatprep.mubr.f32.mxu0 0.0
  %741 = vmatmul.mubr.f32.gmra.mrb[0].mxu0 %v235
  %v742 = vpop.f32.mrb[0].mxu0
  %v743 = vadd.f32 0.0, %v742
  %v744 = vpop.f32.mrb[0].mxu0
  %745 = vmatprep.mubr.f32.mxu0 0.0
  %746 = vmatmul.mubr.f32.gmra.mrb[0].mxu0 %v238
  %v747 = vpop.f32.mrb[0].mxu0
  %v748 = vadd.f32 0.0, %v747
  %v749 = vpop.f32.mrb[0].mxu0
  %750 = vmatprep.mubr.f32.mxu0 0.0
  %751 = vmatmul.mubr.f32.gmra.mrb[0].mxu0 %v241
  %v752 = vpop.f32.mrb[0].mxu0
  %v753 = vadd.f32 0.0, %v752
  %v754 = vpop.f32.mrb[0].mxu0
  %755 = vmatprep.mubr.f32.mxu0 0.0
  %756 = vmatmul.mubr.f32.gmra.mrb[0].mxu0 %v244
  %v757 = vpop.f32.mrb[0].mxu0
  %v758 = vadd.f32 0.0, %v757
  %v759 = vpop.f32.mrb[0].mxu0
  %760 = vmatprep.mubr.f32.mxu0 0.0
  %761 = vmatmul.mubr.f32.gmra.mrb[0].mxu0 %v247
  %v762 = vpop.f32.mrb[0].mxu0
  %v763 = vadd.f32 0.0, %v762
  %v764 = vpop.f32.mrb[0].mxu0
  %765 = vmatprep.mubr.f32.mxu0 0.0
  %766 = vmatmul.mubr.f32.gmra.mrb[0].mxu0 %v250
  %v767 = vpop.f32.mrb[0].mxu0
  %v768 = vadd.f32 0.0, %v767
  %v769 = vpop.f32.mrb[0].mxu0
  %770 = vmatprep.mubr.f32.mxu0 0.0
  %771 = vmatmul.mubr.f32.gmra.mrb[0].mxu0 %v253
  %v772 = vpop.f32.mrb[0].mxu0
  %v773 = vadd.f32 0.0, %v772
  %v774 = vpop.f32.mrb[0].mxu0
  %775 = vmatprep.mubr.f32.mxu0 0.0
  %776 = vmatmul.mubr.f32.gmra.mrb[0].mxu0 %v256
  %v777 = vpop.f32.mrb[0].mxu0
  %v778 = vadd.f32 0.0, %v777
  %v779 = vpop.f32.mrb[0].mxu0
  %780 = vmatprep.mubr.f32.mxu0 0.0
  %781 = vmatmul.mubr.f32.gmra.mrb[0].mxu0 %v259
  %v782 = vpop.f32.mrb[0].mxu0
  %v783 = vadd.f32 0.0, %v782
  %v784 = vpop.f32.mrb[0].mxu0
  %785 = vmatprep.mubr.f32.mxu0 0.0
  %786 = vmatmul.mubr.f32.gmra.mrb[0].mxu0 %v262
  %v787 = vpop.f32.mrb[0].mxu0
  %v788 = vadd.f32 0.0, %v787
  %v789 = vpop.f32.mrb[0].mxu0
  %790 = vmatprep.mubr.f32.mxu0 0.0
  %791 = vmatmul.mubr.f32.gmra.mrb[0].mxu0 %v265
  %v792 = vpop.f32.mrb[0].mxu0
  %v793 = vadd.f32 0.0, %v792
  %v794 = vpop.f32.mrb[0].mxu0
  %795 = vmatprep.mubr.f32.mxu0 0.0
  %796 = vmatmul.mubr.f32.gmra.mrb[0].mxu0 %v268
  %v797 = vpop.f32.mrb[0].mxu0
  %v798 = vadd.f32 0.0, %v797
  %v799 = vpop.f32.mrb[0].mxu0
  %800 = vmatprep.mubr.f32.mxu0 0.0
  %801 = vmatmul.mubr.f32.gmra.mrb[0].mxu0 %v271
  %v802 = vpop.f32.mrb[0].mxu0
  %v803 = vadd.f32 0.0, %v802
  %v804 = vpop.f32.mrb[0].mxu0
  %805 = vmatprep.mubr.f32.mxu0 0.0
  %806 = vmatmul.mubr.f32.gmra.mrb[0].mxu0 %v274
  %v807 = vpop.f32.mrb[0].mxu0
  %v808 = vadd.f32 0.0, %v807
  %v809 = vpop.f32.mrb[0].mxu0
  %810 = vmatprep.mubr.f32.mxu0 0.0
  %811 = vmatmul.mubr.f32.gmra.mrb[0].mxu0 %v277
  %v812 = vpop.f32.mrb[0].mxu0
  %v813 = vadd.f32 0.0, %v812
  %v814 = vpop.f32.mrb[0].mxu0
  %815 = vmatprep.mubr.f32.mxu0 0.0
  %816 = vmatmul.mubr.f32.gmra.mrb[0].mxu0 %v280
  %v817 = vpop.f32.mrb[0].mxu0
  %v818 = vadd.f32 0.0, %v817
  %v819 = vpop.f32.mrb[0].mxu0
  %820 = vmatprep.mubr.f32.mxu0 0.0
  %821 = vmatmul.mubr.f32.gmra.mrb[0].mxu0 %v283
  %v822 = vpop.f32.mrb[0].mxu0
  %v823 = vadd.f32 0.0, %v822
  %v824 = vpop.f32.mrb[0].mxu0
  %825 = vmatprep.mubr.f32.mxu0 0.0
  %826 = vmatmul.mubr.f32.gmra.mrb[0].mxu0 %v286
  %v827 = vpop.f32.mrb[0].mxu0
  %v828 = vadd.f32 0.0, %v827
  %v829 = vpop.f32.mrb[0].mxu0
  %830 = vmatprep.mubr.f32.mxu0 0.0
  %831 = vmatmul.mubr.f32.gmra.mrb[0].mxu0 %v289
  %v832 = vpop.f32.mrb[0].mxu0
  %v833 = vadd.f32 0.0, %v832
  %v834 = vpop.f32.mrb[0].mxu0
  %835 = vmatprep.mubr.f32.mxu0 0.0
  %836 = vmatmul.mubr.f32.gmra.mrb[0].mxu0 %v292
  %v837 = vpop.f32.mrb[0].mxu0
  %v838 = vadd.f32 0.0, %v837
  %v839 = vpop.f32.mrb[0].mxu0
  %840 = vmatprep.mubr.f32.mxu0 0.0
  %841 = vmatmul.mubr.f32.gmra.mrb[0].mxu0 %v295
  %v842 = vpop.f32.mrb[0].mxu0
  %v843 = vadd.f32 0.0, %v842
  %v844 = vpop.f32.mrb[0].mxu0
  %845 = vmatprep.mubr.f32.mxu0 0.0
  %846 = vmatmul.mubr.f32.gmra.mrb[0].mxu0 %v298
  %v847 = vpop.f32.mrb[0].mxu0
  %v848 = vadd.f32 0.0, %v847
  %v849 = vpop.f32.mrb[0].mxu0
  %850 = vmatprep.mubr.f32.mxu0 0.0
  %851 = vmatmul.mubr.f32.gmra.mrb[0].mxu0 %v301
  %v852 = vpop.f32.mrb[0].mxu0
  %v853 = vadd.f32 0.0, %v852
  %v854 = vpop.f32.mrb[0].mxu0
  %855 = vmatprep.mubr.f32.mxu0 0.0
  %856 = vmatmul.mubr.f32.gmra.mrb[0].mxu0 %v304
  %v857 = vpop.f32.mrb[0].mxu0
  %v858 = vadd.f32 0.0, %v857
  %v859 = vpop.f32.mrb[0].mxu0
  %860 = vmatprep.mubr.f32.mxu0 0.0
  %861 = vmatmul.mubr.f32.gmra.mrb[0].mxu0 %v307
  %v862 = vpop.f32.mrb[0].mxu0
  %v863 = vadd.f32 0.0, %v862
  %v864 = vpop.f32.mrb[0].mxu0
  %865 = vmatprep.mubr.f32.mxu0 0.0
  %866 = vmatmul.mubr.f32.gmra.mrb[0].mxu0 %v310
  %v867 = vpop.f32.mrb[0].mxu0
  %v868 = vadd.f32 0.0, %v867
  %v869 = vpop.f32.mrb[0].mxu0
  %870 = vmatprep.mubr.f32.mxu0 0.0
  %871 = vmatmul.mubr.f32.gmra.mrb[0].mxu0 %v313
  %v872 = vpop.f32.mrb[0].mxu0
  %v873 = vadd.f32 0.0, %v872
  %v874 = vpop.f32.mrb[0].mxu0
  %875 = vmatprep.mubr.f32.mxu0 0.0
  %876 = vmatmul.mubr.f32.gmra.mrb[0].mxu0 %v316
  %v877 = vpop.f32.mrb[0].mxu0
  %v878 = vadd.f32 0.0, %v877
  %v879 = vpop.f32.mrb[0].mxu0
  %880 = vmatprep.mubr.f32.mxu0 0.0
  %881 = vmatmul.mubr.f32.gmra.mrb[0].mxu0 %v319
  %v882 = vpop.f32.mrb[0].mxu0
  %v883 = vadd.f32 0.0, %v882
  %v884 = vpop.f32.mrb[0].mxu0
  %885 = vmatprep.mubr.f32.mxu0 0.0
  %886 = vmatmul.mubr.f32.gmra.mrb[0].mxu0 %v322
  %v887 = vpop.f32.mrb[0].mxu0
  %v888 = vadd.f32 0.0, %v887
  %v889 = vpop.f32.mrb[0].mxu0
  %890 = vmatprep.mubr.f32.mxu0 0.0
  %891 = vmatmul.mubr.f32.gmra.mrb[0].mxu0 %v325
  %v892 = vpop.f32.mrb[0].mxu0
  %v893 = vadd.f32 0.0, %v892
  %v894 = vpop.f32.mrb[0].mxu0
  %895 = vmatprep.mubr.f32.mxu0 0.0
  %896 = vmatmul.mubr.f32.gmra.mrb[0].mxu0 %v328
  %v897 = vpop.f32.mrb[0].mxu0
  %v898 = vadd.f32 0.0, %v897
  %v899 = vpop.f32.mrb[0].mxu0
  %900 = vmatprep.mubr.f32.mxu0 0.0
  %901 = vmatmul.mubr.f32.gmra.mrb[0].mxu0 %v331
  %v902 = vpop.f32.mrb[0].mxu0
  %v903 = vadd.f32 0.0, %v902
  %v904 = vpop.f32.mrb[0].mxu0
  %905 = vmatprep.mubr.f32.mxu0 0.0
  %906 = vmatmul.mubr.f32.gmra.mrb[0].mxu0 %v334
  %v907 = vpop.f32.mrb[0].mxu0
  %v908 = vadd.f32 0.0, %v907
  %v909 = vpop.f32.mrb[0].mxu0
  %910 = vmatprep.mubr.f32.mxu0 0.0
  %911 = vmatmul.mubr.f32.gmra.mrb[0].mxu0 %v337
  %v912 = vpop.f32.mrb[0].mxu0
  %v913 = vadd.f32 0.0, %v912
  %v914 = vpop.f32.mrb[0].mxu0
  %915 = vmatprep.mubr.f32.mxu0 0.0
  %916 = vmatmul.mubr.f32.gmra.mrb[0].mxu0 %v340
  %v917 = vpop.f32.mrb[0].mxu0
  %v918 = vadd.f32 0.0, %v917
  %v919 = vpop.f32.mrb[0].mxu0
  %920 = vmatprep.mubr.f32.mxu0 0.0
  %921 = vmatmul.mubr.f32.gmra.mrb[0].mxu0 %v343
  %v922 = vpop.f32.mrb[0].mxu0
  %v923 = vadd.f32 0.0, %v922
  %v924 = vpop.f32.mrb[0].mxu0
  %925 = vmatprep.mubr.f32.mxu0 0.0
  %926 = vmatmul.mubr.f32.gmra.mrb[0].mxu0 %v346
  %v927 = vpop.f32.mrb[0].mxu0
  %v928 = vadd.f32 0.0, %v927
  %v929 = vpop.f32.mrb[0].mxu0
  %930 = vmatprep.mubr.f32.mxu0 0.0
  %931 = vmatmul.mubr.f32.gmra.mrb[0].mxu0 %v349
  %v932 = vpop.f32.mrb[0].mxu0
  %v933 = vadd.f32 0.0, %v932
  %v934 = vpop.f32.mrb[0].mxu0
  %935 = vmatprep.mubr.f32.mxu0 0.0
  %936 = vmatmul.mubr.f32.gmra.mrb[0].mxu0 %v352
  %v937 = vpop.f32.mrb[0].mxu0
  %v938 = vadd.f32 0.0, %v937
  %v939 = vpop.f32.mrb[0].mxu0
  %940 = vmatprep.mubr.f32.mxu0 0.0
  %941 = vmatmul.mubr.f32.gmra.mrb[0].mxu0 %v355
  %v942 = vpop.f32.mrb[0].mxu0
  %v943 = vadd.f32 0.0, %v942
  %v944 = vpop.f32.mrb[0].mxu0
  %945 = vmatprep.mubr.f32.mxu0 0.0
  %946 = vmatmul.mubr.f32.gmra.mrb[0].mxu0 %v358
  %v947 = vpop.f32.mrb[0].mxu0
  %v948 = vadd.f32 0.0, %v947
  %v949 = vpop.f32.mrb[0].mxu0
  %950 = vmatprep.mubr.f32.mxu0 0.0
  %951 = vmatmul.mubr.f32.gmra.mrb[0].mxu0 %v361
  %v952 = vpop.f32.mrb[0].mxu0
  %v953 = vadd.f32 0.0, %v952
  %v954 = vpop.f32.mrb[0].mxu0
  %955 = vmatprep.mubr.f32.mxu0 0.0
  %956 = vmatmul.mubr.f32.gmra.mrb[0].mxu0 %v364
  %v957 = vpop.f32.mrb[0].mxu0
  %v958 = vadd.f32 0.0, %v957
  %v959 = vpop.f32.mrb[0].mxu0
  %960 = vmatprep.mubr.f32.mxu0 0.0
  %961 = vmatmul.mubr.f32.gmra.mrb[0].mxu0 %v367
  %v962 = vpop.f32.mrb[0].mxu0
  %v963 = vadd.f32 0.0, %v962
  %v964 = vpop.f32.mrb[0].mxu0
  %965 = vmatprep.mubr.f32.mxu0 0.0
  %966 = vmatmul.mubr.f32.gmra.mrb[0].mxu0 %v370
  %v967 = vpop.f32.mrb[0].mxu0
  %v968 = vadd.f32 0.0, %v967
  %v969 = vpop.f32.mrb[0].mxu0
  %970 = vmatprep.mubr.f32.mxu0 0.0
  %971 = vmatmul.mubr.f32.gmra.mrb[0].mxu0 %v373
  %v972 = vpop.f32.mrb[0].mxu0
  %v973 = vadd.f32 0.0, %v972
  %v974 = vpop.f32.mrb[0].mxu0
  %975 = vmatprep.mubr.f32.mxu0 0.0
  %976 = vmatmul.mubr.f32.gmra.mrb[0].mxu0 %v376
  %v977 = vpop.f32.mrb[0].mxu0
  %v978 = vadd.f32 0.0, %v977
  %v979 = vpop.f32.mrb[0].mxu0
  %980 = vmatprep.mubr.f32.mxu0 0.0
  %981 = vmatmul.mubr.f32.gmra.mrb[0].mxu0 %v379
  %v982 = vpop.f32.mrb[0].mxu0
  %v983 = vadd.f32 0.0, %v982
  %v984 = vpop.f32.mrb[0].mxu0
  %985 = vmatprep.mubr.f32.mxu0 0.0
  %986 = vmatmul.mubr.f32.gmra.mrb[0].mxu0 %v382
  %v987 = vpop.f32.mrb[0].mxu0
  %v988 = vadd.f32 0.0, %v987
  %v989 = vpop.f32.mrb[0].mxu0
  %990 = vmatprep.mubr.f32.mxu0 0.0
  %991 = vmatmul.mubr.f32.gmra.mrb[0].mxu0 %v385
  %v992 = vpop.f32.mrb[0].mxu0
  %v993 = vadd.f32 0.0, %v992
  %v994 = vpop.f32.mrb[0].mxu0
  %995 = vmatprep.mubr.f32.mxu0 0.0
  %996 = vmatmul.mubr.f32.gmra.mrb[0].mxu0 %v388
  %v997 = vpop.f32.mrb[0].mxu0
  %v998 = vadd.f32 0.0, %v997
  %v999 = vpop.f32.mrb[0].mxu0
  %1000 = vmatprep.mubr.f32.mxu0 0.0
  %1001 = vmatmul.mubr.f32.gmra.mrb[0].mxu0 %v391
  %v1002 = vpop.f32.mrb[0].mxu0
  %v1003 = vadd.f32 0.0, %v1002
  %v1004 = vpop.f32.mrb[0].mxu0
  %1005 = vmatprep.mubr.f32.mxu0 0.0
  %1006 = vmatmul.mubr.f32.gmra.mrb[0].mxu0 %v394
  %v1007 = vpop.f32.mrb[0].mxu0
  %v1008 = vadd.f32 0.0, %v1007
  %v1009 = vpop.f32.mrb[0].mxu0
  %1010 = vmatprep.mubr.f32.mxu0 0.0
  %1011 = vmatmul.mubr.f32.gmra.mrb[0].mxu0 %v397
  %v1012 = vpop.f32.mrb[0].mxu0
  %v1013 = vadd.f32 0.0, %v1012
  %v1014 = vpop.f32.mrb[0].mxu0
  %1015 = vmatprep.mubr.f32.mxu0 0.0
  %1016 = vmatmul.mubr.f32.gmra.mrb[0].mxu0 %v400
  %v1017 = vpop.f32.mrb[0].mxu0
  %v1018 = vadd.f32 0.0, %v1017
  %v1019 = vpop.f32.mrb[0].mxu0
  %1020 = vmatprep.mubr.f32.mxu0 0.0
  %1021 = vmatmul.mubr.f32.gmra.mrb[0].mxu0 %v403
  %v1022 = vpop.f32.mrb[0].mxu0
  %v1023 = vadd.f32 0.0, %v1022
  %v1024 = vpop.f32.mrb[0].mxu0
  %1025 = vmatprep.mubr.f32.mxu0 0.0
  %1026 = vmatmul.mubr.f32.gmra.mrb[0].mxu0 %v406
  %v1027 = vpop.f32.mrb[0].mxu0
  %v1028 = vadd.f32 0.0, %v1027
  %v1029 = vpop.f32.mrb[0].mxu0
  %1030 = vmatprep.mubr.f32.mxu0 0.0
  %1031 = vmatmul.mubr.f32.gmra.mrb[0].mxu0 %v409
  %v1032 = vpop.f32.mrb[0].mxu0
  %v1033 = vadd.f32 0.0, %v1032
  %v1034 = vpop.f32.mrb[0].mxu0
  %1035 = vmatprep.mubr.f32.mxu0 0.0
  %1036 = vmatmul.mubr.f32.gmra.mrb[0].mxu0 %v412
  %v1037 = vpop.f32.mrb[0].mxu0
  %v1038 = vadd.f32 0.0, %v1037
  %v1039 = vpop.f32.mrb[0].mxu0
  %1040 = vmatprep.mubr.f32.mxu0 0.0
  %1041 = vmatmul.mubr.f32.gmra.mrb[0].mxu0 %v415
  %v1042 = vpop.f32.mrb[0].mxu0
  %v1043 = vadd.f32 0.0, %v1042
  %v1044 = vpop.f32.mrb[0].mxu0
  %1045 = vmatprep.mubr.f32.mxu0 0.0
  %1046 = vmatmul.mubr.f32.gmra.mrb[0].mxu0 %v418
  %v1047 = vpop.f32.mrb[0].mxu0
  %v1048 = vadd.f32 0.0, %v1047
  %v1049 = vpop.f32.mrb[0].mxu0
  %1050 = vmatprep.mubr.f32.mxu0 0.0
  %1051 = vmatmul.mubr.f32.gmra.mrb[0].mxu0 %v421
  %v1052 = vpop.f32.mrb[0].mxu0
  %v1053 = vadd.f32 0.0, %v1052
  %v1054 = vpop.f32.mrb[0].mxu0
  %1055 = vmatprep.mubr.f32.mxu0 0.0
  %1056 = vmatmul.mubr.f32.gmra.mrb[0].mxu0 %v424
  %v1057 = vpop.f32.mrb[0].mxu0
  %v1058 = vadd.f32 0.0, %v1057
  %v1059 = vpop.f32.mrb[0].mxu0
  %1060 = vmatprep.mubr.f32.mxu0 0.0
  %1061 = vmatmul.mubr.f32.gmra.mrb[0].mxu0 %v427
  %v1062 = vpop.f32.mrb[0].mxu0
  %v1063 = vadd.f32 0.0, %v1062
  %v1064 = vpop.f32.mrb[0].mxu0
  %1065 = vmatprep.mubr.f32.mxu0 0.0
  %1066 = vmatmul.mubr.f32.gmra.mrb[0].mxu0 %v430
  %v1067 = vpop.f32.mrb[0].mxu0
  %v1068 = vadd.f32 0.0, %v1067
  %v1069 = vpop.f32.mrb[0].mxu0
  %1070 = vmatprep.mubr.f32.mxu0 0.0
  %1071 = vmatmul.mubr.f32.gmra.mrb[0].mxu0 %v433
  %v1072 = vpop.f32.mrb[0].mxu0
  %v1073 = vadd.f32 0.0, %v1072
  %v1074 = vpop.f32.mrb[0].mxu0
  %1075 = vmatprep.mubr.f32.mxu0 0.0
  %1076 = vmatmul.mubr.f32.gmra.mrb[0].mxu0 %v436
  %v1077 = vpop.f32.mrb[0].mxu0
  %v1078 = vadd.f32 0.0, %v1077
  %v1079 = vpop.f32.mrb[0].mxu0
  %1080 = vmatprep.mubr.f32.mxu0 0.0
  %1081 = vmatmul.mubr.f32.gmra.mrb[0].mxu0 %v439
  %v1082 = vpop.f32.mrb[0].mxu0
  %v1083 = vadd.f32 0.0, %v1082
  %v1084 = vpop.f32.mrb[0].mxu0
  %1085 = vmatprep.mubr.f32.mxu0 0.0
  %1086 = vmatmul.mubr.f32.gmra.mrb[0].mxu0 %v442
  %v1087 = vpop.f32.mrb[0].mxu0
  %v1088 = vadd.f32 0.0, %v1087
  %v1089 = vpop.f32.mrb[0].mxu0
  %1090 = vmatprep.mubr.f32.mxu0 0.0
  %1091 = vmatmul.mubr.f32.gmra.mrb[0].mxu0 %v445
  %v1092 = vpop.f32.mrb[0].mxu0
  %v1093 = vadd.f32 0.0, %v1092
  %v1094 = vpop.f32.mrb[0].mxu0
  %1095 = vmatprep.mubr.f32.mxu0 0.0
  %1096 = vmatmul.mubr.f32.gmra.mrb[0].mxu0 %v448
  %v1097 = vpop.f32.mrb[0].mxu0
  %v1098 = vadd.f32 0.0, %v1097
  %v1099 = vpop.f32.mrb[0].mxu0
  %1100 = vmatprep.mubr.f32.mxu0 0.0
  %1101 = vmatmul.mubr.f32.gmra.mrb[0].mxu0 %v451
  %v1102 = vpop.f32.mrb[0].mxu0
  %v1103 = vadd.f32 0.0, %v1102
  %v1104 = vpop.f32.mrb[0].mxu0
  %1105 = vmatprep.mubr.f32.mxu0 0.0
  %1106 = vmatmul.mubr.f32.gmra.mrb[0].mxu0 %v454
  %v1107 = vpop.f32.mrb[0].mxu0
  %v1108 = vadd.f32 0.0, %v1107
  %v1109 = vpop.f32.mrb[0].mxu0
  %1110 = vmatprep.mubr.f32.mxu0 0.0
  %1111 = vmatmul.mubr.f32.gmra.mrb[0].mxu0 %v457
  %v1112 = vpop.f32.mrb[0].mxu0
  %v1113 = vadd.f32 0.0, %v1112
  %v1114 = vpop.f32.mrb[0].mxu0
  %1115 = vmatprep.mubr.f32.mxu0 0.0
  %1116 = vmatmul.mubr.f32.gmra.mrb[0].mxu0 %v460
  %v1117 = vpop.f32.mrb[0].mxu0
  %v1118 = vadd.f32 0.0, %v1117
  %v1119 = vpop.f32.mrb[0].mxu0
  %1120 = vmatprep.mubr.f32.mxu0 0.0
  %1121 = vmatmul.mubr.f32.gmra.mrb[0].mxu0 %v463
  %v1122 = vpop.f32.mrb[0].mxu0
  %v1123 = vadd.f32 0.0, %v1122
  %v1124 = vpop.f32.mrb[0].mxu0
  %1125 = vmatprep.mubr.f32.mxu0 0.0
  %1126 = vmatmul.mubr.f32.gmra.mrb[0].mxu0 %v466
  %v1127 = vpop.f32.mrb[0].mxu0
  %v1128 = vadd.f32 0.0, %v1127
  %v1129 = vpop.f32.mrb[0].mxu0
  %1130 = vmatprep.mubr.f32.mxu0 0.0
  %1131 = vmatmul.mubr.f32.gmra.mrb[0].mxu0 %v469
  %v1132 = vpop.f32.mrb[0].mxu0
  %v1133 = vadd.f32 0.0, %v1132
  %v1134 = vpop.f32.mrb[0].mxu0
  %1135 = vmatprep.mubr.f32.mxu0 0.0
  %1136 = vmatmul.mubr.f32.gmra.mrb[0].mxu0 %v472
  %v1137 = vpop.f32.mrb[0].mxu0
  %v1138 = vadd.f32 0.0, %v1137
  %v1139 = vpop.f32.mrb[0].mxu0
  %1140 = vmatprep.mubr.f32.mxu0 0.0
  %1141 = vmatmul.mubr.f32.gmra.mrb[0].mxu0 %v475
  %v1142 = vpop.f32.mrb[0].mxu0
  %v1143 = vadd.f32 0.0, %v1142
  %v1144 = vpop.f32.mrb[0].mxu0
  %1145 = vmatprep.mubr.f32.mxu0 0.0
  %1146 = vmatmul.mubr.f32.gmra.mrb[0].mxu0 %v478
  %v1147 = vpop.f32.mrb[0].mxu0
  %v1148 = vadd.f32 0.0, %v1147
  %v1149 = vpop.f32.mrb[0].mxu0
  %1150 = vmatprep.mubr.f32.mxu0 0.0
  %1151 = vmatmul.mubr.f32.gmra.mrb[0].mxu0 %v481
  %v1152 = vpop.f32.mrb[0].mxu0
  %v1153 = vadd.f32 0.0, %v1152
  %v1154 = vpop.f32.mrb[0].mxu0
  %1155 = vmatprep.mubr.f32.mxu0 0.0
  %1156 = vmatmul.mubr.f32.gmra.mrb[0].mxu0 %v484
  %v1157 = vpop.f32.mrb[0].mxu0
  %v1158 = vadd.f32 0.0, %v1157
  %v1159 = vpop.f32.mrb[0].mxu0
  %1160 = vmatprep.mubr.f32.mxu0 0.0
  %1161 = vmatmul.mubr.f32.gmra.mrb[0].mxu0 %v487
  %v1162 = vpop.f32.mrb[0].mxu0
  %v1163 = vadd.f32 0.0, %v1162
  %v1164 = vpop.f32.mrb[0].mxu0
  %1165 = vmatprep.mubr.f32.mxu0 0.0
  %1166 = vmatmul.mubr.f32.gmra.mrb[0].mxu0 %v490
  %v1167 = vpop.f32.mrb[0].mxu0
  %v1168 = vadd.f32 0.0, %v1167
  %v1169 = vpop.f32.mrb[0].mxu0
  %1170 = vmatprep.mubr.f32.mxu0 0.0
  %1171 = vmatmul.mubr.f32.gmra.mrb[0].mxu0 %v493
  %v1172 = vpop.f32.mrb[0].mxu0
  %v1173 = vadd.f32 0.0, %v1172
  %v1174 = vpop.f32.mrb[0].mxu0
  %1175 = vmatprep.mubr.f32.mxu0 0.0
  %1176 = vmatmul.mubr.f32.gmra.mrb[0].mxu0 %v496
  %v1177 = vpop.f32.mrb[0].mxu0
  %v1178 = vadd.f32 0.0, %v1177
  %v1179 = vpop.f32.mrb[0].mxu0
  %1180 = vmatprep.mubr.f32.mxu0 0.0
  %1181 = vmatmul.mubr.f32.gmra.mrb[0].mxu0 %v499
  %v1182 = vpop.f32.mrb[0].mxu0
  %v1183 = vadd.f32 0.0, %v1182
  %v1184 = vpop.f32.mrb[0].mxu0
  %1185 = vmatprep.mubr.f32.mxu0 0.0
  %1186 = vmatmul.mubr.f32.gmra.mrb[0].mxu0 %v502
  %v1187 = vpop.f32.mrb[0].mxu0
  %v1188 = vadd.f32 0.0, %v1187
  %v1189 = vpop.f32.mrb[0].mxu0
  %1190 = vmatprep.mubr.f32.mxu0 0.0
  %1191 = vmatmul.mubr.f32.gmra.mrb[0].mxu0 %v505
  %v1192 = vpop.f32.mrb[0].mxu0
  %v1193 = vadd.f32 0.0, %v1192
  %v1194 = vpop.f32.mrb[0].mxu0
  %1195 = vmatprep.mubr.f32.mxu0 0.0
  %1196 = vmatmul.mubr.f32.gmra.mrb[0].mxu0 %v508
  %v1197 = vpop.f32.mrb[0].mxu0
  %v1198 = vadd.f32 0.0, %v1197
  %v1199 = vpop.f32.mrb[0].mxu0
  %1200 = vmatprep.mubr.f32.mxu0 0.0
  %1201 = vmatmul.mubr.f32.gmra.mrb[0].mxu0 %v511
  %v1202 = vpop.f32.mrb[0].mxu0
  %v1203 = vadd.f32 0.0, %v1202
  %v1204 = vpop.f32.mrb[0].mxu0
  %1205 = vmatprep.mubr.f32.mxu0 0.0
  %1206 = vmatmul.mubr.f32.gmra.mrb[0].mxu0 %v514
  %v1207 = vpop.f32.mrb[0].mxu0
  %v1208 = vadd.f32 0.0, %v1207
  %v1209 = vpop.f32.mrb[0].mxu0
  %1210 = vmatprep.mubr.f32.mxu0 0.0
  %1211 = vmatmul.mubr.f32.gmra.mrb[0].mxu0 %v517
  %v1212 = vpop.f32.mrb[0].mxu0
  %v1213 = vadd.f32 0.0, %v1212
  %v1214 = vpop.f32.mrb[0].mxu0
  %1215 = vmatprep.mubr.f32.mxu0 0.0
  %1216 = vmatmul.mubr.f32.gmra.mrb[0].mxu0 %v520
  %v1217 = vpop.f32.mrb[0].mxu0
  %v1218 = vadd.f32 0.0, %v1217
  %v1219 = vpop.f32.mrb[0].mxu0
  %1220 = vmatprep.mubr.f32.mxu0 0.0
  %1221 = vmatmul.mubr.f32.gmra.mrb[0].mxu0 %v523
  %v1222 = vpop.f32.mrb[0].mxu0
  %v1223 = vadd.f32 0.0, %v1222
  %v1224 = vpop.f32.mrb[0].mxu0
  %1225 = vmatprep.mubr.f32.mxu0 0.0
  %1226 = vmatmul.mubr.f32.gmra.mrb[0].mxu0 %v526
  %v1227 = vpop.f32.mrb[0].mxu0
  %v1228 = vadd.f32 0.0, %v1227
  %v1229 = vpop.f32.mrb[0].mxu0
  %1230 = vmatprep.mubr.f32.mxu0 0.0
  %1231 = vmatmul.mubr.f32.gmra.mrb[0].mxu0 %v529
  %v1232 = vpop.f32.mrb[0].mxu0
  %v1233 = vadd.f32 0.0, %v1232
  %v1234 = vpop.f32.mrb[0].mxu0
  %1235 = vdwg.mxu0
  %vm1236 = vcmask 15360
  %1237 = vst.msk [vmem:[%s2] sm:$0xff] %vm1236, %v598
  %1238 = vst.msk [vmem:[%s2 + $0x8] sm:$0xff] %vm1236, %v603
  %1239 = vst.msk [vmem:[%s2 + $0x10] sm:$0xff] %vm1236, %v608
  %1240 = vst.msk [vmem:[%s2 + $0x18] sm:$0xff] %vm1236, %v613
  %1241 = vst.msk [vmem:[%s2 + $0x20] sm:$0xff] %vm1236, %v618
  %1242 = vst.msk [vmem:[%s2 + $0x28] sm:$0xff] %vm1236, %v623
  %1243 = vst.msk [vmem:[%s2 + $0x30] sm:$0xff] %vm1236, %v628
  %1244 = vst.msk [vmem:[%s2 + $0x38] sm:$0xff] %vm1236, %v633
  %1245 = vst.msk [vmem:[%s2 + $0x40] sm:$0xff] %vm1236, %v638
  %1246 = vst.msk [vmem:[%s2 + $0x48] sm:$0xff] %vm1236, %v643
  %1247 = vst.msk [vmem:[%s2 + $0x50] sm:$0xff] %vm1236, %v648
  %1248 = vst.msk [vmem:[%s2 + $0x58] sm:$0xff] %vm1236, %v653
  %1249 = vst.msk [vmem:[%s2 + $0x60] sm:$0xff] %vm1236, %v658
  %1250 = vst.msk [vmem:[%s2 + $0x68] sm:$0xff] %vm1236, %v663
  %1251 = vst.msk [vmem:[%s2 + $0x70] sm:$0xff] %vm1236, %v668
  %1252 = vst.msk [vmem:[%s2 + $0x78] sm:$0xff] %vm1236, %v673
  %1253 = vst.msk [vmem:[%s2 + $0x80] sm:$0xff] %vm1236, %v678
  %1254 = vst.msk [vmem:[%s2 + $0x88] sm:$0xff] %vm1236, %v683
  %1255 = vst.msk [vmem:[%s2 + $0x90] sm:$0xff] %vm1236, %v688
  %1256 = vst.msk [vmem:[%s2 + $0x98] sm:$0xff] %vm1236, %v693
  %1257 = vst.msk [vmem:[%s2 + $0xa0] sm:$0xff] %vm1236, %v698
  %1258 = vst.msk [vmem:[%s2 + $0xa8] sm:$0xff] %vm1236, %v703
  %1259 = vst.msk [vmem:[%s2 + $0xb0] sm:$0xff] %vm1236, %v708
  %1260 = vst.msk [vmem:[%s2 + $0xb8] sm:$0xff] %vm1236, %v713
  %1261 = vst.msk [vmem:[%s2 + $0xc0] sm:$0xff] %vm1236, %v718
  %1262 = vst.msk [vmem:[%s2 + $0xc8] sm:$0xff] %vm1236, %v723
  %1263 = vst.msk [vmem:[%s2 + $0xd0] sm:$0xff] %vm1236, %v728
  %1264 = vst.msk [vmem:[%s2 + $0xd8] sm:$0xff] %vm1236, %v733
  %1265 = vst.msk [vmem:[%s2 + $0xe0] sm:$0xff] %vm1236, %v738
  %1266 = vst.msk [vmem:[%s2 + $0xe8] sm:$0xff] %vm1236, %v743
  %1267 = vst.msk [vmem:[%s2 + $0xf0] sm:$0xff] %vm1236, %v748
  %1268 = vst.msk [vmem:[%s2 + $0xf8] sm:$0xff] %vm1236, %v753
  %1269 = vst.msk [vmem:[%s2 + $0x100] sm:$0xff] %vm1236, %v758
  %1270 = vst.msk [vmem:[%s2 + $0x108] sm:$0xff] %vm1236, %v763
  %1271 = vst.msk [vmem:[%s2 + $0x110] sm:$0xff] %vm1236, %v768
  %1272 = vst.msk [vmem:[%s2 + $0x118] sm:$0xff] %vm1236, %v773
  %1273 = vst.msk [vmem:[%s2 + $0x120] sm:$0xff] %vm1236, %v778
  %1274 = vst.msk [vmem:[%s2 + $0x128] sm:$0xff] %vm1236, %v783
  %1275 = vst.msk [vmem:[%s2 + $0x130] sm:$0xff] %vm1236, %v788
  %1276 = vst.msk [vmem:[%s2 + $0x138] sm:$0xff] %vm1236, %v793
  %1277 = vst.msk [vmem:[%s2 + $0x140] sm:$0xff] %vm1236, %v798
  %1278 = vst.msk [vmem:[%s2 + $0x148] sm:$0xff] %vm1236, %v803
  %1279 = vst.msk [vmem:[%s2 + $0x150] sm:$0xff] %vm1236, %v808
  %1280 = vst.msk [vmem:[%s2 + $0x158] sm:$0xff] %vm1236, %v813
  %1281 = vst.msk [vmem:[%s2 + $0x160] sm:$0xff] %vm1236, %v818
  %1282 = vst.msk [vmem:[%s2 + $0x168] sm:$0xff] %vm1236, %v823
  %1283 = vst.msk [vmem:[%s2 + $0x170] sm:$0xff] %vm1236, %v828
  %1284 = vst.msk [vmem:[%s2 + $0x178] sm:$0xff] %vm1236, %v833
  %1285 = vst.msk [vmem:[%s2 + $0x180] sm:$0xff] %vm1236, %v838
  %1286 = vst.msk [vmem:[%s2 + $0x188] sm:$0xff] %vm1236, %v843
  %1287 = vst.msk [vmem:[%s2 + $0x190] sm:$0xff] %vm1236, %v848
  %1288 = vst.msk [vmem:[%s2 + $0x198] sm:$0xff] %vm1236, %v853
  %1289 = vst.msk [vmem:[%s2 + $0x1a0] sm:$0xff] %vm1236, %v858
  %1290 = vst.msk [vmem:[%s2 + $0x1a8] sm:$0xff] %vm1236, %v863
  %1291 = vst.msk [vmem:[%s2 + $0x1b0] sm:$0xff] %vm1236, %v868
  %1292 = vst.msk [vmem:[%s2 + $0x1b8] sm:$0xff] %vm1236, %v873
  %1293 = vst.msk [vmem:[%s2 + $0x1c0] sm:$0xff] %vm1236, %v878
  %1294 = vst.msk [vmem:[%s2 + $0x1c8] sm:$0xff] %vm1236, %v883
  %1295 = vst.msk [vmem:[%s2 + $0x1d0] sm:$0xff] %vm1236, %v888
  %1296 = vst.msk [vmem:[%s2 + $0x1d8] sm:$0xff] %vm1236, %v893
  %1297 = vst.msk [vmem:[%s2 + $0x1e0] sm:$0xff] %vm1236, %v898
  %1298 = vst.msk [vmem:[%s2 + $0x1e8] sm:$0xff] %vm1236, %v903
  %1299 = vst.msk [vmem:[%s2 + $0x1f0] sm:$0xff] %vm1236, %v908
  %1300 = vst.msk [vmem:[%s2 + $0x1f8] sm:$0xff] %vm1236, %v913
  %1301 = vst.msk [vmem:[%s2 + $0x200] sm:$0xff] %vm1236, %v918
  %1302 = vst.msk [vmem:[%s2 + $0x208] sm:$0xff] %vm1236, %v923
  %1303 = vst.msk [vmem:[%s2 + $0x210] sm:$0xff] %vm1236, %v928
  %1304 = vst.msk [vmem:[%s2 + $0x218] sm:$0xff] %vm1236, %v933
  %1305 = vst.msk [vmem:[%s2 + $0x220] sm:$0xff] %vm1236, %v938
  %1306 = vst.msk [vmem:[%s2 + $0x228] sm:$0xff] %vm1236, %v943
  %1307 = vst.msk [vmem:[%s2 + $0x230] sm:$0xff] %vm1236, %v948
  %1308 = vst.msk [vmem:[%s2 + $0x238] sm:$0xff] %vm1236, %v953
  %1309 = vst.msk [vmem:[%s2 + $0x240] sm:$0xff] %vm1236, %v958
  %1310 = vst.msk [vmem:[%s2 + $0x248] sm:$0xff] %vm1236, %v963
  %1311 = vst.msk [vmem:[%s2 + $0x250] sm:$0xff] %vm1236, %v968
  %1312 = vst.msk [vmem:[%s2 + $0x258] sm:$0xff] %vm1236, %v973
  %1313 = vst.msk [vmem:[%s2 + $0x260] sm:$0xff] %vm1236, %v978
  %1314 = vst.msk [vmem:[%s2 + $0x268] sm:$0xff] %vm1236, %v983
  %1315 = vst.msk [vmem:[%s2 + $0x270] sm:$0xff] %vm1236, %v988
  %1316 = vst.msk [vmem:[%s2 + $0x278] sm:$0xff] %vm1236, %v993
  %1317 = vst.msk [vmem:[%s2 + $0x280] sm:$0xff] %vm1236, %v998
  %1318 = vst.msk [vmem:[%s2 + $0x288] sm:$0xff] %vm1236, %v1003
  %1319 = vst.msk [vmem:[%s2 + $0x290] sm:$0xff] %vm1236, %v1008
  %1320 = vst.msk [vmem:[%s2 + $0x298] sm:$0xff] %vm1236, %v1013
  %1321 = vst.msk [vmem:[%s2 + $0x2a0] sm:$0xff] %vm1236, %v1018
  %1322 = vst.msk [vmem:[%s2 + $0x2a8] sm:$0xff] %vm1236, %v1023
  %1323 = vst.msk [vmem:[%s2 + $0x2b0] sm:$0xff] %vm1236, %v1028
  %1324 = vst.msk [vmem:[%s2 + $0x2b8] sm:$0xff] %vm1236, %v1033
  %1325 = vst.msk [vmem:[%s2 + $0x2c0] sm:$0xff] %vm1236, %v1038
  %1326 = vst.msk [vmem:[%s2 + $0x2c8] sm:$0xff] %vm1236, %v1043
  %1327 = vst.msk [vmem:[%s2 + $0x2d0] sm:$0xff] %vm1236, %v1048
  %1328 = vst.msk [vmem:[%s2 + $0x2d8] sm:$0xff] %vm1236, %v1053
  %1329 = vst.msk [vmem:[%s2 + $0x2e0] sm:$0xff] %vm1236, %v1058
  %1330 = vst.msk [vmem:[%s2 + $0x2e8] sm:$0xff] %vm1236, %v1063
  %1331 = vst.msk [vmem:[%s2 + $0x2f0] sm:$0xff] %vm1236, %v1068
  %1332 = vst.msk [vmem:[%s2 + $0x2f8] sm:$0xff] %vm1236, %v1073
  %1333 = vst.msk [vmem:[%s2 + $0x300] sm:$0xff] %vm1236, %v1078
  %1334 = vst.msk [vmem:[%s2 + $0x308] sm:$0xff] %vm1236, %v1083
  %1335 = vst.msk [vmem:[%s2 + $0x310] sm:$0xff] %vm1236, %v1088
  %1336 = vst.msk [vmem:[%s2 + $0x318] sm:$0xff] %vm1236, %v1093
  %1337 = vst.msk [vmem:[%s2 + $0x320] sm:$0xff] %vm1236, %v1098
  %1338 = vst.msk [vmem:[%s2 + $0x328] sm:$0xff] %vm1236, %v1103
  %1339 = vst.msk [vmem:[%s2 + $0x330] sm:$0xff] %vm1236, %v1108
  %1340 = vst.msk [vmem:[%s2 + $0x338] sm:$0xff] %vm1236, %v1113
  %1341 = vst.msk [vmem:[%s2 + $0x340] sm:$0xff] %vm1236, %v1118
  %1342 = vst.msk [vmem:[%s2 + $0x348] sm:$0xff] %vm1236, %v1123
  %1343 = vst.msk [vmem:[%s2 + $0x350] sm:$0xff] %vm1236, %v1128
  %1344 = vst.msk [vmem:[%s2 + $0x358] sm:$0xff] %vm1236, %v1133
  %1345 = vst.msk [vmem:[%s2 + $0x360] sm:$0xff] %vm1236, %v1138
  %1346 = vst.msk [vmem:[%s2 + $0x368] sm:$0xff] %vm1236, %v1143
  %1347 = vst.msk [vmem:[%s2 + $0x370] sm:$0xff] %vm1236, %v1148
  %1348 = vst.msk [vmem:[%s2 + $0x378] sm:$0xff] %vm1236, %v1153
  %1349 = vst.msk [vmem:[%s2 + $0x380] sm:$0xff] %vm1236, %v1158
  %1350 = vst.msk [vmem:[%s2 + $0x388] sm:$0xff] %vm1236, %v1163
  %1351 = vst.msk [vmem:[%s2 + $0x390] sm:$0xff] %vm1236, %v1168
  %1352 = vst.msk [vmem:[%s2 + $0x398] sm:$0xff] %vm1236, %v1173
  %1353 = vst.msk [vmem:[%s2 + $0x3a0] sm:$0xff] %vm1236, %v1178
  %1354 = vst.msk [vmem:[%s2 + $0x3a8] sm:$0xff] %vm1236, %v1183
  %1355 = vst.msk [vmem:[%s2 + $0x3b0] sm:$0xff] %vm1236, %v1188
  %1356 = vst.msk [vmem:[%s2 + $0x3b8] sm:$0xff] %vm1236, %v1193
  %1357 = vst.msk [vmem:[%s2 + $0x3c0] sm:$0xff] %vm1236, %v1198
  %1358 = vst.msk [vmem:[%s2 + $0x3c8] sm:$0xff] %vm1236, %v1203
  %1359 = vst.msk [vmem:[%s2 + $0x3d0] sm:$0xff] %vm1236, %v1208
  %1360 = vst.msk [vmem:[%s2 + $0x3d8] sm:$0xff] %vm1236, %v1213
  %1361 = vst.msk [vmem:[%s2 + $0x3e0] sm:$0xff] %vm1236, %v1218
  %1362 = vst.msk [vmem:[%s2 + $0x3e8] sm:$0xff] %vm1236, %v1223
  %1363 = vst.msk [vmem:[%s2 + $0x3f0] sm:$0xff] %vm1236, %v1228
  %1364 = vst.msk [vmem:[%s2 + $0x3f8] sm:$0xff] %vm1236, %v1233
  %v1365 = vsel %vm1236, %v598, 0.0
  %1366 = vadd.xlane.f32.xlu0 %v1365
  %v1367 = vpop.xlane.xlu0 %1366
  %v1368 = vsel %vm1236, %v603, 0.0
  %1369 = vadd.xlane.f32.xlu0 %v1368
  %v1370 = vpop.xlane.xlu0 %1369
  %v1371 = vsel %vm1236, %v608, 0.0
  %1372 = vadd.xlane.f32.xlu0 %v1371
  %v1373 = vpop.xlane.xlu0 %1372
  %v1374 = vsel %vm1236, %v613, 0.0
  %1375 = vadd.xlane.f32.xlu0 %v1374
  %v1376 = vpop.xlane.xlu0 %1375
  %v1377 = vsel %vm1236, %v618, 0.0
  %1378 = vadd.xlane.f32.xlu0 %v1377
  %v1379 = vpop.xlane.xlu0 %1378
  %v1380 = vsel %vm1236, %v623, 0.0
  %1381 = vadd.xlane.f32.xlu0 %v1380
  %v1382 = vpop.xlane.xlu0 %1381
  %v1383 = vsel %vm1236, %v628, 0.0
  %1384 = vadd.xlane.f32.xlu0 %v1383
  %v1385 = vpop.xlane.xlu0 %1384
  %v1386 = vsel %vm1236, %v633, 0.0
  %1387 = vadd.xlane.f32.xlu0 %v1386
  %v1388 = vpop.xlane.xlu0 %1387
  %v1389 = vsel %vm1236, %v638, 0.0
  %1390 = vadd.xlane.f32.xlu0 %v1389
  %v1391 = vpop.xlane.xlu0 %1390
  %v1392 = vsel %vm1236, %v643, 0.0
  %1393 = vadd.xlane.f32.xlu0 %v1392
  %v1394 = vpop.xlane.xlu0 %1393
  %v1395 = vsel %vm1236, %v648, 0.0
  %1396 = vadd.xlane.f32.xlu0 %v1395
  %v1397 = vpop.xlane.xlu0 %1396
  %v1398 = vsel %vm1236, %v653, 0.0
  %1399 = vadd.xlane.f32.xlu0 %v1398
  %v1400 = vpop.xlane.xlu0 %1399
  %v1401 = vsel %vm1236, %v658, 0.0
  %1402 = vadd.xlane.f32.xlu0 %v1401
  %v1403 = vpop.xlane.xlu0 %1402
  %v1404 = vsel %vm1236, %v663, 0.0
  %1405 = vadd.xlane.f32.xlu0 %v1404
  %v1406 = vpop.xlane.xlu0 %1405
  %v1407 = vsel %vm1236, %v668, 0.0
  %1408 = vadd.xlane.f32.xlu0 %v1407
  %v1409 = vpop.xlane.xlu0 %1408
  %v1410 = vsel %vm1236, %v673, 0.0
  %1411 = vadd.xlane.f32.xlu0 %v1410
  %v1412 = vpop.xlane.xlu0 %1411
  %v1413 = vsel %vm1236, %v678, 0.0
  %1414 = vadd.xlane.f32.xlu0 %v1413
  %v1415 = vpop.xlane.xlu0 %1414
  %v1416 = vsel %vm1236, %v683, 0.0
  %1417 = vadd.xlane.f32.xlu0 %v1416
  %v1418 = vpop.xlane.xlu0 %1417
  %v1419 = vsel %vm1236, %v688, 0.0
  %1420 = vadd.xlane.f32.xlu0 %v1419
  %v1421 = vpop.xlane.xlu0 %1420
  %v1422 = vsel %vm1236, %v693, 0.0
  %1423 = vadd.xlane.f32.xlu0 %v1422
  %v1424 = vpop.xlane.xlu0 %1423
  %v1425 = vsel %vm1236, %v698, 0.0
  %1426 = vadd.xlane.f32.xlu0 %v1425
  %v1427 = vpop.xlane.xlu0 %1426
  %v1428 = vsel %vm1236, %v703, 0.0
  %1429 = vadd.xlane.f32.xlu0 %v1428
  %v1430 = vpop.xlane.xlu0 %1429
  %v1431 = vsel %vm1236, %v708, 0.0
  %1432 = vadd.xlane.f32.xlu0 %v1431
  %v1433 = vpop.xlane.xlu0 %1432
  %v1434 = vsel %vm1236, %v713, 0.0
  %1435 = vadd.xlane.f32.xlu0 %v1434
  %v1436 = vpop.xlane.xlu0 %1435
  %v1437 = vsel %vm1236, %v718, 0.0
  %1438 = vadd.xlane.f32.xlu0 %v1437
  %v1439 = vpop.xlane.xlu0 %1438
  %v1440 = vsel %vm1236, %v723, 0.0
  %1441 = vadd.xlane.f32.xlu0 %v1440
  %v1442 = vpop.xlane.xlu0 %1441
  %v1443 = vsel %vm1236, %v728, 0.0
  %1444 = vadd.xlane.f32.xlu0 %v1443
  %v1445 = vpop.xlane.xlu0 %1444
  %v1446 = vsel %vm1236, %v733, 0.0
  %1447 = vadd.xlane.f32.xlu0 %v1446
  %v1448 = vpop.xlane.xlu0 %1447
  %v1449 = vsel %vm1236, %v738, 0.0
  %1450 = vadd.xlane.f32.xlu0 %v1449
  %v1451 = vpop.xlane.xlu0 %1450
  %v1452 = vsel %vm1236, %v743, 0.0
  %1453 = vadd.xlane.f32.xlu0 %v1452
  %v1454 = vpop.xlane.xlu0 %1453
  %v1455 = vsel %vm1236, %v748, 0.0
  %1456 = vadd.xlane.f32.xlu0 %v1455
  %v1457 = vpop.xlane.xlu0 %1456
  %v1458 = vsel %vm1236, %v753, 0.0
  %1459 = vadd.xlane.f32.xlu0 %v1458
  %v1460 = vpop.xlane.xlu0 %1459
  %v1461 = vsel %vm1236, %v758, 0.0
  %1462 = vadd.xlane.f32.xlu0 %v1461
  %v1463 = vpop.xlane.xlu0 %1462
  %v1464 = vsel %vm1236, %v763, 0.0
  %1465 = vadd.xlane.f32.xlu0 %v1464
  %v1466 = vpop.xlane.xlu0 %1465
  %v1467 = vsel %vm1236, %v768, 0.0
  %1468 = vadd.xlane.f32.xlu0 %v1467
  %v1469 = vpop.xlane.xlu0 %1468
  %v1470 = vsel %vm1236, %v773, 0.0
  %1471 = vadd.xlane.f32.xlu0 %v1470
  %v1472 = vpop.xlane.xlu0 %1471
  %v1473 = vsel %vm1236, %v778, 0.0
  %1474 = vadd.xlane.f32.xlu0 %v1473
  %v1475 = vpop.xlane.xlu0 %1474
  %v1476 = vsel %vm1236, %v783, 0.0
  %1477 = vadd.xlane.f32.xlu0 %v1476
  %v1478 = vpop.xlane.xlu0 %1477
  %v1479 = vsel %vm1236, %v788, 0.0
  %1480 = vadd.xlane.f32.xlu0 %v1479
  %v1481 = vpop.xlane.xlu0 %1480
  %v1482 = vsel %vm1236, %v793, 0.0
  %1483 = vadd.xlane.f32.xlu0 %v1482
  %v1484 = vpop.xlane.xlu0 %1483
  %v1485 = vsel %vm1236, %v798, 0.0
  %1486 = vadd.xlane.f32.xlu0 %v1485
  %v1487 = vpop.xlane.xlu0 %1486
  %v1488 = vsel %vm1236, %v803, 0.0
  %1489 = vadd.xlane.f32.xlu0 %v1488
  %v1490 = vpop.xlane.xlu0 %1489
  %v1491 = vsel %vm1236, %v808, 0.0
  %1492 = vadd.xlane.f32.xlu0 %v1491
  %v1493 = vpop.xlane.xlu0 %1492
  %v1494 = vsel %vm1236, %v813, 0.0
  %1495 = vadd.xlane.f32.xlu0 %v1494
  %v1496 = vpop.xlane.xlu0 %1495
  %v1497 = vsel %vm1236, %v818, 0.0
  %1498 = vadd.xlane.f32.xlu0 %v1497
  %v1499 = vpop.xlane.xlu0 %1498
  %v1500 = vsel %vm1236, %v823, 0.0
  %1501 = vadd.xlane.f32.xlu0 %v1500
  %v1502 = vpop.xlane.xlu0 %1501
  %v1503 = vsel %vm1236, %v828, 0.0
  %1504 = vadd.xlane.f32.xlu0 %v1503
  %v1505 = vpop.xlane.xlu0 %1504
  %v1506 = vsel %vm1236, %v833, 0.0
  %1507 = vadd.xlane.f32.xlu0 %v1506
  %v1508 = vpop.xlane.xlu0 %1507
  %v1509 = vsel %vm1236, %v838, 0.0
  %1510 = vadd.xlane.f32.xlu0 %v1509
  %v1511 = vpop.xlane.xlu0 %1510
  %v1512 = vsel %vm1236, %v843, 0.0
  %1513 = vadd.xlane.f32.xlu0 %v1512
  %v1514 = vpop.xlane.xlu0 %1513
  %v1515 = vsel %vm1236, %v848, 0.0
  %1516 = vadd.xlane.f32.xlu0 %v1515
  %v1517 = vpop.xlane.xlu0 %1516
  %v1518 = vsel %vm1236, %v853, 0.0
  %1519 = vadd.xlane.f32.xlu0 %v1518
  %v1520 = vpop.xlane.xlu0 %1519
  %v1521 = vsel %vm1236, %v858, 0.0
  %1522 = vadd.xlane.f32.xlu0 %v1521
  %v1523 = vpop.xlane.xlu0 %1522
  %v1524 = vsel %vm1236, %v863, 0.0
  %1525 = vadd.xlane.f32.xlu0 %v1524
  %v1526 = vpop.xlane.xlu0 %1525
  %v1527 = vsel %vm1236, %v868, 0.0
  %1528 = vadd.xlane.f32.xlu0 %v1527
  %v1529 = vpop.xlane.xlu0 %1528
  %v1530 = vsel %vm1236, %v873, 0.0
  %1531 = vadd.xlane.f32.xlu0 %v1530
  %v1532 = vpop.xlane.xlu0 %1531
  %v1533 = vsel %vm1236, %v878, 0.0
  %1534 = vadd.xlane.f32.xlu0 %v1533
  %v1535 = vpop.xlane.xlu0 %1534
  %v1536 = vsel %vm1236, %v883, 0.0
  %1537 = vadd.xlane.f32.xlu0 %v1536
  %v1538 = vpop.xlane.xlu0 %1537
  %v1539 = vsel %vm1236, %v888, 0.0
  %1540 = vadd.xlane.f32.xlu0 %v1539
  %v1541 = vpop.xlane.xlu0 %1540
  %v1542 = vsel %vm1236, %v893, 0.0
  %1543 = vadd.xlane.f32.xlu0 %v1542
  %v1544 = vpop.xlane.xlu0 %1543
  %v1545 = vsel %vm1236, %v898, 0.0
  %1546 = vadd.xlane.f32.xlu0 %v1545
  %v1547 = vpop.xlane.xlu0 %1546
  %v1548 = vsel %vm1236, %v903, 0.0
  %1549 = vadd.xlane.f32.xlu0 %v1548
  %v1550 = vpop.xlane.xlu0 %1549
  %v1551 = vsel %vm1236, %v908, 0.0
  %1552 = vadd.xlane.f32.xlu0 %v1551
  %v1553 = vpop.xlane.xlu0 %1552
  %v1554 = vsel %vm1236, %v913, 0.0
  %1555 = vadd.xlane.f32.xlu0 %v1554
  %v1556 = vpop.xlane.xlu0 %1555
  %v1557 = vsel %vm1236, %v918, 0.0
  %1558 = vadd.xlane.f32.xlu0 %v1557
  %v1559 = vpop.xlane.xlu0 %1558
  %v1560 = vsel %vm1236, %v923, 0.0
  %1561 = vadd.xlane.f32.xlu0 %v1560
  %v1562 = vpop.xlane.xlu0 %1561
  %v1563 = vsel %vm1236, %v928, 0.0
  %1564 = vadd.xlane.f32.xlu0 %v1563
  %v1565 = vpop.xlane.xlu0 %1564
  %v1566 = vsel %vm1236, %v933, 0.0
  %1567 = vadd.xlane.f32.xlu0 %v1566
  %v1568 = vpop.xlane.xlu0 %1567
  %v1569 = vsel %vm1236, %v938, 0.0
  %1570 = vadd.xlane.f32.xlu0 %v1569
  %v1571 = vpop.xlane.xlu0 %1570
  %v1572 = vsel %vm1236, %v943, 0.0
  %1573 = vadd.xlane.f32.xlu0 %v1572
  %v1574 = vpop.xlane.xlu0 %1573
  %v1575 = vsel %vm1236, %v948, 0.0
  %1576 = vadd.xlane.f32.xlu0 %v1575
  %v1577 = vpop.xlane.xlu0 %1576
  %v1578 = vsel %vm1236, %v953, 0.0
  %1579 = vadd.xlane.f32.xlu0 %v1578
  %v1580 = vpop.xlane.xlu0 %1579
  %v1581 = vsel %vm1236, %v958, 0.0
  %1582 = vadd.xlane.f32.xlu0 %v1581
  %v1583 = vpop.xlane.xlu0 %1582
  %v1584 = vsel %vm1236, %v963, 0.0
  %1585 = vadd.xlane.f32.xlu0 %v1584
  %v1586 = vpop.xlane.xlu0 %1585
  %v1587 = vsel %vm1236, %v968, 0.0
  %1588 = vadd.xlane.f32.xlu0 %v1587
  %v1589 = vpop.xlane.xlu0 %1588
  %v1590 = vsel %vm1236, %v973, 0.0
  %1591 = vadd.xlane.f32.xlu0 %v1590
  %v1592 = vpop.xlane.xlu0 %1591
  %v1593 = vsel %vm1236, %v978, 0.0
  %1594 = vadd.xlane.f32.xlu0 %v1593
  %v1595 = vpop.xlane.xlu0 %1594
  %v1596 = vsel %vm1236, %v983, 0.0
  %1597 = vadd.xlane.f32.xlu0 %v1596
  %v1598 = vpop.xlane.xlu0 %1597
  %v1599 = vsel %vm1236, %v988, 0.0
  %1600 = vadd.xlane.f32.xlu0 %v1599
  %v1601 = vpop.xlane.xlu0 %1600
  %v1602 = vsel %vm1236, %v993, 0.0
  %1603 = vadd.xlane.f32.xlu0 %v1602
  %v1604 = vpop.xlane.xlu0 %1603
  %v1605 = vsel %vm1236, %v998, 0.0
  %1606 = vadd.xlane.f32.xlu0 %v1605
  %v1607 = vpop.xlane.xlu0 %1606
  %v1608 = vsel %vm1236, %v1003, 0.0
  %1609 = vadd.xlane.f32.xlu0 %v1608
  %v1610 = vpop.xlane.xlu0 %1609
  %v1611 = vsel %vm1236, %v1008, 0.0
  %1612 = vadd.xlane.f32.xlu0 %v1611
  %v1613 = vpop.xlane.xlu0 %1612
  %v1614 = vsel %vm1236, %v1013, 0.0
  %1615 = vadd.xlane.f32.xlu0 %v1614
  %v1616 = vpop.xlane.xlu0 %1615
  %v1617 = vsel %vm1236, %v1018, 0.0
  %1618 = vadd.xlane.f32.xlu0 %v1617
  %v1619 = vpop.xlane.xlu0 %1618
  %v1620 = vsel %vm1236, %v1023, 0.0
  %1621 = vadd.xlane.f32.xlu0 %v1620
  %v1622 = vpop.xlane.xlu0 %1621
  %v1623 = vsel %vm1236, %v1028, 0.0
  %1624 = vadd.xlane.f32.xlu0 %v1623
  %v1625 = vpop.xlane.xlu0 %1624
  %v1626 = vsel %vm1236, %v1033, 0.0
  %1627 = vadd.xlane.f32.xlu0 %v1626
  %v1628 = vpop.xlane.xlu0 %1627
  %v1629 = vsel %vm1236, %v1038, 0.0
  %1630 = vadd.xlane.f32.xlu0 %v1629
  %v1631 = vpop.xlane.xlu0 %1630
  %v1632 = vsel %vm1236, %v1043, 0.0
  %1633 = vadd.xlane.f32.xlu0 %v1632
  %v1634 = vpop.xlane.xlu0 %1633
  %v1635 = vsel %vm1236, %v1048, 0.0
  %1636 = vadd.xlane.f32.xlu0 %v1635
  %v1637 = vpop.xlane.xlu0 %1636
  %v1638 = vsel %vm1236, %v1053, 0.0
  %1639 = vadd.xlane.f32.xlu0 %v1638
  %v1640 = vpop.xlane.xlu0 %1639
  %v1641 = vsel %vm1236, %v1058, 0.0
  %1642 = vadd.xlane.f32.xlu0 %v1641
  %v1643 = vpop.xlane.xlu0 %1642
  %v1644 = vsel %vm1236, %v1063, 0.0
  %1645 = vadd.xlane.f32.xlu0 %v1644
  %v1646 = vpop.xlane.xlu0 %1645
  %v1647 = vsel %vm1236, %v1068, 0.0
  %1648 = vadd.xlane.f32.xlu0 %v1647
  %v1649 = vpop.xlane.xlu0 %1648
  %v1650 = vsel %vm1236, %v1073, 0.0
  %1651 = vadd.xlane.f32.xlu0 %v1650
  %v1652 = vpop.xlane.xlu0 %1651
  %v1653 = vsel %vm1236, %v1078, 0.0
  %1654 = vadd.xlane.f32.xlu0 %v1653
  %v1655 = vpop.xlane.xlu0 %1654
  %v1656 = vsel %vm1236, %v1083, 0.0
  %1657 = vadd.xlane.f32.xlu0 %v1656
  %v1658 = vpop.xlane.xlu0 %1657
  %v1659 = vsel %vm1236, %v1088, 0.0
  %1660 = vadd.xlane.f32.xlu0 %v1659
  %v1661 = vpop.xlane.xlu0 %1660
  %v1662 = vsel %vm1236, %v1093, 0.0
  %1663 = vadd.xlane.f32.xlu0 %v1662
  %v1664 = vpop.xlane.xlu0 %1663
  %v1665 = vsel %vm1236, %v1098, 0.0
  %1666 = vadd.xlane.f32.xlu0 %v1665
  %v1667 = vpop.xlane.xlu0 %1666
  %v1668 = vsel %vm1236, %v1103, 0.0
  %1669 = vadd.xlane.f32.xlu0 %v1668
  %v1670 = vpop.xlane.xlu0 %1669
  %v1671 = vsel %vm1236, %v1108, 0.0
  %1672 = vadd.xlane.f32.xlu0 %v1671
  %v1673 = vpop.xlane.xlu0 %1672
  %v1674 = vsel %vm1236, %v1113, 0.0
  %1675 = vadd.xlane.f32.xlu0 %v1674
  %v1676 = vpop.xlane.xlu0 %1675
  %v1677 = vsel %vm1236, %v1118, 0.0
  %1678 = vadd.xlane.f32.xlu0 %v1677
  %v1679 = vpop.xlane.xlu0 %1678
  %v1680 = vsel %vm1236, %v1123, 0.0
  %1681 = vadd.xlane.f32.xlu0 %v1680
  %v1682 = vpop.xlane.xlu0 %1681
  %v1683 = vsel %vm1236, %v1128, 0.0
  %1684 = vadd.xlane.f32.xlu0 %v1683
  %v1685 = vpop.xlane.xlu0 %1684
  %v1686 = vsel %vm1236, %v1133, 0.0
  %1687 = vadd.xlane.f32.xlu0 %v1686
  %v1688 = vpop.xlane.xlu0 %1687
  %v1689 = vsel %vm1236, %v1138, 0.0
  %1690 = vadd.xlane.f32.xlu0 %v1689
  %v1691 = vpop.xlane.xlu0 %1690
  %v1692 = vsel %vm1236, %v1143, 0.0
  %1693 = vadd.xlane.f32.xlu0 %v1692
  %v1694 = vpop.xlane.xlu0 %1693
  %v1695 = vsel %vm1236, %v1148, 0.0
  %1696 = vadd.xlane.f32.xlu0 %v1695
  %v1697 = vpop.xlane.xlu0 %1696
  %v1698 = vsel %vm1236, %v1153, 0.0
  %1699 = vadd.xlane.f32.xlu0 %v1698
  %v1700 = vpop.xlane.xlu0 %1699
  %v1701 = vsel %vm1236, %v1158, 0.0
  %1702 = vadd.xlane.f32.xlu0 %v1701
  %v1703 = vpop.xlane.xlu0 %1702
  %v1704 = vsel %vm1236, %v1163, 0.0
  %1705 = vadd.xlane.f32.xlu0 %v1704
  %v1706 = vpop.xlane.xlu0 %1705
  %v1707 = vsel %vm1236, %v1168, 0.0
  %1708 = vadd.xlane.f32.xlu0 %v1707
  %v1709 = vpop.xlane.xlu0 %1708
  %v1710 = vsel %vm1236, %v1173, 0.0
  %1711 = vadd.xlane.f32.xlu0 %v1710
  %v1712 = vpop.xlane.xlu0 %1711
  %v1713 = vsel %vm1236, %v1178, 0.0
  %1714 = vadd.xlane.f32.xlu0 %v1713
  %v1715 = vpop.xlane.xlu0 %1714
  %v1716 = vsel %vm1236, %v1183, 0.0
  %1717 = vadd.xlane.f32.xlu0 %v1716
  %v1718 = vpop.xlane.xlu0 %1717
  %v1719 = vsel %vm1236, %v1188, 0.0
  %1720 = vadd.xlane.f32.xlu0 %v1719
  %v1721 = vpop.xlane.xlu0 %1720
  %v1722 = vsel %vm1236, %v1193, 0.0
  %1723 = vadd.xlane.f32.xlu0 %v1722
  %v1724 = vpop.xlane.xlu0 %1723
  %v1725 = vsel %vm1236, %v1198, 0.0
  %1726 = vadd.xlane.f32.xlu0 %v1725
  %v1727 = vpop.xlane.xlu0 %1726
  %v1728 = vsel %vm1236, %v1203, 0.0
  %1729 = vadd.xlane.f32.xlu0 %v1728
  %v1730 = vpop.xlane.xlu0 %1729
  %v1731 = vsel %vm1236, %v1208, 0.0
  %1732 = vadd.xlane.f32.xlu0 %v1731
  %v1733 = vpop.xlane.xlu0 %1732
  %v1734 = vsel %vm1236, %v1213, 0.0
  %1735 = vadd.xlane.f32.xlu0 %v1734
  %v1736 = vpop.xlane.xlu0 %1735
  %v1737 = vsel %vm1236, %v1218, 0.0
  %1738 = vadd.xlane.f32.xlu0 %v1737
  %v1739 = vpop.xlane.xlu0 %1738
  %v1740 = vsel %vm1236, %v1223, 0.0
  %1741 = vadd.xlane.f32.xlu0 %v1740
  %v1742 = vpop.xlane.xlu0 %1741
  %v1743 = vsel %vm1236, %v1228, 0.0
  %1744 = vadd.xlane.f32.xlu0 %v1743
  %v1745 = vpop.xlane.xlu0 %1744
  %v1746 = vsel %vm1236, %v1233, 0.0
  %1747 = vadd.xlane.f32.xlu0 %v1746
  %v1748 = vpop.xlane.xlu0 %1747
  %vm1749 = vcmask 7168
  %1750 = vst.msk [vmem:[%s3] sm:$0xff] %vm1749, %v1367
  %1751 = vst.msk [vmem:[%s3 + $0x8] sm:$0xff] %vm1749, %v1370
  %1752 = vst.msk [vmem:[%s3 + $0x10] sm:$0xff] %vm1749, %v1373
  %1753 = vst.msk [vmem:[%s3 + $0x18] sm:$0xff] %vm1749, %v1376
  %1754 = vst.msk [vmem:[%s3 + $0x20] sm:$0xff] %vm1749, %v1379
  %1755 = vst.msk [vmem:[%s3 + $0x28] sm:$0xff] %vm1749, %v1382
  %1756 = vst.msk [vmem:[%s3 + $0x30] sm:$0xff] %vm1749, %v1385
  %1757 = vst.msk [vmem:[%s3 + $0x38] sm:$0xff] %vm1749, %v1388
  %1758 = vst.msk [vmem:[%s3 + $0x40] sm:$0xff] %vm1749, %v1391
  %1759 = vst.msk [vmem:[%s3 + $0x48] sm:$0xff] %vm1749, %v1394
  %1760 = vst.msk [vmem:[%s3 + $0x50] sm:$0xff] %vm1749, %v1397
  %1761 = vst.msk [vmem:[%s3 + $0x58] sm:$0xff] %vm1749, %v1400
  %1762 = vst.msk [vmem:[%s3 + $0x60] sm:$0xff] %vm1749, %v1403
  %1763 = vst.msk [vmem:[%s3 + $0x68] sm:$0xff] %vm1749, %v1406
  %1764 = vst.msk [vmem:[%s3 + $0x70] sm:$0xff] %vm1749, %v1409
  %1765 = vst.msk [vmem:[%s3 + $0x78] sm:$0xff] %vm1749, %v1412
  %1766 = vst.msk [vmem:[%s3 + $0x80] sm:$0xff] %vm1749, %v1415
  %1767 = vst.msk [vmem:[%s3 + $0x88] sm:$0xff] %vm1749, %v1418
  %1768 = vst.msk [vmem:[%s3 + $0x90] sm:$0xff] %vm1749, %v1421
  %1769 = vst.msk [vmem:[%s3 + $0x98] sm:$0xff] %vm1749, %v1424
  %1770 = vst.msk [vmem:[%s3 + $0xa0] sm:$0xff] %vm1749, %v1427
  %1771 = vst.msk [vmem:[%s3 + $0xa8] sm:$0xff] %vm1749, %v1430
  %1772 = vst.msk [vmem:[%s3 + $0xb0] sm:$0xff] %vm1749, %v1433
  %1773 = vst.msk [vmem:[%s3 + $0xb8] sm:$0xff] %vm1749, %v1436
  %1774 = vst.msk [vmem:[%s3 + $0xc0] sm:$0xff] %vm1749, %v1439
  %1775 = vst.msk [vmem:[%s3 + $0xc8] sm:$0xff] %vm1749, %v1442
  %1776 = vst.msk [vmem:[%s3 + $0xd0] sm:$0xff] %vm1749, %v1445
  %1777 = vst.msk [vmem:[%s3 + $0xd8] sm:$0xff] %vm1749, %v1448
  %1778 = vst.msk [vmem:[%s3 + $0xe0] sm:$0xff] %vm1749, %v1451
  %1779 = vst.msk [vmem:[%s3 + $0xe8] sm:$0xff] %vm1749, %v1454
  %1780 = vst.msk [vmem:[%s3 + $0xf0] sm:$0xff] %vm1749, %v1457
  %1781 = vst.msk [vmem:[%s3 + $0xf8] sm:$0xff] %vm1749, %v1460
  %1782 = vst.msk [vmem:[%s3 + $0x100] sm:$0xff] %vm1749, %v1463
  %1783 = vst.msk [vmem:[%s3 + $0x108] sm:$0xff] %vm1749, %v1466
  %1784 = vst.msk [vmem:[%s3 + $0x110] sm:$0xff] %vm1749, %v1469
  %1785 = vst.msk [vmem:[%s3 + $0x118] sm:$0xff] %vm1749, %v1472
  %1786 = vst.msk [vmem:[%s3 + $0x120] sm:$0xff] %vm1749, %v1475
  %1787 = vst.msk [vmem:[%s3 + $0x128] sm:$0xff] %vm1749, %v1478
  %1788 = vst.msk [vmem:[%s3 + $0x130] sm:$0xff] %vm1749, %v1481
  %1789 = vst.msk [vmem:[%s3 + $0x138] sm:$0xff] %vm1749, %v1484
  %1790 = vst.msk [vmem:[%s3 + $0x140] sm:$0xff] %vm1749, %v1487
  %1791 = vst.msk [vmem:[%s3 + $0x148] sm:$0xff] %vm1749, %v1490
  %1792 = vst.msk [vmem:[%s3 + $0x150] sm:$0xff] %vm1749, %v1493
  %1793 = vst.msk [vmem:[%s3 + $0x158] sm:$0xff] %vm1749, %v1496
  %1794 = vst.msk [vmem:[%s3 + $0x160] sm:$0xff] %vm1749, %v1499
  %1795 = vst.msk [vmem:[%s3 + $0x168] sm:$0xff] %vm1749, %v1502
  %1796 = vst.msk [vmem:[%s3 + $0x170] sm:$0xff] %vm1749, %v1505
  %1797 = vst.msk [vmem:[%s3 + $0x178] sm:$0xff] %vm1749, %v1508
  %1798 = vst.msk [vmem:[%s3 + $0x180] sm:$0xff] %vm1749, %v1511
  %1799 = vst.msk [vmem:[%s3 + $0x188] sm:$0xff] %vm1749, %v1514
  %1800 = vst.msk [vmem:[%s3 + $0x190] sm:$0xff] %vm1749, %v1517
  %1801 = vst.msk [vmem:[%s3 + $0x198] sm:$0xff] %vm1749, %v1520
  %1802 = vst.msk [vmem:[%s3 + $0x1a0] sm:$0xff] %vm1749, %v1523
  %1803 = vst.msk [vmem:[%s3 + $0x1a8] sm:$0xff] %vm1749, %v1526
  %1804 = vst.msk [vmem:[%s3 + $0x1b0] sm:$0xff] %vm1749, %v1529
  %1805 = vst.msk [vmem:[%s3 + $0x1b8] sm:$0xff] %vm1749, %v1532
  %1806 = vst.msk [vmem:[%s3 + $0x1c0] sm:$0xff] %vm1749, %v1535
  %1807 = vst.msk [vmem:[%s3 + $0x1c8] sm:$0xff] %vm1749, %v1538
  %1808 = vst.msk [vmem:[%s3 + $0x1d0] sm:$0xff] %vm1749, %v1541
  %1809 = vst.msk [vmem:[%s3 + $0x1d8] sm:$0xff] %vm1749, %v1544
  %1810 = vst.msk [vmem:[%s3 + $0x1e0] sm:$0xff] %vm1749, %v1547
  %1811 = vst.msk [vmem:[%s3 + $0x1e8] sm:$0xff] %vm1749, %v1550
  %1812 = vst.msk [vmem:[%s3 + $0x1f0] sm:$0xff] %vm1749, %v1553
  %1813 = vst.msk [vmem:[%s3 + $0x1f8] sm:$0xff] %vm1749, %v1556
  %1814 = vst.msk [vmem:[%s3 + $0x200] sm:$0xff] %vm1749, %v1559
  %1815 = vst.msk [vmem:[%s3 + $0x208] sm:$0xff] %vm1749, %v1562
  %1816 = vst.msk [vmem:[%s3 + $0x210] sm:$0xff] %vm1749, %v1565
  %1817 = vst.msk [vmem:[%s3 + $0x218] sm:$0xff] %vm1749, %v1568
  %1818 = vst.msk [vmem:[%s3 + $0x220] sm:$0xff] %vm1749, %v1571
  %1819 = vst.msk [vmem:[%s3 + $0x228] sm:$0xff] %vm1749, %v1574
  %1820 = vst.msk [vmem:[%s3 + $0x230] sm:$0xff] %vm1749, %v1577
  %1821 = vst.msk [vmem:[%s3 + $0x238] sm:$0xff] %vm1749, %v1580
  %1822 = vst.msk [vmem:[%s3 + $0x240] sm:$0xff] %vm1749, %v1583
  %1823 = vst.msk [vmem:[%s3 + $0x248] sm:$0xff] %vm1749, %v1586
  %1824 = vst.msk [vmem:[%s3 + $0x250] sm:$0xff] %vm1749, %v1589
  %1825 = vst.msk [vmem:[%s3 + $0x258] sm:$0xff] %vm1749, %v1592
  %1826 = vst.msk [vmem:[%s3 + $0x260] sm:$0xff] %vm1749, %v1595
  %1827 = vst.msk [vmem:[%s3 + $0x268] sm:$0xff] %vm1749, %v1598
  %1828 = vst.msk [vmem:[%s3 + $0x270] sm:$0xff] %vm1749, %v1601
  %1829 = vst.msk [vmem:[%s3 + $0x278] sm:$0xff] %vm1749, %v1604
  %1830 = vst.msk [vmem:[%s3 + $0x280] sm:$0xff] %vm1749, %v1607
  %1831 = vst.msk [vmem:[%s3 + $0x288] sm:$0xff] %vm1749, %v1610
  %1832 = vst.msk [vmem:[%s3 + $0x290] sm:$0xff] %vm1749, %v1613
  %1833 = vst.msk [vmem:[%s3 + $0x298] sm:$0xff] %vm1749, %v1616
  %1834 = vst.msk [vmem:[%s3 + $0x2a0] sm:$0xff] %vm1749, %v1619
  %1835 = vst.msk [vmem:[%s3 + $0x2a8] sm:$0xff] %vm1749, %v1622
  %1836 = vst.msk [vmem:[%s3 + $0x2b0] sm:$0xff] %vm1749, %v1625
  %1837 = vst.msk [vmem:[%s3 + $0x2b8] sm:$0xff] %vm1749, %v1628
  %1838 = vst.msk [vmem:[%s3 + $0x2c0] sm:$0xff] %vm1749, %v1631
  %1839 = vst.msk [vmem:[%s3 + $0x2c8] sm:$0xff] %vm1749, %v1634
  %1840 = vst.msk [vmem:[%s3 + $0x2d0] sm:$0xff] %vm1749, %v1637
  %1841 = vst.msk [vmem:[%s3 + $0x2d8] sm:$0xff] %vm1749, %v1640
  %1842 = vst.msk [vmem:[%s3 + $0x2e0] sm:$0xff] %vm1749, %v1643
  %1843 = vst.msk [vmem:[%s3 + $0x2e8] sm:$0xff] %vm1749, %v1646
  %1844 = vst.msk [vmem:[%s3 + $0x2f0] sm:$0xff] %vm1749, %v1649
  %1845 = vst.msk [vmem:[%s3 + $0x2f8] sm:$0xff] %vm1749, %v1652
  %1846 = vst.msk [vmem:[%s3 + $0x300] sm:$0xff] %vm1749, %v1655
  %1847 = vst.msk [vmem:[%s3 + $0x308] sm:$0xff] %vm1749, %v1658
  %1848 = vst.msk [vmem:[%s3 + $0x310] sm:$0xff] %vm1749, %v1661
  %1849 = vst.msk [vmem:[%s3 + $0x318] sm:$0xff] %vm1749, %v1664
  %1850 = vst.msk [vmem:[%s3 + $0x320] sm:$0xff] %vm1749, %v1667
  %1851 = vst.msk [vmem:[%s3 + $0x328] sm:$0xff] %vm1749, %v1670
  %1852 = vst.msk [vmem:[%s3 + $0x330] sm:$0xff] %vm1749, %v1673
  %1853 = vst.msk [vmem:[%s3 + $0x338] sm:$0xff] %vm1749, %v1676
  %1854 = vst.msk [vmem:[%s3 + $0x340] sm:$0xff] %vm1749, %v1679
  %1855 = vst.msk [vmem:[%s3 + $0x348] sm:$0xff] %vm1749, %v1682
  %1856 = vst.msk [vmem:[%s3 + $0x350] sm:$0xff] %vm1749, %v1685
  %1857 = vst.msk [vmem:[%s3 + $0x358] sm:$0xff] %vm1749, %v1688
  %1858 = vst.msk [vmem:[%s3 + $0x360] sm:$0xff] %vm1749, %v1691
  %1859 = vst.msk [vmem:[%s3 + $0x368] sm:$0xff] %vm1749, %v1694
  %1860 = vst.msk [vmem:[%s3 + $0x370] sm:$0xff] %vm1749, %v1697
  %1861 = vst.msk [vmem:[%s3 + $0x378] sm:$0xff] %vm1749, %v1700
  %1862 = vst.msk [vmem:[%s3 + $0x380] sm:$0xff] %vm1749, %v1703
  %1863 = vst.msk [vmem:[%s3 + $0x388] sm:$0xff] %vm1749, %v1706
  %1864 = vst.msk [vmem:[%s3 + $0x390] sm:$0xff] %vm1749, %v1709
  %1865 = vst.msk [vmem:[%s3 + $0x398] sm:$0xff] %vm1749, %v1712
  %1866 = vst.msk [vmem:[%s3 + $0x3a0] sm:$0xff] %vm1749, %v1715
  %1867 = vst.msk [vmem:[%s3 + $0x3a8] sm:$0xff] %vm1749, %v1718
  %1868 = vst.msk [vmem:[%s3 + $0x3b0] sm:$0xff] %vm1749, %v1721
  %1869 = vst.msk [vmem:[%s3 + $0x3b8] sm:$0xff] %vm1749, %v1724
  %1870 = vst.msk [vmem:[%s3 + $0x3c0] sm:$0xff] %vm1749, %v1727
  %1871 = vst.msk [vmem:[%s3 + $0x3c8] sm:$0xff] %vm1749, %v1730
  %1872 = vst.msk [vmem:[%s3 + $0x3d0] sm:$0xff] %vm1749, %v1733
  %1873 = vst.msk [vmem:[%s3 + $0x3d8] sm:$0xff] %vm1749, %v1736
  %1874 = vst.msk [vmem:[%s3 + $0x3e0] sm:$0xff] %vm1749, %v1739
  %1875 = vst.msk [vmem:[%s3 + $0x3e8] sm:$0xff] %vm1749, %v1742
  %1876 = vst.msk [vmem:[%s3 + $0x3f0] sm:$0xff] %vm1749, %v1745
  %1877 = vst.msk [vmem:[%s3 + $0x3f8] sm:$0xff] %vm1749, %v1748
  %v1878 = vmul.f32 %v598, %v598
  %v1879 = vmul.f32 %v603, %v603
  %v1880 = vmul.f32 %v608, %v608
  %v1881 = vmul.f32 %v613, %v613
  %v1882 = vmul.f32 %v618, %v618
  %v1883 = vmul.f32 %v623, %v623
  %v1884 = vmul.f32 %v628, %v628
  %v1885 = vmul.f32 %v633, %v633
  %v1886 = vmul.f32 %v638, %v638
  %v1887 = vmul.f32 %v643, %v643
  %v1888 = vmul.f32 %v648, %v648
  %v1889 = vmul.f32 %v653, %v653
  %v1890 = vmul.f32 %v658, %v658
  %v1891 = vmul.f32 %v663, %v663
  %v1892 = vmul.f32 %v668, %v668
  %v1893 = vmul.f32 %v673, %v673
  %v1894 = vmul.f32 %v678, %v678
  %v1895 = vmul.f32 %v683, %v683
  %v1896 = vmul.f32 %v688, %v688
  %v1897 = vmul.f32 %v693, %v693
  %v1898 = vmul.f32 %v698, %v698
  %v1899 = vmul.f32 %v703, %v703
  %v1900 = vmul.f32 %v708, %v708
  %v1901 = vmul.f32 %v713, %v713
  %v1902 = vmul.f32 %v718, %v718
  %v1903 = vmul.f32 %v723, %v723
  %v1904 = vmul.f32 %v728, %v728
  %v1905 = vmul.f32 %v733, %v733
  %v1906 = vmul.f32 %v738, %v738
  %v1907 = vmul.f32 %v743, %v743
  %v1908 = vmul.f32 %v748, %v748
  %v1909 = vmul.f32 %v753, %v753
  %v1910 = vmul.f32 %v758, %v758
  %v1911 = vmul.f32 %v763, %v763
  %v1912 = vmul.f32 %v768, %v768
  %v1913 = vmul.f32 %v773, %v773
  %v1914 = vmul.f32 %v778, %v778
  %v1915 = vmul.f32 %v783, %v783
  %v1916 = vmul.f32 %v788, %v788
  %v1917 = vmul.f32 %v793, %v793
  %v1918 = vmul.f32 %v798, %v798
  %v1919 = vmul.f32 %v803, %v803
  %v1920 = vmul.f32 %v808, %v808
  %v1921 = vmul.f32 %v813, %v813
  %v1922 = vmul.f32 %v818, %v818
  %v1923 = vmul.f32 %v823, %v823
  %v1924 = vmul.f32 %v828, %v828
  %v1925 = vmul.f32 %v833, %v833
  %v1926 = vmul.f32 %v838, %v838
  %v1927 = vmul.f32 %v843, %v843
  %v1928 = vmul.f32 %v848, %v848
  %v1929 = vmul.f32 %v853, %v853
  %v1930 = vmul.f32 %v858, %v858
  %v1931 = vmul.f32 %v863, %v863
  %v1932 = vmul.f32 %v868, %v868
  %v1933 = vmul.f32 %v873, %v873
  %v1934 = vmul.f32 %v878, %v878
  %v1935 = vmul.f32 %v883, %v883
  %v1936 = vmul.f32 %v888, %v888
  %v1937 = vmul.f32 %v893, %v893
  %v1938 = vmul.f32 %v898, %v898
  %v1939 = vmul.f32 %v903, %v903
  %v1940 = vmul.f32 %v908, %v908
  %v1941 = vmul.f32 %v913, %v913
  %v1942 = vmul.f32 %v918, %v918
  %v1943 = vmul.f32 %v923, %v923
  %v1944 = vmul.f32 %v928, %v928
  %v1945 = vmul.f32 %v933, %v933
  %v1946 = vmul.f32 %v938, %v938
  %v1947 = vmul.f32 %v943, %v943
  %v1948 = vmul.f32 %v948, %v948
  %v1949 = vmul.f32 %v953, %v953
  %v1950 = vmul.f32 %v958, %v958
  %v1951 = vmul.f32 %v963, %v963
  %v1952 = vmul.f32 %v968, %v968
  %v1953 = vmul.f32 %v973, %v973
  %v1954 = vmul.f32 %v978, %v978
  %v1955 = vmul.f32 %v983, %v983
  %v1956 = vmul.f32 %v988, %v988
  %v1957 = vmul.f32 %v993, %v993
  %v1958 = vmul.f32 %v998, %v998
  %v1959 = vmul.f32 %v1003, %v1003
  %v1960 = vmul.f32 %v1008, %v1008
  %v1961 = vmul.f32 %v1013, %v1013
  %v1962 = vmul.f32 %v1018, %v1018
  %v1963 = vmul.f32 %v1023, %v1023
  %v1964 = vmul.f32 %v1028, %v1028
  %v1965 = vmul.f32 %v1033, %v1033
  %v1966 = vmul.f32 %v1038, %v1038
  %v1967 = vmul.f32 %v1043, %v1043
  %v1968 = vmul.f32 %v1048, %v1048
  %v1969 = vmul.f32 %v1053, %v1053
  %v1970 = vmul.f32 %v1058, %v1058
  %v1971 = vmul.f32 %v1063, %v1063
  %v1972 = vmul.f32 %v1068, %v1068
  %v1973 = vmul.f32 %v1073, %v1073
  %v1974 = vmul.f32 %v1078, %v1078
  %v1975 = vmul.f32 %v1083, %v1083
  %v1976 = vmul.f32 %v1088, %v1088
  %v1977 = vmul.f32 %v1093, %v1093
  %v1978 = vmul.f32 %v1098, %v1098
  %v1979 = vmul.f32 %v1103, %v1103
  %v1980 = vmul.f32 %v1108, %v1108
  %v1981 = vmul.f32 %v1113, %v1113
  %v1982 = vmul.f32 %v1118, %v1118
  %v1983 = vmul.f32 %v1123, %v1123
  %v1984 = vmul.f32 %v1128, %v1128
  %v1985 = vmul.f32 %v1133, %v1133
  %v1986 = vmul.f32 %v1138, %v1138
  %v1987 = vmul.f32 %v1143, %v1143
  %v1988 = vmul.f32 %v1148, %v1148
  %v1989 = vmul.f32 %v1153, %v1153
  %v1990 = vmul.f32 %v1158, %v1158
  %v1991 = vmul.f32 %v1163, %v1163
  %v1992 = vmul.f32 %v1168, %v1168
  %v1993 = vmul.f32 %v1173, %v1173
  %v1994 = vmul.f32 %v1178, %v1178
  %v1995 = vmul.f32 %v1183, %v1183
  %v1996 = vmul.f32 %v1188, %v1188
  %v1997 = vmul.f32 %v1193, %v1193
  %v1998 = vmul.f32 %v1198, %v1198
  %v1999 = vmul.f32 %v1203, %v1203
  %v2000 = vmul.f32 %v1208, %v1208
  %v2001 = vmul.f32 %v1213, %v1213
  %v2002 = vmul.f32 %v1218, %v1218
  %v2003 = vmul.f32 %v1223, %v1223
  %v2004 = vmul.f32 %v1228, %v1228
  %v2005 = vmul.f32 %v1233, %v1233
  %v2006 = vsel %vm1236, %v1878, 0.0
  %2007 = vadd.xlane.f32.xlu0 %v2006
  %v2008 = vpop.xlane.xlu0 %2007
  %v2009 = vsel %vm1236, %v1879, 0.0
  %2010 = vadd.xlane.f32.xlu0 %v2009
  %v2011 = vpop.xlane.xlu0 %2010
  %v2012 = vsel %vm1236, %v1880, 0.0
  %2013 = vadd.xlane.f32.xlu0 %v2012
  %v2014 = vpop.xlane.xlu0 %2013
  %v2015 = vsel %vm1236, %v1881, 0.0
  %2016 = vadd.xlane.f32.xlu0 %v2015
  %v2017 = vpop.xlane.xlu0 %2016
  %v2018 = vsel %vm1236, %v1882, 0.0
  %2019 = vadd.xlane.f32.xlu0 %v2018
  %v2020 = vpop.xlane.xlu0 %2019
  %v2021 = vsel %vm1236, %v1883, 0.0
  %2022 = vadd.xlane.f32.xlu0 %v2021
  %v2023 = vpop.xlane.xlu0 %2022
  %v2024 = vsel %vm1236, %v1884, 0.0
  %2025 = vadd.xlane.f32.xlu0 %v2024
  %v2026 = vpop.xlane.xlu0 %2025
  %v2027 = vsel %vm1236, %v1885, 0.0
  %2028 = vadd.xlane.f32.xlu0 %v2027
  %v2029 = vpop.xlane.xlu0 %2028
  %v2030 = vsel %vm1236, %v1886, 0.0
  %2031 = vadd.xlane.f32.xlu0 %v2030
  %v2032 = vpop.xlane.xlu0 %2031
  %v2033 = vsel %vm1236, %v1887, 0.0
  %2034 = vadd.xlane.f32.xlu0 %v2033
  %v2035 = vpop.xlane.xlu0 %2034
  %v2036 = vsel %vm1236, %v1888, 0.0
  %2037 = vadd.xlane.f32.xlu0 %v2036
  %v2038 = vpop.xlane.xlu0 %2037
  %v2039 = vsel %vm1236, %v1889, 0.0
  %2040 = vadd.xlane.f32.xlu0 %v2039
  %v2041 = vpop.xlane.xlu0 %2040
  %v2042 = vsel %vm1236, %v1890, 0.0
  %2043 = vadd.xlane.f32.xlu0 %v2042
  %v2044 = vpop.xlane.xlu0 %2043
  %v2045 = vsel %vm1236, %v1891, 0.0
  %2046 = vadd.xlane.f32.xlu0 %v2045
  %v2047 = vpop.xlane.xlu0 %2046
  %v2048 = vsel %vm1236, %v1892, 0.0
  %2049 = vadd.xlane.f32.xlu0 %v2048
  %v2050 = vpop.xlane.xlu0 %2049
  %v2051 = vsel %vm1236, %v1893, 0.0
  %2052 = vadd.xlane.f32.xlu0 %v2051
  %v2053 = vpop.xlane.xlu0 %2052
  %v2054 = vsel %vm1236, %v1894, 0.0
  %2055 = vadd.xlane.f32.xlu0 %v2054
  %v2056 = vpop.xlane.xlu0 %2055
  %v2057 = vsel %vm1236, %v1895, 0.0
  %2058 = vadd.xlane.f32.xlu0 %v2057
  %v2059 = vpop.xlane.xlu0 %2058
  %v2060 = vsel %vm1236, %v1896, 0.0
  %2061 = vadd.xlane.f32.xlu0 %v2060
  %v2062 = vpop.xlane.xlu0 %2061
  %v2063 = vsel %vm1236, %v1897, 0.0
  %2064 = vadd.xlane.f32.xlu0 %v2063
  %v2065 = vpop.xlane.xlu0 %2064
  %v2066 = vsel %vm1236, %v1898, 0.0
  %2067 = vadd.xlane.f32.xlu0 %v2066
  %v2068 = vpop.xlane.xlu0 %2067
  %v2069 = vsel %vm1236, %v1899, 0.0
  %2070 = vadd.xlane.f32.xlu0 %v2069
  %v2071 = vpop.xlane.xlu0 %2070
  %v2072 = vsel %vm1236, %v1900, 0.0
  %2073 = vadd.xlane.f32.xlu0 %v2072
  %v2074 = vpop.xlane.xlu0 %2073
  %v2075 = vsel %vm1236, %v1901, 0.0
  %2076 = vadd.xlane.f32.xlu0 %v2075
  %v2077 = vpop.xlane.xlu0 %2076
  %v2078 = vsel %vm1236, %v1902, 0.0
  %2079 = vadd.xlane.f32.xlu0 %v2078
  %v2080 = vpop.xlane.xlu0 %2079
  %v2081 = vsel %vm1236, %v1903, 0.0
  %2082 = vadd.xlane.f32.xlu0 %v2081
  %v2083 = vpop.xlane.xlu0 %2082
  %v2084 = vsel %vm1236, %v1904, 0.0
  %2085 = vadd.xlane.f32.xlu0 %v2084
  %v2086 = vpop.xlane.xlu0 %2085
  %v2087 = vsel %vm1236, %v1905, 0.0
  %2088 = vadd.xlane.f32.xlu0 %v2087
  %v2089 = vpop.xlane.xlu0 %2088
  %v2090 = vsel %vm1236, %v1906, 0.0
  %2091 = vadd.xlane.f32.xlu0 %v2090
  %v2092 = vpop.xlane.xlu0 %2091
  %v2093 = vsel %vm1236, %v1907, 0.0
  %2094 = vadd.xlane.f32.xlu0 %v2093
  %v2095 = vpop.xlane.xlu0 %2094
  %v2096 = vsel %vm1236, %v1908, 0.0
  %2097 = vadd.xlane.f32.xlu0 %v2096
  %v2098 = vpop.xlane.xlu0 %2097
  %v2099 = vsel %vm1236, %v1909, 0.0
  %2100 = vadd.xlane.f32.xlu0 %v2099
  %v2101 = vpop.xlane.xlu0 %2100
  %v2102 = vsel %vm1236, %v1910, 0.0
  %2103 = vadd.xlane.f32.xlu0 %v2102
  %v2104 = vpop.xlane.xlu0 %2103
  %v2105 = vsel %vm1236, %v1911, 0.0
  %2106 = vadd.xlane.f32.xlu0 %v2105
  %v2107 = vpop.xlane.xlu0 %2106
  %v2108 = vsel %vm1236, %v1912, 0.0
  %2109 = vadd.xlane.f32.xlu0 %v2108
  %v2110 = vpop.xlane.xlu0 %2109
  %v2111 = vsel %vm1236, %v1913, 0.0
  %2112 = vadd.xlane.f32.xlu0 %v2111
  %v2113 = vpop.xlane.xlu0 %2112
  %v2114 = vsel %vm1236, %v1914, 0.0
  %2115 = vadd.xlane.f32.xlu0 %v2114
  %v2116 = vpop.xlane.xlu0 %2115
  %v2117 = vsel %vm1236, %v1915, 0.0
  %2118 = vadd.xlane.f32.xlu0 %v2117
  %v2119 = vpop.xlane.xlu0 %2118
  %v2120 = vsel %vm1236, %v1916, 0.0
  %2121 = vadd.xlane.f32.xlu0 %v2120
  %v2122 = vpop.xlane.xlu0 %2121
  %v2123 = vsel %vm1236, %v1917, 0.0
  %2124 = vadd.xlane.f32.xlu0 %v2123
  %v2125 = vpop.xlane.xlu0 %2124
  %v2126 = vsel %vm1236, %v1918, 0.0
  %2127 = vadd.xlane.f32.xlu0 %v2126
  %v2128 = vpop.xlane.xlu0 %2127
  %v2129 = vsel %vm1236, %v1919, 0.0
  %2130 = vadd.xlane.f32.xlu0 %v2129
  %v2131 = vpop.xlane.xlu0 %2130
  %v2132 = vsel %vm1236, %v1920, 0.0
  %2133 = vadd.xlane.f32.xlu0 %v2132
  %v2134 = vpop.xlane.xlu0 %2133
  %v2135 = vsel %vm1236, %v1921, 0.0
  %2136 = vadd.xlane.f32.xlu0 %v2135
  %v2137 = vpop.xlane.xlu0 %2136
  %v2138 = vsel %vm1236, %v1922, 0.0
  %2139 = vadd.xlane.f32.xlu0 %v2138
  %v2140 = vpop.xlane.xlu0 %2139
  %v2141 = vsel %vm1236, %v1923, 0.0
  %2142 = vadd.xlane.f32.xlu0 %v2141
  %v2143 = vpop.xlane.xlu0 %2142
  %v2144 = vsel %vm1236, %v1924, 0.0
  %2145 = vadd.xlane.f32.xlu0 %v2144
  %v2146 = vpop.xlane.xlu0 %2145
  %v2147 = vsel %vm1236, %v1925, 0.0
  %2148 = vadd.xlane.f32.xlu0 %v2147
  %v2149 = vpop.xlane.xlu0 %2148
  %v2150 = vsel %vm1236, %v1926, 0.0
  %2151 = vadd.xlane.f32.xlu0 %v2150
  %v2152 = vpop.xlane.xlu0 %2151
  %v2153 = vsel %vm1236, %v1927, 0.0
  %2154 = vadd.xlane.f32.xlu0 %v2153
  %v2155 = vpop.xlane.xlu0 %2154
  %v2156 = vsel %vm1236, %v1928, 0.0
  %2157 = vadd.xlane.f32.xlu0 %v2156
  %v2158 = vpop.xlane.xlu0 %2157
  %v2159 = vsel %vm1236, %v1929, 0.0
  %2160 = vadd.xlane.f32.xlu0 %v2159
  %v2161 = vpop.xlane.xlu0 %2160
  %v2162 = vsel %vm1236, %v1930, 0.0
  %2163 = vadd.xlane.f32.xlu0 %v2162
  %v2164 = vpop.xlane.xlu0 %2163
  %v2165 = vsel %vm1236, %v1931, 0.0
  %2166 = vadd.xlane.f32.xlu0 %v2165
  %v2167 = vpop.xlane.xlu0 %2166
  %v2168 = vsel %vm1236, %v1932, 0.0
  %2169 = vadd.xlane.f32.xlu0 %v2168
  %v2170 = vpop.xlane.xlu0 %2169
  %v2171 = vsel %vm1236, %v1933, 0.0
  %2172 = vadd.xlane.f32.xlu0 %v2171
  %v2173 = vpop.xlane.xlu0 %2172
  %v2174 = vsel %vm1236, %v1934, 0.0
  %2175 = vadd.xlane.f32.xlu0 %v2174
  %v2176 = vpop.xlane.xlu0 %2175
  %v2177 = vsel %vm1236, %v1935, 0.0
  %2178 = vadd.xlane.f32.xlu0 %v2177
  %v2179 = vpop.xlane.xlu0 %2178
  %v2180 = vsel %vm1236, %v1936, 0.0
  %2181 = vadd.xlane.f32.xlu0 %v2180
  %v2182 = vpop.xlane.xlu0 %2181
  %v2183 = vsel %vm1236, %v1937, 0.0
  %2184 = vadd.xlane.f32.xlu0 %v2183
  %v2185 = vpop.xlane.xlu0 %2184
  %v2186 = vsel %vm1236, %v1938, 0.0
  %2187 = vadd.xlane.f32.xlu0 %v2186
  %v2188 = vpop.xlane.xlu0 %2187
  %v2189 = vsel %vm1236, %v1939, 0.0
  %2190 = vadd.xlane.f32.xlu0 %v2189
  %v2191 = vpop.xlane.xlu0 %2190
  %v2192 = vsel %vm1236, %v1940, 0.0
  %2193 = vadd.xlane.f32.xlu0 %v2192
  %v2194 = vpop.xlane.xlu0 %2193
  %v2195 = vsel %vm1236, %v1941, 0.0
  %2196 = vadd.xlane.f32.xlu0 %v2195
  %v2197 = vpop.xlane.xlu0 %2196
  %v2198 = vsel %vm1236, %v1942, 0.0
  %2199 = vadd.xlane.f32.xlu0 %v2198
  %v2200 = vpop.xlane.xlu0 %2199
  %v2201 = vsel %vm1236, %v1943, 0.0
  %2202 = vadd.xlane.f32.xlu0 %v2201
  %v2203 = vpop.xlane.xlu0 %2202
  %v2204 = vsel %vm1236, %v1944, 0.0
  %2205 = vadd.xlane.f32.xlu0 %v2204
  %v2206 = vpop.xlane.xlu0 %2205
  %v2207 = vsel %vm1236, %v1945, 0.0
  %2208 = vadd.xlane.f32.xlu0 %v2207
  %v2209 = vpop.xlane.xlu0 %2208
  %v2210 = vsel %vm1236, %v1946, 0.0
  %2211 = vadd.xlane.f32.xlu0 %v2210
  %v2212 = vpop.xlane.xlu0 %2211
  %v2213 = vsel %vm1236, %v1947, 0.0
  %2214 = vadd.xlane.f32.xlu0 %v2213
  %v2215 = vpop.xlane.xlu0 %2214
  %v2216 = vsel %vm1236, %v1948, 0.0
  %2217 = vadd.xlane.f32.xlu0 %v2216
  %v2218 = vpop.xlane.xlu0 %2217
  %v2219 = vsel %vm1236, %v1949, 0.0
  %2220 = vadd.xlane.f32.xlu0 %v2219
  %v2221 = vpop.xlane.xlu0 %2220
  %v2222 = vsel %vm1236, %v1950, 0.0
  %2223 = vadd.xlane.f32.xlu0 %v2222
  %v2224 = vpop.xlane.xlu0 %2223
  %v2225 = vsel %vm1236, %v1951, 0.0
  %2226 = vadd.xlane.f32.xlu0 %v2225
  %v2227 = vpop.xlane.xlu0 %2226
  %v2228 = vsel %vm1236, %v1952, 0.0
  %2229 = vadd.xlane.f32.xlu0 %v2228
  %v2230 = vpop.xlane.xlu0 %2229
  %v2231 = vsel %vm1236, %v1953, 0.0
  %2232 = vadd.xlane.f32.xlu0 %v2231
  %v2233 = vpop.xlane.xlu0 %2232
  %v2234 = vsel %vm1236, %v1954, 0.0
  %2235 = vadd.xlane.f32.xlu0 %v2234
  %v2236 = vpop.xlane.xlu0 %2235
  %v2237 = vsel %vm1236, %v1955, 0.0
  %2238 = vadd.xlane.f32.xlu0 %v2237
  %v2239 = vpop.xlane.xlu0 %2238
  %v2240 = vsel %vm1236, %v1956, 0.0
  %2241 = vadd.xlane.f32.xlu0 %v2240
  %v2242 = vpop.xlane.xlu0 %2241
  %v2243 = vsel %vm1236, %v1957, 0.0
  %2244 = vadd.xlane.f32.xlu0 %v2243
  %v2245 = vpop.xlane.xlu0 %2244
  %v2246 = vsel %vm1236, %v1958, 0.0
  %2247 = vadd.xlane.f32.xlu0 %v2246
  %v2248 = vpop.xlane.xlu0 %2247
  %v2249 = vsel %vm1236, %v1959, 0.0
  %2250 = vadd.xlane.f32.xlu0 %v2249
  %v2251 = vpop.xlane.xlu0 %2250
  %v2252 = vsel %vm1236, %v1960, 0.0
  %2253 = vadd.xlane.f32.xlu0 %v2252
  %v2254 = vpop.xlane.xlu0 %2253
  %v2255 = vsel %vm1236, %v1961, 0.0
  %2256 = vadd.xlane.f32.xlu0 %v2255
  %v2257 = vpop.xlane.xlu0 %2256
  %v2258 = vsel %vm1236, %v1962, 0.0
  %2259 = vadd.xlane.f32.xlu0 %v2258
  %v2260 = vpop.xlane.xlu0 %2259
  %v2261 = vsel %vm1236, %v1963, 0.0
  %2262 = vadd.xlane.f32.xlu0 %v2261
  %v2263 = vpop.xlane.xlu0 %2262
  %v2264 = vsel %vm1236, %v1964, 0.0
  %2265 = vadd.xlane.f32.xlu0 %v2264
  %v2266 = vpop.xlane.xlu0 %2265
  %v2267 = vsel %vm1236, %v1965, 0.0
  %2268 = vadd.xlane.f32.xlu0 %v2267
  %v2269 = vpop.xlane.xlu0 %2268
  %v2270 = vsel %vm1236, %v1966, 0.0
  %2271 = vadd.xlane.f32.xlu0 %v2270
  %v2272 = vpop.xlane.xlu0 %2271
  %v2273 = vsel %vm1236, %v1967, 0.0
  %2274 = vadd.xlane.f32.xlu0 %v2273
  %v2275 = vpop.xlane.xlu0 %2274
  %v2276 = vsel %vm1236, %v1968, 0.0
  %2277 = vadd.xlane.f32.xlu0 %v2276
  %v2278 = vpop.xlane.xlu0 %2277
  %v2279 = vsel %vm1236, %v1969, 0.0
  %2280 = vadd.xlane.f32.xlu0 %v2279
  %v2281 = vpop.xlane.xlu0 %2280
  %v2282 = vsel %vm1236, %v1970, 0.0
  %2283 = vadd.xlane.f32.xlu0 %v2282
  %v2284 = vpop.xlane.xlu0 %2283
  %v2285 = vsel %vm1236, %v1971, 0.0
  %2286 = vadd.xlane.f32.xlu0 %v2285
  %v2287 = vpop.xlane.xlu0 %2286
  %v2288 = vsel %vm1236, %v1972, 0.0
  %2289 = vadd.xlane.f32.xlu0 %v2288
  %v2290 = vpop.xlane.xlu0 %2289
  %v2291 = vsel %vm1236, %v1973, 0.0
  %2292 = vadd.xlane.f32.xlu0 %v2291
  %v2293 = vpop.xlane.xlu0 %2292
  %v2294 = vsel %vm1236, %v1974, 0.0
  %2295 = vadd.xlane.f32.xlu0 %v2294
  %v2296 = vpop.xlane.xlu0 %2295
  %v2297 = vsel %vm1236, %v1975, 0.0
  %2298 = vadd.xlane.f32.xlu0 %v2297
  %v2299 = vpop.xlane.xlu0 %2298
  %v2300 = vsel %vm1236, %v1976, 0.0
  %2301 = vadd.xlane.f32.xlu0 %v2300
  %v2302 = vpop.xlane.xlu0 %2301
  %v2303 = vsel %vm1236, %v1977, 0.0
  %2304 = vadd.xlane.f32.xlu0 %v2303
  %v2305 = vpop.xlane.xlu0 %2304
  %v2306 = vsel %vm1236, %v1978, 0.0
  %2307 = vadd.xlane.f32.xlu0 %v2306
  %v2308 = vpop.xlane.xlu0 %2307
  %v2309 = vsel %vm1236, %v1979, 0.0
  %2310 = vadd.xlane.f32.xlu0 %v2309
  %v2311 = vpop.xlane.xlu0 %2310
  %v2312 = vsel %vm1236, %v1980, 0.0
  %2313 = vadd.xlane.f32.xlu0 %v2312
  %v2314 = vpop.xlane.xlu0 %2313
  %v2315 = vsel %vm1236, %v1981, 0.0
  %2316 = vadd.xlane.f32.xlu0 %v2315
  %v2317 = vpop.xlane.xlu0 %2316
  %v2318 = vsel %vm1236, %v1982, 0.0
  %2319 = vadd.xlane.f32.xlu0 %v2318
  %v2320 = vpop.xlane.xlu0 %2319
  %v2321 = vsel %vm1236, %v1983, 0.0
  %2322 = vadd.xlane.f32.xlu0 %v2321
  %v2323 = vpop.xlane.xlu0 %2322
  %v2324 = vsel %vm1236, %v1984, 0.0
  %2325 = vadd.xlane.f32.xlu0 %v2324
  %v2326 = vpop.xlane.xlu0 %2325
  %v2327 = vsel %vm1236, %v1985, 0.0
  %2328 = vadd.xlane.f32.xlu0 %v2327
  %v2329 = vpop.xlane.xlu0 %2328
  %v2330 = vsel %vm1236, %v1986, 0.0
  %2331 = vadd.xlane.f32.xlu0 %v2330
  %v2332 = vpop.xlane.xlu0 %2331
  %v2333 = vsel %vm1236, %v1987, 0.0
  %2334 = vadd.xlane.f32.xlu0 %v2333
  %v2335 = vpop.xlane.xlu0 %2334
  %v2336 = vsel %vm1236, %v1988, 0.0
  %2337 = vadd.xlane.f32.xlu0 %v2336
  %v2338 = vpop.xlane.xlu0 %2337
  %v2339 = vsel %vm1236, %v1989, 0.0
  %2340 = vadd.xlane.f32.xlu0 %v2339
  %v2341 = vpop.xlane.xlu0 %2340
  %v2342 = vsel %vm1236, %v1990, 0.0
  %2343 = vadd.xlane.f32.xlu0 %v2342
  %v2344 = vpop.xlane.xlu0 %2343
  %v2345 = vsel %vm1236, %v1991, 0.0
  %2346 = vadd.xlane.f32.xlu0 %v2345
  %v2347 = vpop.xlane.xlu0 %2346
  %v2348 = vsel %vm1236, %v1992, 0.0
  %2349 = vadd.xlane.f32.xlu0 %v2348
  %v2350 = vpop.xlane.xlu0 %2349
  %v2351 = vsel %vm1236, %v1993, 0.0
  %2352 = vadd.xlane.f32.xlu0 %v2351
  %v2353 = vpop.xlane.xlu0 %2352
  %v2354 = vsel %vm1236, %v1994, 0.0
  %2355 = vadd.xlane.f32.xlu0 %v2354
  %v2356 = vpop.xlane.xlu0 %2355
  %v2357 = vsel %vm1236, %v1995, 0.0
  %2358 = vadd.xlane.f32.xlu0 %v2357
  %v2359 = vpop.xlane.xlu0 %2358
  %v2360 = vsel %vm1236, %v1996, 0.0
  %2361 = vadd.xlane.f32.xlu0 %v2360
  %v2362 = vpop.xlane.xlu0 %2361
  %v2363 = vsel %vm1236, %v1997, 0.0
  %2364 = vadd.xlane.f32.xlu0 %v2363
  %v2365 = vpop.xlane.xlu0 %2364
  %v2366 = vsel %vm1236, %v1998, 0.0
  %2367 = vadd.xlane.f32.xlu0 %v2366
  %v2368 = vpop.xlane.xlu0 %2367
  %v2369 = vsel %vm1236, %v1999, 0.0
  %2370 = vadd.xlane.f32.xlu0 %v2369
  %v2371 = vpop.xlane.xlu0 %2370
  %v2372 = vsel %vm1236, %v2000, 0.0
  %2373 = vadd.xlane.f32.xlu0 %v2372
  %v2374 = vpop.xlane.xlu0 %2373
  %v2375 = vsel %vm1236, %v2001, 0.0
  %2376 = vadd.xlane.f32.xlu0 %v2375
  %v2377 = vpop.xlane.xlu0 %2376
  %v2378 = vsel %vm1236, %v2002, 0.0
  %2379 = vadd.xlane.f32.xlu0 %v2378
  %v2380 = vpop.xlane.xlu0 %2379
  %v2381 = vsel %vm1236, %v2003, 0.0
  %2382 = vadd.xlane.f32.xlu0 %v2381
  %v2383 = vpop.xlane.xlu0 %2382
  %v2384 = vsel %vm1236, %v2004, 0.0
  %2385 = vadd.xlane.f32.xlu0 %v2384
  %v2386 = vpop.xlane.xlu0 %2385
  %v2387 = vsel %vm1236, %v2005, 0.0
  %2388 = vadd.xlane.f32.xlu0 %v2387
  %v2389 = vpop.xlane.xlu0 %2388
  %2390 = vst.msk [vmem:[%s4] sm:$0xff] %vm1749, %v2008
  %2391 = vst.msk [vmem:[%s4 + $0x8] sm:$0xff] %vm1749, %v2011
  %2392 = vst.msk [vmem:[%s4 + $0x10] sm:$0xff] %vm1749, %v2014
  %2393 = vst.msk [vmem:[%s4 + $0x18] sm:$0xff] %vm1749, %v2017
  %2394 = vst.msk [vmem:[%s4 + $0x20] sm:$0xff] %vm1749, %v2020
  %2395 = vst.msk [vmem:[%s4 + $0x28] sm:$0xff] %vm1749, %v2023
  %2396 = vst.msk [vmem:[%s4 + $0x30] sm:$0xff] %vm1749, %v2026
  %2397 = vst.msk [vmem:[%s4 + $0x38] sm:$0xff] %vm1749, %v2029
  %2398 = vst.msk [vmem:[%s4 + $0x40] sm:$0xff] %vm1749, %v2032
  %2399 = vst.msk [vmem:[%s4 + $0x48] sm:$0xff] %vm1749, %v2035
  %2400 = vst.msk [vmem:[%s4 + $0x50] sm:$0xff] %vm1749, %v2038
  %2401 = vst.msk [vmem:[%s4 + $0x58] sm:$0xff] %vm1749, %v2041
  %2402 = vst.msk [vmem:[%s4 + $0x60] sm:$0xff] %vm1749, %v2044
  %2403 = vst.msk [vmem:[%s4 + $0x68] sm:$0xff] %vm1749, %v2047
  %2404 = vst.msk [vmem:[%s4 + $0x70] sm:$0xff] %vm1749, %v2050
  %2405 = vst.msk [vmem:[%s4 + $0x78] sm:$0xff] %vm1749, %v2053
  %2406 = vst.msk [vmem:[%s4 + $0x80] sm:$0xff] %vm1749, %v2056
  %2407 = vst.msk [vmem:[%s4 + $0x88] sm:$0xff] %vm1749, %v2059
  %2408 = vst.msk [vmem:[%s4 + $0x90] sm:$0xff] %vm1749, %v2062
  %2409 = vst.msk [vmem:[%s4 + $0x98] sm:$0xff] %vm1749, %v2065
  %2410 = vst.msk [vmem:[%s4 + $0xa0] sm:$0xff] %vm1749, %v2068
  %2411 = vst.msk [vmem:[%s4 + $0xa8] sm:$0xff] %vm1749, %v2071
  %2412 = vst.msk [vmem:[%s4 + $0xb0] sm:$0xff] %vm1749, %v2074
  %2413 = vst.msk [vmem:[%s4 + $0xb8] sm:$0xff] %vm1749, %v2077
  %2414 = vst.msk [vmem:[%s4 + $0xc0] sm:$0xff] %vm1749, %v2080
  %2415 = vst.msk [vmem:[%s4 + $0xc8] sm:$0xff] %vm1749, %v2083
  %2416 = vst.msk [vmem:[%s4 + $0xd0] sm:$0xff] %vm1749, %v2086
  %2417 = vst.msk [vmem:[%s4 + $0xd8] sm:$0xff] %vm1749, %v2089
  %2418 = vst.msk [vmem:[%s4 + $0xe0] sm:$0xff] %vm1749, %v2092
  %2419 = vst.msk [vmem:[%s4 + $0xe8] sm:$0xff] %vm1749, %v2095
  %2420 = vst.msk [vmem:[%s4 + $0xf0] sm:$0xff] %vm1749, %v2098
  %2421 = vst.msk [vmem:[%s4 + $0xf8] sm:$0xff] %vm1749, %v2101
  %2422 = vst.msk [vmem:[%s4 + $0x100] sm:$0xff] %vm1749, %v2104
  %2423 = vst.msk [vmem:[%s4 + $0x108] sm:$0xff] %vm1749, %v2107
  %2424 = vst.msk [vmem:[%s4 + $0x110] sm:$0xff] %vm1749, %v2110
  %2425 = vst.msk [vmem:[%s4 + $0x118] sm:$0xff] %vm1749, %v2113
  %2426 = vst.msk [vmem:[%s4 + $0x120] sm:$0xff] %vm1749, %v2116
  %2427 = vst.msk [vmem:[%s4 + $0x128] sm:$0xff] %vm1749, %v2119
  %2428 = vst.msk [vmem:[%s4 + $0x130] sm:$0xff] %vm1749, %v2122
  %2429 = vst.msk [vmem:[%s4 + $0x138] sm:$0xff] %vm1749, %v2125
  %2430 = vst.msk [vmem:[%s4 + $0x140] sm:$0xff] %vm1749, %v2128
  %2431 = vst.msk [vmem:[%s4 + $0x148] sm:$0xff] %vm1749, %v2131
  %2432 = vst.msk [vmem:[%s4 + $0x150] sm:$0xff] %vm1749, %v2134
  %2433 = vst.msk [vmem:[%s4 + $0x158] sm:$0xff] %vm1749, %v2137
  %2434 = vst.msk [vmem:[%s4 + $0x160] sm:$0xff] %vm1749, %v2140
  %2435 = vst.msk [vmem:[%s4 + $0x168] sm:$0xff] %vm1749, %v2143
  %2436 = vst.msk [vmem:[%s4 + $0x170] sm:$0xff] %vm1749, %v2146
  %2437 = vst.msk [vmem:[%s4 + $0x178] sm:$0xff] %vm1749, %v2149
  %2438 = vst.msk [vmem:[%s4 + $0x180] sm:$0xff] %vm1749, %v2152
  %2439 = vst.msk [vmem:[%s4 + $0x188] sm:$0xff] %vm1749, %v2155
  %2440 = vst.msk [vmem:[%s4 + $0x190] sm:$0xff] %vm1749, %v2158
  %2441 = vst.msk [vmem:[%s4 + $0x198] sm:$0xff] %vm1749, %v2161
  %2442 = vst.msk [vmem:[%s4 + $0x1a0] sm:$0xff] %vm1749, %v2164
  %2443 = vst.msk [vmem:[%s4 + $0x1a8] sm:$0xff] %vm1749, %v2167
  %2444 = vst.msk [vmem:[%s4 + $0x1b0] sm:$0xff] %vm1749, %v2170
  %2445 = vst.msk [vmem:[%s4 + $0x1b8] sm:$0xff] %vm1749, %v2173
  %2446 = vst.msk [vmem:[%s4 + $0x1c0] sm:$0xff] %vm1749, %v2176
  %2447 = vst.msk [vmem:[%s4 + $0x1c8] sm:$0xff] %vm1749, %v2179
  %2448 = vst.msk [vmem:[%s4 + $0x1d0] sm:$0xff] %vm1749, %v2182
  %2449 = vst.msk [vmem:[%s4 + $0x1d8] sm:$0xff] %vm1749, %v2185
  %2450 = vst.msk [vmem:[%s4 + $0x1e0] sm:$0xff] %vm1749, %v2188
  %2451 = vst.msk [vmem:[%s4 + $0x1e8] sm:$0xff] %vm1749, %v2191
  %2452 = vst.msk [vmem:[%s4 + $0x1f0] sm:$0xff] %vm1749, %v2194
  %2453 = vst.msk [vmem:[%s4 + $0x1f8] sm:$0xff] %vm1749, %v2197
  %2454 = vst.msk [vmem:[%s4 + $0x200] sm:$0xff] %vm1749, %v2200
  %2455 = vst.msk [vmem:[%s4 + $0x208] sm:$0xff] %vm1749, %v2203
  %2456 = vst.msk [vmem:[%s4 + $0x210] sm:$0xff] %vm1749, %v2206
  %2457 = vst.msk [vmem:[%s4 + $0x218] sm:$0xff] %vm1749, %v2209
  %2458 = vst.msk [vmem:[%s4 + $0x220] sm:$0xff] %vm1749, %v2212
  %2459 = vst.msk [vmem:[%s4 + $0x228] sm:$0xff] %vm1749, %v2215
  %2460 = vst.msk [vmem:[%s4 + $0x230] sm:$0xff] %vm1749, %v2218
  %2461 = vst.msk [vmem:[%s4 + $0x238] sm:$0xff] %vm1749, %v2221
  %2462 = vst.msk [vmem:[%s4 + $0x240] sm:$0xff] %vm1749, %v2224
  %2463 = vst.msk [vmem:[%s4 + $0x248] sm:$0xff] %vm1749, %v2227
  %2464 = vst.msk [vmem:[%s4 + $0x250] sm:$0xff] %vm1749, %v2230
  %2465 = vst.msk [vmem:[%s4 + $0x258] sm:$0xff] %vm1749, %v2233
  %2466 = vst.msk [vmem:[%s4 + $0x260] sm:$0xff] %vm1749, %v2236
  %2467 = vst.msk [vmem:[%s4 + $0x268] sm:$0xff] %vm1749, %v2239
  %2468 = vst.msk [vmem:[%s4 + $0x270] sm:$0xff] %vm1749, %v2242
  %2469 = vst.msk [vmem:[%s4 + $0x278] sm:$0xff] %vm1749, %v2245
  %2470 = vst.msk [vmem:[%s4 + $0x280] sm:$0xff] %vm1749, %v2248
  %2471 = vst.msk [vmem:[%s4 + $0x288] sm:$0xff] %vm1749, %v2251
  %2472 = vst.msk [vmem:[%s4 + $0x290] sm:$0xff] %vm1749, %v2254
  %2473 = vst.msk [vmem:[%s4 + $0x298] sm:$0xff] %vm1749, %v2257
  %2474 = vst.msk [vmem:[%s4 + $0x2a0] sm:$0xff] %vm1749, %v2260
  %2475 = vst.msk [vmem:[%s4 + $0x2a8] sm:$0xff] %vm1749, %v2263
  %2476 = vst.msk [vmem:[%s4 + $0x2b0] sm:$0xff] %vm1749, %v2266
  %2477 = vst.msk [vmem:[%s4 + $0x2b8] sm:$0xff] %vm1749, %v2269
  %2478 = vst.msk [vmem:[%s4 + $0x2c0] sm:$0xff] %vm1749, %v2272
  %2479 = vst.msk [vmem:[%s4 + $0x2c8] sm:$0xff] %vm1749, %v2275
  %2480 = vst.msk [vmem:[%s4 + $0x2d0] sm:$0xff] %vm1749, %v2278
  %2481 = vst.msk [vmem:[%s4 + $0x2d8] sm:$0xff] %vm1749, %v2281
  %2482 = vst.msk [vmem:[%s4 + $0x2e0] sm:$0xff] %vm1749, %v2284
  %2483 = vst.msk [vmem:[%s4 + $0x2e8] sm:$0xff] %vm1749, %v2287
  %2484 = vst.msk [vmem:[%s4 + $0x2f0] sm:$0xff] %vm1749, %v2290
  %2485 = vst.msk [vmem:[%s4 + $0x2f8] sm:$0xff] %vm1749, %v2293
  %2486 = vst.msk [vmem:[%s4 + $0x300] sm:$0xff] %vm1749, %v2296
  %2487 = vst.msk [vmem:[%s4 + $0x308] sm:$0xff] %vm1749, %v2299
  %2488 = vst.msk [vmem:[%s4 + $0x310] sm:$0xff] %vm1749, %v2302
  %2489 = vst.msk [vmem:[%s4 + $0x318] sm:$0xff] %vm1749, %v2305
  %2490 = vst.msk [vmem:[%s4 + $0x320] sm:$0xff] %vm1749, %v2308
  %2491 = vst.msk [vmem:[%s4 + $0x328] sm:$0xff] %vm1749, %v2311
  %2492 = vst.msk [vmem:[%s4 + $0x330] sm:$0xff] %vm1749, %v2314
  %2493 = vst.msk [vmem:[%s4 + $0x338] sm:$0xff] %vm1749, %v2317
  %2494 = vst.msk [vmem:[%s4 + $0x340] sm:$0xff] %vm1749, %v2320
  %2495 = vst.msk [vmem:[%s4 + $0x348] sm:$0xff] %vm1749, %v2323
  %2496 = vst.msk [vmem:[%s4 + $0x350] sm:$0xff] %vm1749, %v2326
  %2497 = vst.msk [vmem:[%s4 + $0x358] sm:$0xff] %vm1749, %v2329
  %2498 = vst.msk [vmem:[%s4 + $0x360] sm:$0xff] %vm1749, %v2332
  %2499 = vst.msk [vmem:[%s4 + $0x368] sm:$0xff] %vm1749, %v2335
  %2500 = vst.msk [vmem:[%s4 + $0x370] sm:$0xff] %vm1749, %v2338
  %2501 = vst.msk [vmem:[%s4 + $0x378] sm:$0xff] %vm1749, %v2341
  %2502 = vst.msk [vmem:[%s4 + $0x380] sm:$0xff] %vm1749, %v2344
  %2503 = vst.msk [vmem:[%s4 + $0x388] sm:$0xff] %vm1749, %v2347
  %2504 = vst.msk [vmem:[%s4 + $0x390] sm:$0xff] %vm1749, %v2350
  %2505 = vst.msk [vmem:[%s4 + $0x398] sm:$0xff] %vm1749, %v2353
  %2506 = vst.msk [vmem:[%s4 + $0x3a0] sm:$0xff] %vm1749, %v2356
  %2507 = vst.msk [vmem:[%s4 + $0x3a8] sm:$0xff] %vm1749, %v2359
  %2508 = vst.msk [vmem:[%s4 + $0x3b0] sm:$0xff] %vm1749, %v2362
  %2509 = vst.msk [vmem:[%s4 + $0x3b8] sm:$0xff] %vm1749, %v2365
  %2510 = vst.msk [vmem:[%s4 + $0x3c0] sm:$0xff] %vm1749, %v2368
  %2511 = vst.msk [vmem:[%s4 + $0x3c8] sm:$0xff] %vm1749, %v2371
  %2512 = vst.msk [vmem:[%s4 + $0x3d0] sm:$0xff] %vm1749, %v2374
  %2513 = vst.msk [vmem:[%s4 + $0x3d8] sm:$0xff] %vm1749, %v2377
  %2514 = vst.msk [vmem:[%s4 + $0x3e0] sm:$0xff] %vm1749, %v2380
  %2515 = vst.msk [vmem:[%s4 + $0x3e8] sm:$0xff] %vm1749, %v2383
  %2516 = vst.msk [vmem:[%s4 + $0x3f0] sm:$0xff] %vm1749, %v2386
  %2517 = vst.msk [vmem:[%s4 + $0x3f8] sm:$0xff] %vm1749, %v2389
  // Predicated region
  $region10: #{generator_forward.9} parent=0 // pred_check
    _
  $region11: #{generator_forward.9} parent=0 // pred_check_branch
    %2519 = sbr.rel (0) target = $region13
  $region12: #{generator_forward.9} parent=0 // pred_region
    _
  $region13: #{generator_forward.9} parent=0 // pred_fallthru
    _
  // Predicated region
  $region14: #{generator_forward.9} parent=0 // pred_check
    _
  $region15: #{generator_forward.9} parent=0 // pred_check_branch
    %2521 = sbr.rel (0) target = $region17
  $region16: #{generator_forward.9} parent=0 // pred_region
    _
  $region17: #{generator_forward.9} parent=0 // pred_fallthru
    _
  // Predicated region
  $region18: #{generator_forward.9} parent=0 // pred_check
    _
  $region19: #{generator_forward.9} parent=0 // pred_check_branch
    %2523 = sbr.rel (0) target = $region21
  $region20: #{generator_forward.9} parent=0 // pred_region
    _
  $region21: #{generator_forward.9} parent=0 // pred_fallthru
    _
  // Predicated region
  $region22: #{generator_forward.9} parent=0 // pred_check
    _
  $region23: #{generator_forward.9} parent=0 // pred_check_branch
    %2525 = sbr.rel (0) target = $region25
  $region24: #{generator_forward.9} parent=0 // pred_region
    _
  $region25: #{generator_forward.9} parent=0 // pred_fallthru
    _
  // Predicated region
  $region26: #{generator_forward.9} parent=0 // pred_check
    _
  $region27: #{generator_forward.9} parent=0 // pred_check_branch
    %2527 = sbr.rel (0) target = $region29
  $region28: #{generator_forward.9} parent=0 // pred_region
    _
  $region29: #{generator_forward.9} parent=0 // pred_fallthru
    _
  // Predicated region
  $region30: #{generator_forward.9} parent=0 // pred_check
    _
  $region31: #{generator_forward.9} parent=0 // pred_check_branch
    %2529 = sbr.rel (0) target = $region33
  $region32: #{generator_forward.9} parent=0 // pred_region
    _
  $region33: #{generator_forward.9} parent=0 // pred_fallthru
    _

// kernel: generator_forward.11
$region0: #{generator_forward.11}
  #allocation0 [shape = 'u32[]', space=smem, size = 0x4, offset = 0x4, fixed_abs, tag = 'smem constant byte address 0x4 - core index']
  #allocation1 [shape = 'u32[144,128]{1,0:T(1,128)}', space=vmem, size = 0x12000, scoped, tag = 'internal scratch']
  %s0 = inlined_call_operand.vmem [shape: f32[4,32,256], index: 0, kind: input, shape index: {}]
  %s1 = inlined_call_operand.vmem [shape: f32[4,256,32], index: 1, kind: input, shape index: {}]
  %s2 = inlined_call_operand.vmem [shape: f32[4,32,32], index: 2, kind: output, shape index: {0}]
  %s3 = inlined_call_operand.vmem [shape: f32[4,32,1], index: 3, kind: output, shape index: {1}]
  %s4 = inlined_call_operand.vmem [shape: f32[4,32,1], index: 4, kind: output, shape index: {2}]
  %5 = xla_tuple %s2, %s3, %s4
  %s6 = sld [smem:[#allocation0]]
  $region57: #{generator_forward.11} parent=0
    _
  %s8 = ssub.s32 1, %s6
  %s9 = scalar_select 0, %s8, %s6
  loop: start=0, step=1, limit=6
  $region2: #{generator_forward.11} parent=0 // loop_pre_header
    _
  $region3: #{generator_forward.11} parent=0 // loop_header
    %s11 = sphi 0, %s15
    %p12 = scmp.ge.s32.totalorder %s11, 6
    %s21 = sphi 0, %s23
    %s24 = sphi 0, %s21
    %s25 = sphi 0, %s24
    %s41 = sphi 0, %s25
    %s47 = sphi 0, %s49
    %s50 = sphi 0, %s47
    %s51 = sphi 0, %s50
    %s67 = sphi 0, %s51
    %s73 = sphi 0, %s75
    %s76 = sphi 0, %s73
    %s77 = sphi 0, %s76
    %s93 = sphi 0, %s77
    %s99 = sphi 0, %s101
    %s102 = sphi 0, %s99
    %s103 = sphi 0, %s102
    %s119 = sphi 0, %s103
    %s125 = sphi 0, %s127
    %s128 = sphi 0, %s125
    %s129 = sphi 0, %s128
    %s145 = sphi 0, %s129
  $region4: #{generator_forward.11} parent=0 // loop_header_branch
    %14 = sbr.rel (%p12) target = $region8
  $region5: #{generator_forward.11} parent=0 // loop_body
    %s16 = ssub.s32 %s11, 1
    %s17 = ssub.s32 %s11, 2
    %s18 = sadd.s32 %s11, 1
    %s19 = ssub.s32 %s11, %s18
    %p20 = scmp.eq.s32.totalorder %s19, 0
    %s22 = sadd.s32 %s21, 1
    %s23 = scalar_select %p20, %s21, %s22
    %p26 = pneg %p20
    %p27 = scmp.eq.s32.totalorder %s11, 3
    %p28 = por %p26, %p27
    %p29 = scmp.ne.s32.totalorder %s21, %s24
    %p30 = scmp.eq.s32.totalorder %s11, 0
    %p31 = por %p29, %p30
    %p32 = scmp.ne.s32.totalorder %s21, %s24
    %p33 = scmp.eq.s32.totalorder %s16, 3
    %p34 = por %p32, %p33
    %p35 = scmp.ne.s32.totalorder %s24, %s25
    %p36 = scmp.eq.s32.totalorder %s16, 0
    %p37 = por %p35, %p36
    %p38 = scmp.ne.s32.totalorder %s24, %s25
    %p39 = scmp.eq.s32.totalorder %s17, 3
    %p40 = por %p38, %p39
    %p42 = scmp.ne.s32.totalorder %s25, %s41
    %p43 = scmp.eq.s32.totalorder %s17, 0
    %p44 = por %p42, %p43
    %s45 = ssub.s32 %s11, %s18
    %p46 = scmp.eq.s32.totalorder %s45, 0
    %s48 = sadd.s32 %s47, 1
    %s49 = scalar_select %p46, %s47, %s48
    %p52 = pneg %p46
    %p53 = scmp.eq.s32.totalorder %s11, 3
    %p54 = por %p52, %p53
    %p55 = scmp.ne.s32.totalorder %s47, %s50
    %p56 = scmp.eq.s32.totalorder %s11, 0
    %p57 = por %p55, %p56
    %p58 = scmp.ne.s32.totalorder %s47, %s50
    %p59 = scmp.eq.s32.totalorder %s16, 3
    %p60 = por %p58, %p59
    %p61 = scmp.ne.s32.totalorder %s50, %s51
    %p62 = scmp.eq.s32.totalorder %s16, 0
    %p63 = por %p61, %p62
    %p64 = scmp.ne.s32.totalorder %s50, %s51
    %p65 = scmp.eq.s32.totalorder %s17, 3
    %p66 = por %p64, %p65
    %p68 = scmp.ne.s32.totalorder %s51, %s67
    %p69 = scmp.eq.s32.totalorder %s17, 0
    %p70 = por %p68, %p69
    %s71 = ssub.s32 %s11, %s18
    %p72 = scmp.eq.s32.totalorder %s71, 0
    %s74 = sadd.s32 %s73, 1
    %s75 = scalar_select %p72, %s73, %s74
    %p78 = pneg %p72
    %p79 = scmp.eq.s32.totalorder %s11, 3
    %p80 = por %p78, %p79
    %p81 = scmp.ne.s32.totalorder %s73, %s76
    %p82 = scmp.eq.s32.totalorder %s11, 0
    %p83 = por %p81, %p82
    %p84 = scmp.ne.s32.totalorder %s73, %s76
    %p85 = scmp.eq.s32.totalorder %s16, 3
    %p86 = por %p84, %p85
    %p87 = scmp.ne.s32.totalorder %s76, %s77
    %p88 = scmp.eq.s32.totalorder %s16, 0
    %p89 = por %p87, %p88
    %p90 = scmp.ne.s32.totalorder %s76, %s77
    %p91 = scmp.eq.s32.totalorder %s17, 3
    %p92 = por %p90, %p91
    %p94 = scmp.ne.s32.totalorder %s77, %s93
    %p95 = scmp.eq.s32.totalorder %s17, 0
    %p96 = por %p94, %p95
    %s97 = ssub.s32 %s11, %s18
    %p98 = scmp.eq.s32.totalorder %s97, 0
    %s100 = sadd.s32 %s99, 1
    %s101 = scalar_select %p98, %s99, %s100
    %p104 = pneg %p98
    %p105 = scmp.eq.s32.totalorder %s11, 3
    %p106 = por %p104, %p105
    %p107 = scmp.ne.s32.totalorder %s99, %s102
    %p108 = scmp.eq.s32.totalorder %s11, 0
    %p109 = por %p107, %p108
    %p110 = scmp.ne.s32.totalorder %s99, %s102
    %p111 = scmp.eq.s32.totalorder %s16, 3
    %p112 = por %p110, %p111
    %p113 = scmp.ne.s32.totalorder %s102, %s103
    %p114 = scmp.eq.s32.totalorder %s16, 0
    %p115 = por %p113, %p114
    %p116 = scmp.ne.s32.totalorder %s102, %s103
    %p117 = scmp.eq.s32.totalorder %s17, 3
    %p118 = por %p116, %p117
    %p120 = scmp.ne.s32.totalorder %s103, %s119
    %p121 = scmp.eq.s32.totalorder %s17, 0
    %p122 = por %p120, %p121
    %s123 = ssub.s32 %s11, %s18
    %p124 = scmp.eq.s32.totalorder %s123, 0
    %s126 = sadd.s32 %s125, 1
    %s127 = scalar_select %p124, %s125, %s126
    %p130 = pneg %p124
    %p131 = scmp.eq.s32.totalorder %s11, 3
    %p132 = por %p130, %p131
    %p133 = scmp.ne.s32.totalorder %s125, %s128
    %p134 = scmp.eq.s32.totalorder %s11, 0
    %p135 = por %p133, %p134
    %p136 = scmp.ne.s32.totalorder %s125, %s128
    %p137 = scmp.eq.s32.totalorder %s16, 3
    %p138 = por %p136, %p137
    %p139 = scmp.ne.s32.totalorder %s128, %s129
    %p140 = scmp.eq.s32.totalorder %s16, 0
    %p141 = por %p139, %p140
    %p142 = scmp.ne.s32.totalorder %s128, %s129
    %p143 = scmp.eq.s32.totalorder %s17, 3
    %p144 = por %p142, %p143
    %p146 = scmp.ne.s32.totalorder %s129, %s145
    %p147 = scmp.eq.s32.totalorder %s17, 0
    %p148 = por %p146, %p147
    %p149 = scmp.le.s32.totalorder 1, %s11
    %p150 = scmp.lt.s32.totalorder %s11, 5
    %p151 = pnand %p149, %p150
    %p152 = pneg %p151
    // Predicated region
    $region9: #{generator_forward.11} parent=5 // pred_check
      _
    $region10: #{generator_forward.11} parent=5 // pred_check_branch
      %154 = sbr.rel (%p151) target = $region12
    $region11: #{generator_forward.11} parent=5 // pred_region
      %s155 = ssub.s32 %s11, 1
    $region12: #{generator_forward.11} parent=5 // pred_fallthru
      _
    %p156 = scmp.lt.s32.totalorder %s11, 4
    // Predicated region
    $region13: #{generator_forward.11} parent=5 // pred_check
      %p157 = pneg %p156
    $region14: #{generator_forward.11} parent=5 // pred_check_branch
      %159 = sbr.rel (%p157) target = $region16
    $region15: #{generator_forward.11} parent=5 // pred_region
      // Predicated region
      $region17: #{generator_forward.11} parent=15 // pred_check
        %p160 = pneg %p31
      $region18: #{generator_forward.11} parent=15 // pred_check_branch
        %162 = sbr.rel (%p160) target = $region20
      $region19: #{generator_forward.11} parent=15 // pred_region
        %p163 = scmp.lt.s32.totalorder %s11, 3
        %s164 = scalar_select %p163, %s11, 3
        %s165 = smul.addr %s164, 8
        %s166 = smul.addr %s165, 8
        %s167 = scalar_lea.vmem %s0, %s166
      $region20: #{generator_forward.11} parent=15 // pred_fallthru
        _
      // Predicated region
      $region21: #{generator_forward.11} parent=15 // pred_check
        %p168 = pneg %p57
      $region22: #{generator_forward.11} parent=15 // pred_check_branch
        %170 = sbr.rel (%p168) target = $region24
      $region23: #{generator_forward.11} parent=15 // pred_region
        %p171 = scmp.lt.s32.totalorder %s11, 3
        %s172 = scalar_select %p171, %s11, 3
        %s173 = smul.addr %s172, 32
        %s174 = smul.addr %s173, 8
        %s175 = scalar_lea.vmem %s1, %s174
      $region24: #{generator_forward.11} parent=15 // pred_fallthru
        _
    $region16: #{generator_forward.11} parent=5 // pred_fallthru
      _
    %p176 = scmp.le.s32.totalorder 1, %s11
    %p177 = scmp.lt.s32.totalorder %s11, 5
    %p178 = pnand %p176, %p177
    %p179 = pneg %p178
    // Predicated region
    $region25: #{generator_forward.11} parent=5 // pred_check
      _
    $region26: #{generator_forward.11} parent=5 // pred_check_branch
      %181 = sbr.rel (%p178) target = $region28
    $region27: #{generator_forward.11} parent=5 // pred_region
      %s182 = ssub.s32 %s11, 1
      %p183 = scmp.lt.s32.totalorder %s16, 3
      %s184 = scalar_select %p183, %s16, 3
      %s185 = smul.addr %s184, 8
      %s186 = smul.addr %s185, 8
      %s187 = scalar_lea.vmem %s0, %s186
      %p188 = pneg %p37
      %p189 = pneg %p34
      %p190 = scmp.lt.s32.totalorder %s16, 3
      %s191 = scalar_select %p190, %s16, 3
      %s192 = smul.addr %s191, 32
      %s193 = smul.addr %s192, 8
      %s194 = scalar_lea.vmem %s1, %s193
      %p195 = pneg %p63
      %p196 = pneg %p60
      %p197 = pneg %p89
      %p198 = pneg %p86
      %p199 = scmp.lt.s32.totalorder %s16, 3
      %s200 = scalar_select %p199, %s16, 3
      %s201 = smul.addr %s200, 4
      %s202 = smul.addr %s201, 8
      %s203 = scalar_lea.vmem %s2, %s202
      %p204 = pneg %p115
      %p205 = pneg %p112
      %p206 = scmp.lt.s32.totalorder %s16, 3
      %s207 = scalar_select %p206, %s16, 3
      %s208 = smul.addr %s207, 4
      %s209 = smul.addr %s208, 8
      %s210 = scalar_lea.vmem %s3, %s209
      %p211 = pneg %p141
      %p212 = pneg %p138
      %p213 = scmp.lt.s32.totalorder %s16, 3
      %s214 = scalar_select %p213, %s16, 3
      %s215 = smul.addr %s214, 4
      %s216 = smul.addr %s215, 8
      %s217 = scalar_lea.vmem %s4, %s216
      %p218 = scmp.lt.s32.totalorder %s16, 3
      %s219 = scalar_select %p218, %s16, 3
      %s220 = smul.addr %s219, 8
      %s221 = smul.addr %s220, 8
      %s222 = scalar_lea.vmem %s0, %s221
      %p223 = scmp.lt.s32.totalorder %s16, 3
      %s224 = scalar_select %p223, %s16, 3
      %s225 = smul.addr %s224, 32
      %s226 = smul.addr %s225, 8
      %s227 = scalar_lea.vmem %s1, %s226
      %p228 = scmp.lt.s32.totalorder %s16, 3
      %s229 = scalar_select %p228, %s16, 3
      %s230 = smul.addr %s229, 4
      %s231 = smul.addr %s230, 8
      %s232 = scalar_lea.vmem %s2, %s231
      %p233 = scmp.lt.s32.totalorder %s16, 3
      %s234 = scalar_select %p233, %s16, 3
      %s235 = smul.addr %s234, 4
      %s236 = smul.addr %s235, 8
      %s237 = scalar_lea.vmem %s3, %s236
      %p238 = scmp.lt.s32.totalorder %s16, 3
      %s239 = scalar_select %p238, %s16, 3
      %s240 = smul.addr %s239, 4
      %s241 = smul.addr %s240, 8
      %s242 = scalar_lea.vmem %s4, %s241
      %v243 = vld [vmem:[%s222] sm:$0xff]
      %v244 = vld [vmem:[%s222 + $0x8] sm:$0xff]
      %v245 = vld [vmem:[%s222 + $0x10] sm:$0xff]
      %v246 = vld [vmem:[%s222 + $0x18] sm:$0xff]
      %v247 = vld [vmem:[%s222 + $0x20] sm:$0xff]
      %v248 = vld [vmem:[%s222 + $0x28] sm:$0xff]
      %v249 = vld [vmem:[%s222 + $0x30] sm:$0xff]
      %v250 = vld [vmem:[%s222 + $0x38] sm:$0xff]
      %v251 = vld [vmem:[%s227] sm:$0xff]
      %v252 = vld [vmem:[%s227 + $0x8] sm:$0xff]
      %v253 = vld [vmem:[%s227 + $0x10] sm:$0xff]
      %v254 = vld [vmem:[%s227 + $0x18] sm:$0xff]
      %v255 = vld [vmem:[%s227 + $0x20] sm:$0xff]
      %v256 = vld [vmem:[%s227 + $0x28] sm:$0xff]
      %v257 = vld [vmem:[%s227 + $0x30] sm:$0xff]
      %v258 = vld [vmem:[%s227 + $0x38] sm:$0xff]
      %v259 = vld [vmem:[%s227 + $0x40] sm:$0xff]
      %v260 = vld [vmem:[%s227 + $0x48] sm:$0xff]
      %v261 = vld [vmem:[%s227 + $0x50] sm:$0xff]
      %v262 = vld [vmem:[%s227 + $0x58] sm:$0xff]
      %v263 = vld [vmem:[%s227 + $0x60] sm:$0xff]
      %v264 = vld [vmem:[%s227 + $0x68] sm:$0xff]
      %v265 = vld [vmem:[%s227 + $0x70] sm:$0xff]
      %v266 = vld [vmem:[%s227 + $0x78] sm:$0xff]
      %v267 = vld [vmem:[%s227 + $0x80] sm:$0xff]
      %v268 = vld [vmem:[%s227 + $0x88] sm:$0xff]
      %v269 = vld [vmem:[%s227 + $0x90] sm:$0xff]
      %v270 = vld [vmem:[%s227 + $0x98] sm:$0xff]
      %v271 = vld [vmem:[%s227 + $0xa0] sm:$0xff]
      %v272 = vld [vmem:[%s227 + $0xa8] sm:$0xff]
      %v273 = vld [vmem:[%s227 + $0xb0] sm:$0xff]
      %v274 = vld [vmem:[%s227 + $0xb8] sm:$0xff]
      %v275 = vld [vmem:[%s227 + $0xc0] sm:$0xff]
      %v276 = vld [vmem:[%s227 + $0xc8] sm:$0xff]
      %v277 = vld [vmem:[%s227 + $0xd0] sm:$0xff]
      %v278 = vld [vmem:[%s227 + $0xd8] sm:$0xff]
      %v279 = vld [vmem:[%s227 + $0xe0] sm:$0xff]
      %v280 = vld [vmem:[%s227 + $0xe8] sm:$0xff]
      %v281 = vld [vmem:[%s227 + $0xf0] sm:$0xff]
      %v282 = vld [vmem:[%s227 + $0xf8] sm:$0xff]
      %283 = vmatprep.subr.mxu0 0.0
      %284 = vmatpush1.msra.mxu0 %v251
      %285 = vmatprep.subr.mxu0 0.0
      %286 = vmatpush1.msra.mxu0 %v252
      %287 = vmatprep.subr.mxu0 0.0
      %288 = vmatpush1.msra.mxu0 %v253
      %289 = vmatprep.subr.mxu0 0.0
      %290 = vmatpush1.msra.mxu0 %v254
      %291 = vmatprep.subr.mxu0 0.0
      %292 = vmatpush1.msra.mxu0 %v255
      %293 = vmatprep.subr.mxu0 0.0
      %294 = vmatpush1.msra.mxu0 %v256
      %295 = vmatprep.subr.mxu0 0.0
      %296 = vmatpush1.msra.mxu0 %v257
      %297 = vmatprep.subr.mxu0 0.0
      %298 = vmatpush1.msra.mxu0 %v258
      %299 = vmatprep.subr.mxu0 0.0
      %300 = vmatpush1.msra.mxu0 %v259
      %301 = vmatprep.subr.mxu0 0.0
      %302 = vmatpush1.msra.mxu0 %v260
      %303 = vmatprep.subr.mxu0 0.0
      %304 = vmatpush1.msra.mxu0 %v261
      %305 = vmatprep.subr.mxu0 0.0
      %306 = vmatpush1.msra.mxu0 %v262
      %307 = vmatprep.subr.mxu0 0.0
      %308 = vmatpush1.msra.mxu0 %v263
      %309 = vmatprep.subr.mxu0 0.0
      %310 = vmatpush1.msra.mxu0 %v264
      %311 = vmatprep.subr.mxu0 0.0
      %312 = vmatpush1.msra.mxu0 %v265
      %313 = vmatprep.subr.mxu0 0.0
      %314 = vmatpush1.msra.mxu0 %v266
      %315 = vmatprep.subr.mxu0 0.0
      %316 = vmatpush1.msra.mxu0 %v267
      %317 = vmatprep.subr.mxu0 0.0
      %318 = vmatpush1.msra.mxu0 %v268
      %319 = vmatprep.subr.mxu0 0.0
      %320 = vmatpush1.msra.mxu0 %v269
      %321 = vmatprep.subr.mxu0 0.0
      %322 = vmatpush1.msra.mxu0 %v270
      %323 = vmatprep.subr.mxu0 0.0
      %324 = vmatpush1.msra.mxu0 %v271
      %325 = vmatprep.subr.mxu0 0.0
      %326 = vmatpush1.msra.mxu0 %v272
      %327 = vmatprep.subr.mxu0 0.0
      %328 = vmatpush1.msra.mxu0 %v273
      %329 = vmatprep.subr.mxu0 0.0
      %330 = vmatpush1.msra.mxu0 %v274
      %331 = vmatprep.subr.mxu0 0.0
      %332 = vmatpush1.msra.mxu0 %v275
      %333 = vmatprep.subr.mxu0 0.0
      %334 = vmatpush1.msra.mxu0 %v276
      %335 = vmatprep.subr.mxu0 0.0
      %336 = vmatpush1.msra.mxu0 %v277
      %337 = vmatprep.subr.mxu0 0.0
      %338 = vmatpush1.msra.mxu0 %v278
      %339 = vmatprep.subr.mxu0 0.0
      %340 = vmatpush1.msra.mxu0 %v279
      %341 = vmatprep.subr.mxu0 0.0
      %342 = vmatpush1.msra.mxu0 %v280
      %343 = vmatprep.subr.mxu0 0.0
      %344 = vmatpush1.msra.mxu0 %v281
      %345 = vmatprep.subr.mxu0 0.0
      %346 = vmatpush1.msra.mxu0 %v282
      %347 = vmatprep.mubr.f32.mxu0 %v244
      %348 = vmatmul.mubr.f32.gmra.mrb[0].mxu0 %v243
      %v349 = vpop.f32.mrb[0].mxu0
      %v350 = vadd.f32 0.0, %v349
      %v351 = vpop.f32.mrb[0].mxu0
      %352 = vmatprep.mubr.f32.mxu0 %v246
      %353 = vmatmul.mubr.f32.gmra.mrb[0].mxu0 %v245
      %v354 = vpop.f32.mrb[0].mxu0
      %v355 = vadd.f32 0.0, %v354
      %v356 = vpop.f32.mrb[0].mxu0
      %357 = vmatprep.mubr.f32.mxu0 %v248
      %358 = vmatmul.mubr.f32.gmra.mrb[0].mxu0 %v247
      %v359 = vpop.f32.mrb[0].mxu0
      %v360 = vadd.f32 0.0, %v359
      %v361 = vpop.f32.mrb[0].mxu0
      %362 = vmatprep.mubr.f32.mxu0 %v250
      %363 = vmatmul.mubr.f32.gmra.mrb[0].mxu0 %v249
      %v364 = vpop.f32.mrb[0].mxu0
      %v365 = vadd.f32 0.0, %v364
      %v366 = vpop.f32.mrb[0].mxu0
      %367 = vdwg.mxu0
      %vm368 = vcmask 261120
      %369 = vst.msk [vmem:[%s232] sm:$0xff] %vm368, %v350
      %370 = vst.msk [vmem:[%s232 + $0x8] sm:$0xff] %vm368, %v355
      %371 = vst.msk [vmem:[%s232 + $0x10] sm:$0xff] %vm368, %v360
      %372 = vst.msk [vmem:[%s232 + $0x18] sm:$0xff] %vm368, %v365
      %v373 = vsel %vm368, %v350, 0.0
      %374 = vadd.xlane.f32.xlu0 %v373
      %v375 = vpop.xlane.xlu0 %374
      %v376 = vsel %vm368, %v355, 0.0
      %377 = vadd.xlane.f32.xlu0 %v376
      %v378 = vpop.xlane.xlu0 %377
      %v379 = vsel %vm368, %v360, 0.0
      %380 = vadd.xlane.f32.xlu0 %v379
      %v381 = vpop.xlane.xlu0 %380
      %v382 = vsel %vm368, %v365, 0.0
      %383 = vadd.xlane.f32.xlu0 %v382
      %v384 = vpop.xlane.xlu0 %383
      %vm385 = vcmask 7168
      %386 = vst.msk [vmem:[%s237] sm:$0xff] %vm385, %v375
      %387 = vst.msk [vmem:[%s237 + $0x8] sm:$0xff] %vm385, %v378
      %388 = vst.msk [vmem:[%s237 + $0x10] sm:$0xff] %vm385, %v381
      %389 = vst.msk [vmem:[%s237 + $0x18] sm:$0xff] %vm385, %v384
      %v390 = vmul.f32 %v350, %v350
      %v391 = vmul.f32 %v355, %v355
      %v392 = vmul.f32 %v360, %v360
      %v393 = vmul.f32 %v365, %v365
      %v394 = vsel %vm368, %v390, 0.0
      %395 = vadd.xlane.f32.xlu0 %v394
      %v396 = vpop.xlane.xlu0 %395
      %v397 = vsel %vm368, %v391, 0.0
      %398 = vadd.xlane.f32.xlu0 %v397
      %v399 = vpop.xlane.xlu0 %398
      %v400 = vsel %vm368, %v392, 0.0
      %401 = vadd.xlane.f32.xlu0 %v400
      %v402 = vpop.xlane.xlu0 %401
      %v403 = vsel %vm368, %v393, 0.0
      %404 = vadd.xlane.f32.xlu0 %v403
      %v405 = vpop.xlane.xlu0 %404
      %406 = vst.msk [vmem:[%s242] sm:$0xff] %vm385, %v396
      %407 = vst.msk [vmem:[%s242 + $0x8] sm:$0xff] %vm385, %v399
      %408 = vst.msk [vmem:[%s242 + $0x10] sm:$0xff] %vm385, %v402
      %409 = vst.msk [vmem:[%s242 + $0x18] sm:$0xff] %vm385, %v405
      %p410 = scmp.lt.s32.totalorder %s16, 3
      %s411 = scalar_select %p410, %s16, 3
      %s412 = smul.addr %s411, 4
      %s413 = smul.addr %s412, 8
      %s414 = scalar_lea.vmem %s2, %s413
      %p415 = scmp.lt.s32.totalorder %s16, 3
      %s416 = scalar_select %p415, %s16, 3
      %s417 = smul.addr %s416, 4
      %s418 = smul.addr %s417, 8
      %s419 = scalar_lea.vmem %s3, %s418
      %p420 = scmp.lt.s32.totalorder %s16, 3
      %s421 = scalar_select %p420, %s16, 3
      %s422 = smul.addr %s421, 4
      %s423 = smul.addr %s422, 8
      %s424 = scalar_lea.vmem %s4, %s423
      // Predicated region
      $region29: #{generator_forward.11} parent=27 // pred_check
        %p425 = pneg %p86
      $region30: #{generator_forward.11} parent=27 // pred_check_branch
        %427 = sbr.rel (%p425) target = $region32
      $region31: #{generator_forward.11} parent=27 // pred_region
        _
      $region32: #{generator_forward.11} parent=27 // pred_fallthru
        _
      // Predicated region
      $region33: #{generator_forward.11} parent=27 // pred_check
        %p428 = pneg %p112
      $region34: #{generator_forward.11} parent=27 // pred_check_branch
        %430 = sbr.rel (%p428) target = $region36
      $region35: #{generator_forward.11} parent=27 // pred_region
        _
      $region36: #{generator_forward.11} parent=27 // pred_fallthru
        _
      // Predicated region
      $region37: #{generator_forward.11} parent=27 // pred_check
        %p431 = pneg %p138
      $region38: #{generator_forward.11} parent=27 // pred_check_branch
        %433 = sbr.rel (%p431) target = $region40
      $region39: #{generator_forward.11} parent=27 // pred_region
        _
      $region40: #{generator_forward.11} parent=27 // pred_fallthru
        _
    $region28: #{generator_forward.11} parent=5 // pred_fallthru
      _
    %p434 = scmp.le.s32.totalorder 2, %s11
    // Predicated region
    $region41: #{generator_forward.11} parent=5 // pred_check
      %p435 = pneg %p434
    $region42: #{generator_forward.11} parent=5 // pred_check_branch
      %437 = sbr.rel (%p435) target = $region44
    $region43: #{generator_forward.11} parent=5 // pred_region
      %s438 = ssub.s32 %s11, 2
      // Predicated region
      $region45: #{generator_forward.11} parent=43 // pred_check
        %p439 = pneg %p92
      $region46: #{generator_forward.11} parent=43 // pred_check_branch
        %441 = sbr.rel (%p439) target = $region48
      $region47: #{generator_forward.11} parent=43 // pred_region
        %p442 = scmp.lt.s32.totalorder %s17, 3
        %s443 = scalar_select %p442, %s17, 3
        %s444 = smul.addr %s443, 4
        %s445 = smul.addr %s444, 8
        %s446 = scalar_lea.vmem %s2, %s445
      $region48: #{generator_forward.11} parent=43 // pred_fallthru
        _
      // Predicated region
      $region49: #{generator_forward.11} parent=43 // pred_check
        %p447 = pneg %p118
      $region50: #{generator_forward.11} parent=43 // pred_check_branch
        %449 = sbr.rel (%p447) target = $region52
      $region51: #{generator_forward.11} parent=43 // pred_region
        %p450 = scmp.lt.s32.totalorder %s17, 3
        %s451 = scalar_select %p450, %s17, 3
        %s452 = smul.addr %s451, 4
        %s453 = smul.addr %s452, 8
        %s454 = scalar_lea.vmem %s3, %s453
      $region52: #{generator_forward.11} parent=43 // pred_fallthru
        _
      // Predicated region
      $region53: #{generator_forward.11} parent=43 // pred_check
        %p455 = pneg %p144
      $region54: #{generator_forward.11} parent=43 // pred_check_branch
        %457 = sbr.rel (%p455) target = $region56
      $region55: #{generator_forward.11} parent=43 // pred_region
        %p458 = scmp.lt.s32.totalorder %s17, 3
        %s459 = scalar_select %p458, %s17, 3
        %s460 = smul.addr %s459, 4
        %s461 = smul.addr %s460, 8
        %s462 = scalar_lea.vmem %s4, %s461
      $region56: #{generator_forward.11} parent=43 // pred_fallthru
        _
    $region44: #{generator_forward.11} parent=5 // pred_fallthru
      _
  $region6: #{generator_forward.11} parent=0 // loop_footer
    %s15 = sadd.s32 1, %s11
  $region7: #{generator_forward.11} parent=0 // loop_footer_branch
    %10 = sbr.rel target = $region3
  $region8: #{generator_forward.11} parent=0 // loop_exit
    _

// kernel: generator_forward.12
$region0: #{generator_forward.12}
  #allocation0 [shape = 'u32[]', space=smem, size = 0x4, offset = 0x4, fixed_abs, tag = 'smem constant byte address 0x4 - core index']
  #allocation1 [shape = 'u32[144,128]{1,0:T(1,128)}', space=vmem, size = 0x12000, scoped, tag = 'internal scratch']
  %s0 = inlined_call_operand.vmem [shape: f32[32,128], index: 0, kind: input, shape index: {}]
  %s1 = inlined_call_operand.vmem [shape: f32[32,1], index: 1, kind: input, shape index: {}]
  %s2 = inlined_call_operand.vmem [shape: f32[32,1], index: 2, kind: input, shape index: {}]
  %s3 = inlined_call_operand.vmem [shape: f32[32,128], index: 3, kind: output, shape index: {}]
  %s4 = sld [smem:[#allocation0]]
  $region22: #{generator_forward.12} parent=0
    _
  %s6 = ssub.s32 1, %s4
  %s7 = scalar_select 0, %s6, %s4
  // Predicated region
  $region2: #{generator_forward.12} parent=0 // pred_check
    _
  $region3: #{generator_forward.12} parent=0 // pred_check_branch
    %9 = sbr.rel (0) target = $region5
  $region4: #{generator_forward.12} parent=0 // pred_region
    _
  $region5: #{generator_forward.12} parent=0 // pred_fallthru
    _
  // Predicated region
  $region6: #{generator_forward.12} parent=0 // pred_check
    _
  $region7: #{generator_forward.12} parent=0 // pred_check_branch
    %11 = sbr.rel (0) target = $region9
  $region8: #{generator_forward.12} parent=0 // pred_region
    _
  $region9: #{generator_forward.12} parent=0 // pred_fallthru
    _
  // Predicated region
  $region10: #{generator_forward.12} parent=0 // pred_check
    _
  $region11: #{generator_forward.12} parent=0 // pred_check_branch
    %13 = sbr.rel (0) target = $region13
  $region12: #{generator_forward.12} parent=0 // pred_region
    _
  $region13: #{generator_forward.12} parent=0 // pred_fallthru
    _
  %v14 = vld [vmem:[%s0] sm:$0xff]
  %v15 = vld [vmem:[%s0 + $0x8] sm:$0xff]
  %v16 = vld [vmem:[%s0 + $0x10] sm:$0xff]
  %v17 = vld [vmem:[%s0 + $0x18] sm:$0xff]
  %v18 = vld [vmem:[%s1] sm:$0xff]
  %v19 = vld [vmem:[%s1 + $0x8] sm:$0xff]
  %v20 = vld [vmem:[%s1 + $0x10] sm:$0xff]
  %v21 = vld [vmem:[%s1 + $0x18] sm:$0xff]
  %23 = vset.pattern.permute.xlu0 0
  %24 = vperm.xlu0 %23, %v18
  %v25 = vpop.permute.xlu0 %24
  %28 = vset.pattern.permute.xlu0 0
  %29 = vperm.xlu0 %28, %v19
  %v30 = vpop.permute.xlu0 %29
  %33 = vset.pattern.permute.xlu0 0
  %34 = vperm.xlu0 %33, %v20
  %v35 = vpop.permute.xlu0 %34
  %38 = vset.pattern.permute.xlu0 0
  %39 = vperm.xlu0 %38, %v21
  %v40 = vpop.permute.xlu0 %39
  %v42 = vmul.f32 %v14, %v25
  %v43 = vmul.f32 %v15, %v30
  %v44 = vmul.f32 %v16, %v35
  %v45 = vmul.f32 %v17, %v40
  %v46 = vld [vmem:[%s2] sm:$0xff]
  %v47 = vld [vmem:[%s2 + $0x8] sm:$0xff]
  %v48 = vld [vmem:[%s2 + $0x10] sm:$0xff]
  %v49 = vld [vmem:[%s2 + $0x18] sm:$0xff]
  %51 = vset.pattern.permute.xlu0 0
  %52 = vperm.xlu0 %51, %v46
  %v53 = vpop.permute.xlu0 %52
  %56 = vset.pattern.permute.xlu0 0
  %57 = vperm.xlu0 %56, %v47
  %v58 = vpop.permute.xlu0 %57
  %61 = vset.pattern.permute.xlu0 0
  %62 = vperm.xlu0 %61, %v48
  %v63 = vpop.permute.xlu0 %62
  %66 = vset.pattern.permute.xlu0 0
  %67 = vperm.xlu0 %66, %v49
  %v68 = vpop.permute.xlu0 %67
  %v70 = vadd.f32 %v42, %v53
  %v71 = vadd.f32 %v43, %v58
  %v72 = vadd.f32 %v44, %v63
  %v73 = vadd.f32 %v45, %v68
  %v74 = vmax.f32 %v70, 0.0
  %v75 = vmax.f32 %v71, 0.0
  %v76 = vmax.f32 %v72, 0.0
  %v77 = vmax.f32 %v73, 0.0
  %78 = vst [vmem:[%s3] sm:$0xff] %v74
  %79 = vst [vmem:[%s3 + $0x8] sm:$0xff] %v75
  %80 = vst [vmem:[%s3 + $0x10] sm:$0xff] %v76
  %81 = vst [vmem:[%s3 + $0x18] sm:$0xff] %v77
  // Predicated region
  $region14: #{generator_forward.12} parent=0 // pred_check
    _
  $region15: #{generator_forward.12} parent=0 // pred_check_branch
    %83 = sbr.rel (0) target = $region17
  $region16: #{generator_forward.12} parent=0 // pred_region
    _
  $region17: #{generator_forward.12} parent=0 // pred_fallthru
    _
  // Predicated region
  $region18: #{generator_forward.12} parent=0 // pred_check
    _
  $region19: #{generator_forward.12} parent=0 // pred_check_branch
    %85 = sbr.rel (0) target = $region21
  $region20: #{generator_forward.12} parent=0 // pred_region
    _
  $region21: #{generator_forward.12} parent=0 // pred_fallthru
    _

// kernel: generator_forward.13
$region0: #{generator_forward.13}
  #allocation0 [shape = 'u32[]', space=smem, size = 0x4, offset = 0x4, fixed_abs, tag = 'smem constant byte address 0x4 - core index']
  #allocation1 [shape = 'u32[144,128]{1,0:T(1,128)}', space=vmem, size = 0x12000, scoped, tag = 'internal scratch']
  %s0 = inlined_call_operand.vmem [shape: f32[4,16,128], index: 0, kind: input, shape index: {}]
  %s1 = inlined_call_operand.vmem [shape: f32[4,128,128], index: 1, kind: input, shape index: {}]
  %s2 = inlined_call_operand.vmem [shape: f32[4,16,128], index: 2, kind: output, shape index: {0}]
  %s3 = inlined_call_operand.vmem [shape: f32[4,16,1], index: 3, kind: output, shape index: {1}]
  %s4 = inlined_call_operand.vmem [shape: f32[4,16,1], index: 4, kind: output, shape index: {2}]
  %5 = xla_tuple %s2, %s3, %s4
  %s6 = sld [smem:[#allocation0]]
  $region57: #{generator_forward.13} parent=0
    _
  %s8 = ssub.s32 1, %s6
  %s9 = scalar_select 0, %s8, %s6
  loop: start=0, step=1, limit=6
  $region2: #{generator_forward.13} parent=0 // loop_pre_header
    _
  $region3: #{generator_forward.13} parent=0 // loop_header
    %s11 = sphi 0, %s15
    %p12 = scmp.ge.s32.totalorder %s11, 6
    %s21 = sphi 0, %s23
    %s24 = sphi 0, %s21
    %s25 = sphi 0, %s24
    %s41 = sphi 0, %s25
    %s47 = sphi 0, %s49
    %s50 = sphi 0, %s47
    %s51 = sphi 0, %s50
    %s67 = sphi 0, %s51
    %s73 = sphi 0, %s75
    %s76 = sphi 0, %s73
    %s77 = sphi 0, %s76
    %s93 = sphi 0, %s77
    %s99 = sphi 0, %s101
    %s102 = sphi 0, %s99
    %s103 = sphi 0, %s102
    %s119 = sphi 0, %s103
    %s125 = sphi 0, %s127
    %s128 = sphi 0, %s125
    %s129 = sphi 0, %s128
    %s145 = sphi 0, %s129
  $region4: #{generator_forward.13} parent=0 // loop_header_branch
    %14 = sbr.rel (%p12) target = $region8
  $region5: #{generator_forward.13} parent=0 // loop_body
    %s16 = ssub.s32 %s11, 1
    %s17 = ssub.s32 %s11, 2
    %s18 = sadd.s32 %s11, 1
    %s19 = ssub.s32 %s11, %s18
    %p20 = scmp.eq.s32.totalorder %s19, 0
    %s22 = sadd.s32 %s21, 1
    %s23 = scalar_select %p20, %s21, %s22
    %p26 = pneg %p20
    %p27 = scmp.eq.s32.totalorder %s11, 3
    %p28 = por %p26, %p27
    %p29 = scmp.ne.s32.totalorder %s21, %s24
    %p30 = scmp.eq.s32.totalorder %s11, 0
    %p31 = por %p29, %p30
    %p32 = scmp.ne.s32.totalorder %s21, %s24
    %p33 = scmp.eq.s32.totalorder %s16, 3
    %p34 = por %p32, %p33
    %p35 = scmp.ne.s32.totalorder %s24, %s25
    %p36 = scmp.eq.s32.totalorder %s16, 0
    %p37 = por %p35, %p36
    %p38 = scmp.ne.s32.totalorder %s24, %s25
    %p39 = scmp.eq.s32.totalorder %s17, 3
    %p40 = por %p38, %p39
    %p42 = scmp.ne.s32.totalorder %s25, %s41
    %p43 = scmp.eq.s32.totalorder %s17, 0
    %p44 = por %p42, %p43
    %s45 = ssub.s32 %s11, %s18
    %p46 = scmp.eq.s32.totalorder %s45, 0
    %s48 = sadd.s32 %s47, 1
    %s49 = scalar_select %p46, %s47, %s48
    %p52 = pneg %p46
    %p53 = scmp.eq.s32.totalorder %s11, 3
    %p54 = por %p52, %p53
    %p55 = scmp.ne.s32.totalorder %s47, %s50
    %p56 = scmp.eq.s32.totalorder %s11, 0
    %p57 = por %p55, %p56
    %p58 = scmp.ne.s32.totalorder %s47, %s50
    %p59 = scmp.eq.s32.totalorder %s16, 3
    %p60 = por %p58, %p59
    %p61 = scmp.ne.s32.totalorder %s50, %s51
    %p62 = scmp.eq.s32.totalorder %s16, 0
    %p63 = por %p61, %p62
    %p64 = scmp.ne.s32.totalorder %s50, %s51
    %p65 = scmp.eq.s32.totalorder %s17, 3
    %p66 = por %p64, %p65
    %p68 = scmp.ne.s32.totalorder %s51, %s67
    %p69 = scmp.eq.s32.totalorder %s17, 0
    %p70 = por %p68, %p69
    %s71 = ssub.s32 %s11, %s18
    %p72 = scmp.eq.s32.totalorder %s71, 0
    %s74 = sadd.s32 %s73, 1
    %s75 = scalar_select %p72, %s73, %s74
    %p78 = pneg %p72
    %p79 = scmp.eq.s32.totalorder %s11, 3
    %p80 = por %p78, %p79
    %p81 = scmp.ne.s32.totalorder %s73, %s76
    %p82 = scmp.eq.s32.totalorder %s11, 0
    %p83 = por %p81, %p82
    %p84 = scmp.ne.s32.totalorder %s73, %s76
    %p85 = scmp.eq.s32.totalorder %s16, 3
    %p86 = por %p84, %p85
    %p87 = scmp.ne.s32.totalorder %s76, %s77
    %p88 = scmp.eq.s32.totalorder %s16, 0
    %p89 = por %p87, %p88
    %p90 = scmp.ne.s32.totalorder %s76, %s77
    %p91 = scmp.eq.s32.totalorder %s17, 3
    %p92 = por %p90, %p91
    %p94 = scmp.ne.s32.totalorder %s77, %s93
    %p95 = scmp.eq.s32.totalorder %s17, 0
    %p96 = por %p94, %p95
    %s97 = ssub.s32 %s11, %s18
    %p98 = scmp.eq.s32.totalorder %s97, 0
    %s100 = sadd.s32 %s99, 1
    %s101 = scalar_select %p98, %s99, %s100
    %p104 = pneg %p98
    %p105 = scmp.eq.s32.totalorder %s11, 3
    %p106 = por %p104, %p105
    %p107 = scmp.ne.s32.totalorder %s99, %s102
    %p108 = scmp.eq.s32.totalorder %s11, 0
    %p109 = por %p107, %p108
    %p110 = scmp.ne.s32.totalorder %s99, %s102
    %p111 = scmp.eq.s32.totalorder %s16, 3
    %p112 = por %p110, %p111
    %p113 = scmp.ne.s32.totalorder %s102, %s103
    %p114 = scmp.eq.s32.totalorder %s16, 0
    %p115 = por %p113, %p114
    %p116 = scmp.ne.s32.totalorder %s102, %s103
    %p117 = scmp.eq.s32.totalorder %s17, 3
    %p118 = por %p116, %p117
    %p120 = scmp.ne.s32.totalorder %s103, %s119
    %p121 = scmp.eq.s32.totalorder %s17, 0
    %p122 = por %p120, %p121
    %s123 = ssub.s32 %s11, %s18
    %p124 = scmp.eq.s32.totalorder %s123, 0
    %s126 = sadd.s32 %s125, 1
    %s127 = scalar_select %p124, %s125, %s126
    %p130 = pneg %p124
    %p131 = scmp.eq.s32.totalorder %s11, 3
    %p132 = por %p130, %p131
    %p133 = scmp.ne.s32.totalorder %s125, %s128
    %p134 = scmp.eq.s32.totalorder %s11, 0
    %p135 = por %p133, %p134
    %p136 = scmp.ne.s32.totalorder %s125, %s128
    %p137 = scmp.eq.s32.totalorder %s16, 3
    %p138 = por %p136, %p137
    %p139 = scmp.ne.s32.totalorder %s128, %s129
    %p140 = scmp.eq.s32.totalorder %s16, 0
    %p141 = por %p139, %p140
    %p142 = scmp.ne.s32.totalorder %s128, %s129
    %p143 = scmp.eq.s32.totalorder %s17, 3
    %p144 = por %p142, %p143
    %p146 = scmp.ne.s32.totalorder %s129, %s145
    %p147 = scmp.eq.s32.totalorder %s17, 0
    %p148 = por %p146, %p147
    %p149 = scmp.le.s32.totalorder 1, %s11
    %p150 = scmp.lt.s32.totalorder %s11, 5
    %p151 = pnand %p149, %p150
    %p152 = pneg %p151
    // Predicated region
    $region9: #{generator_forward.13} parent=5 // pred_check
      _
    $region10: #{generator_forward.13} parent=5 // pred_check_branch
      %154 = sbr.rel (%p151) target = $region12
    $region11: #{generator_forward.13} parent=5 // pred_region
      %s155 = ssub.s32 %s11, 1
    $region12: #{generator_forward.13} parent=5 // pred_fallthru
      _
    %p156 = scmp.lt.s32.totalorder %s11, 4
    // Predicated region
    $region13: #{generator_forward.13} parent=5 // pred_check
      %p157 = pneg %p156
    $region14: #{generator_forward.13} parent=5 // pred_check_branch
      %159 = sbr.rel (%p157) target = $region16
    $region15: #{generator_forward.13} parent=5 // pred_region
      // Predicated region
      $region17: #{generator_forward.13} parent=15 // pred_check
        %p160 = pneg %p31
      $region18: #{generator_forward.13} parent=15 // pred_check_branch
        %162 = sbr.rel (%p160) target = $region20
      $region19: #{generator_forward.13} parent=15 // pred_region
        %p163 = scmp.lt.s32.totalorder %s11, 3
        %s164 = scalar_select %p163, %s11, 3
        %s165 = smul.addr %s164, 2
        %s166 = smul.addr %s165, 8
        %s167 = scalar_lea.vmem %s0, %s166
      $region20: #{generator_forward.13} parent=15 // pred_fallthru
        _
      // Predicated region
      $region21: #{generator_forward.13} parent=15 // pred_check
        %p168 = pneg %p57
      $region22: #{generator_forward.13} parent=15 // pred_check_branch
        %170 = sbr.rel (%p168) target = $region24
      $region23: #{generator_forward.13} parent=15 // pred_region
        %p171 = scmp.lt.s32.totalorder %s11, 3
        %s172 = scalar_select %p171, %s11, 3
        %s173 = smul.addr %s172, 16
        %s174 = smul.addr %s173, 8
        %s175 = scalar_lea.vmem %s1, %s174
      $region24: #{generator_forward.13} parent=15 // pred_fallthru
        _
    $region16: #{generator_forward.13} parent=5 // pred_fallthru
      _
    %p176 = scmp.le.s32.totalorder 1, %s11
    %p177 = scmp.lt.s32.totalorder %s11, 5
    %p178 = pnand %p176, %p177
    %p179 = pneg %p178
    // Predicated region
    $region25: #{generator_forward.13} parent=5 // pred_check
      _
    $region26: #{generator_forward.13} parent=5 // pred_check_branch
      %181 = sbr.rel (%p178) target = $region28
    $region27: #{generator_forward.13} parent=5 // pred_region
      %s182 = ssub.s32 %s11, 1
      %p183 = scmp.lt.s32.totalorder %s16, 3
      %s184 = scalar_select %p183, %s16, 3
      %s185 = smul.addr %s184, 2
      %s186 = smul.addr %s185, 8
      %s187 = scalar_lea.vmem %s0, %s186
      %p188 = pneg %p37
      %p189 = pneg %p34
      %p190 = scmp.lt.s32.totalorder %s16, 3
      %s191 = scalar_select %p190, %s16, 3
      %s192 = smul.addr %s191, 16
      %s193 = smul.addr %s192, 8
      %s194 = scalar_lea.vmem %s1, %s193
      %p195 = pneg %p63
      %p196 = pneg %p60
      %p197 = pneg %p89
      %p198 = pneg %p86
      %p199 = scmp.lt.s32.totalorder %s16, 3
      %s200 = scalar_select %p199, %s16, 3
      %s201 = smul.addr %s200, 2
      %s202 = smul.addr %s201, 8
      %s203 = scalar_lea.vmem %s2, %s202
      %p204 = pneg %p115
      %p205 = pneg %p112
      %p206 = scmp.lt.s32.totalorder %s16, 3
      %s207 = scalar_select %p206, %s16, 3
      %s208 = smul.addr %s207, 2
      %s209 = smul.addr %s208, 8
      %s210 = scalar_lea.vmem %s3, %s209
      %p211 = pneg %p141
      %p212 = pneg %p138
      %p213 = scmp.lt.s32.totalorder %s16, 3
      %s214 = scalar_select %p213, %s16, 3
      %s215 = smul.addr %s214, 2
      %s216 = smul.addr %s215, 8
      %s217 = scalar_lea.vmem %s4, %s216
      %p218 = scmp.lt.s32.totalorder %s16, 3
      %s219 = scalar_select %p218, %s16, 3
      %s220 = smul.addr %s219, 2
      %s221 = smul.addr %s220, 8
      %s222 = scalar_lea.vmem %s0, %s221
      %p223 = scmp.lt.s32.totalorder %s16, 3
      %s224 = scalar_select %p223, %s16, 3
      %s225 = smul.addr %s224, 16
      %s226 = smul.addr %s225, 8
      %s227 = scalar_lea.vmem %s1, %s226
      %p228 = scmp.lt.s32.totalorder %s16, 3
      %s229 = scalar_select %p228, %s16, 3
      %s230 = smul.addr %s229, 2
      %s231 = smul.addr %s230, 8
      %s232 = scalar_lea.vmem %s2, %s231
      %p233 = scmp.lt.s32.totalorder %s16, 3
      %s234 = scalar_select %p233, %s16, 3
      %s235 = smul.addr %s234, 2
      %s236 = smul.addr %s235, 8
      %s237 = scalar_lea.vmem %s3, %s236
      %p238 = scmp.lt.s32.totalorder %s16, 3
      %s239 = scalar_select %p238, %s16, 3
      %s240 = smul.addr %s239, 2
      %s241 = smul.addr %s240, 8
      %s242 = scalar_lea.vmem %s4, %s241
      %v243 = vld [vmem:[%s222] sm:$0xff]
      %v244 = vld [vmem:[%s222 + $0x8] sm:$0xff]
      %v245 = vld [vmem:[%s227] sm:$0xff]
      %v246 = vld [vmem:[%s227 + $0x8] sm:$0xff]
      %v247 = vld [vmem:[%s227 + $0x10] sm:$0xff]
      %v248 = vld [vmem:[%s227 + $0x18] sm:$0xff]
      %v249 = vld [vmem:[%s227 + $0x20] sm:$0xff]
      %v250 = vld [vmem:[%s227 + $0x28] sm:$0xff]
      %v251 = vld [vmem:[%s227 + $0x30] sm:$0xff]
      %v252 = vld [vmem:[%s227 + $0x38] sm:$0xff]
      %v253 = vld [vmem:[%s227 + $0x40] sm:$0xff]
      %v254 = vld [vmem:[%s227 + $0x48] sm:$0xff]
      %v255 = vld [vmem:[%s227 + $0x50] sm:$0xff]
      %v256 = vld [vmem:[%s227 + $0x58] sm:$0xff]
      %v257 = vld [vmem:[%s227 + $0x60] sm:$0xff]
      %v258 = vld [vmem:[%s227 + $0x68] sm:$0xff]
      %v259 = vld [vmem:[%s227 + $0x70] sm:$0xff]
      %v260 = vld [vmem:[%s227 + $0x78] sm:$0xff]
      %261 = vmatprep.subr.mxu0 0.0
      %262 = vmatpush1.msra.mxu0 %v245
      %263 = vmatprep.subr.mxu0 0.0
      %264 = vmatpush1.msra.mxu0 %v246
      %265 = vmatprep.subr.mxu0 0.0
      %266 = vmatpush1.msra.mxu0 %v247
      %267 = vmatprep.subr.mxu0 0.0
      %268 = vmatpush1.msra.mxu0 %v248
      %269 = vmatprep.subr.mxu0 0.0
      %270 = vmatpush1.msra.mxu0 %v249
      %271 = vmatprep.subr.mxu0 0.0
      %272 = vmatpush1.msra.mxu0 %v250
      %273 = vmatprep.subr.mxu0 0.0
      %274 = vmatpush1.msra.mxu0 %v251
      %275 = vmatprep.subr.mxu0 0.0
      %276 = vmatpush1.msra.mxu0 %v252
      %277 = vmatprep.subr.mxu0 0.0
      %278 = vmatpush1.msra.mxu0 %v253
      %279 = vmatprep.subr.mxu0 0.0
      %280 = vmatpush1.msra.mxu0 %v254
      %281 = vmatprep.subr.mxu0 0.0
      %282 = vmatpush1.msra.mxu0 %v255
      %283 = vmatprep.subr.mxu0 0.0
      %284 = vmatpush1.msra.mxu0 %v256
      %285 = vmatprep.subr.mxu0 0.0
      %286 = vmatpush1.msra.mxu0 %v257
      %287 = vmatprep.subr.mxu0 0.0
      %288 = vmatpush1.msra.mxu0 %v258
      %289 = vmatprep.subr.mxu0 0.0
      %290 = vmatpush1.msra.mxu0 %v259
      %291 = vmatprep.subr.mxu0 0.0
      %292 = vmatpush1.msra.mxu0 %v260
      %293 = vmatprep.subr.mxu0 0.0
      %294 = vmatpush1.msra.mxu0 0.0
      %295 = vmatprep.subr.mxu0 0.0
      %296 = vmatpush1.msra.mxu0 0.0
      %297 = vmatprep.subr.mxu0 0.0
      %298 = vmatpush1.msra.mxu0 0.0
      %299 = vmatprep.subr.mxu0 0.0
      %300 = vmatpush1.msra.mxu0 0.0
      %301 = vmatprep.subr.mxu0 0.0
      %302 = vmatpush1.msra.mxu0 0.0
      %303 = vmatprep.subr.mxu0 0.0
      %304 = vmatpush1.msra.mxu0 0.0
      %305 = vmatprep.subr.mxu0 0.0
      %306 = vmatpush1.msra.mxu0 0.0
      %307 = vmatprep.subr.mxu0 0.0
      %308 = vmatpush1.msra.mxu0 0.0
      %309 = vmatprep.subr.mxu0 0.0
      %310 = vmatpush1.msra.mxu0 0.0
      %311 = vmatprep.subr.mxu0 0.0
      %312 = vmatpush1.msra.mxu0 0.0
      %313 = vmatprep.subr.mxu0 0.0
      %314 = vmatpush1.msra.mxu0 0.0
      %315 = vmatprep.subr.mxu0 0.0
      %316 = vmatpush1.msra.mxu0 0.0
      %317 = vmatprep.subr.mxu0 0.0
      %318 = vmatpush1.msra.mxu0 0.0
      %319 = vmatprep.subr.mxu0 0.0
      %320 = vmatpush1.msra.mxu0 0.0
      %321 = vmatprep.subr.mxu0 0.0
      %322 = vmatpush1.msra.mxu0 0.0
      %323 = vmatprep.subr.mxu0 0.0
      %324 = vmatpush1.msra.mxu0 0.0
      %325 = vmatprep.mubr.f32.mxu0 0.0
      %326 = vmatmul.mubr.f32.gmra.mrb[0].mxu0 %v243
      %v327 = vpop.f32.mrb[0].mxu0
      %v328 = vadd.f32 0.0, %v327
      %v329 = vpop.f32.mrb[0].mxu0
      %330 = vmatprep.mubr.f32.mxu0 0.0
      %331 = vmatmul.mubr.f32.gmra.mrb[0].mxu0 %v244
      %v332 = vpop.f32.mrb[0].mxu0
      %v333 = vadd.f32 0.0, %v332
      %v334 = vpop.f32.mrb[0].mxu0
      %335 = vdwg.mxu0
      %336 = vst [vmem:[%s232] sm:$0xff] %v328
      %337 = vst [vmem:[%s232 + $0x8] sm:$0xff] %v333
      %338 = vadd.xlane.f32.xlu0 %v328
      %v339 = vpop.xlane.xlu0 %338
      %340 = vadd.xlane.f32.xlu0 %v333
      %v341 = vpop.xlane.xlu0 %340
      %vm342 = vcmask 7168
      %343 = vst.msk [vmem:[%s237] sm:$0xff] %vm342, %v339
      %344 = vst.msk [vmem:[%s237 + $0x8] sm:$0xff] %vm342, %v341
      %v345 = vmul.f32 %v328, %v328
      %v346 = vmul.f32 %v333, %v333
      %347 = vadd.xlane.f32.xlu0 %v345
      %v348 = vpop.xlane.xlu0 %347
      %349 = vadd.xlane.f32.xlu0 %v346
      %v350 = vpop.xlane.xlu0 %349
      %351 = vst.msk [vmem:[%s242] sm:$0xff] %vm342, %v348
      %352 = vst.msk [vmem:[%s242 + $0x8] sm:$0xff] %vm342, %v350
      %p353 = scmp.lt.s32.totalorder %s16, 3
      %s354 = scalar_select %p353, %s16, 3
      %s355 = smul.addr %s354, 2
      %s356 = smul.addr %s355, 8
      %s357 = scalar_lea.vmem %s2, %s356
      %p358 = scmp.lt.s32.totalorder %s16, 3
      %s359 = scalar_select %p358, %s16, 3
      %s360 = smul.addr %s359, 2
      %s361 = smul.addr %s360, 8
      %s362 = scalar_lea.vmem %s3, %s361
      %p363 = scmp.lt.s32.totalorder %s16, 3
      %s364 = scalar_select %p363, %s16, 3
      %s365 = smul.addr %s364, 2
      %s366 = smul.addr %s365, 8
      %s367 = scalar_lea.vmem %s4, %s366
      // Predicated region
      $region29: #{generator_forward.13} parent=27 // pred_check
        %p368 = pneg %p86
      $region30: #{generator_forward.13} parent=27 // pred_check_branch
        %370 = sbr.rel (%p368) target = $region32
      $region31: #{generator_forward.13} parent=27 // pred_region
        _
      $region32: #{generator_forward.13} parent=27 // pred_fallthru
        _
      // Predicated region
      $region33: #{generator_forward.13} parent=27 // pred_check
        %p371 = pneg %p112
      $region34: #{generator_forward.13} parent=27 // pred_check_branch
        %373 = sbr.rel (%p371) target = $region36
      $region35: #{generator_forward.13} parent=27 // pred_region
        _
      $region36: #{generator_forward.13} parent=27 // pred_fallthru
        _
      // Predicated region
      $region37: #{generator_forward.13} parent=27 // pred_check
        %p374 = pneg %p138
      $region38: #{generator_forward.13} parent=27 // pred_check_branch
        %376 = sbr.rel (%p374) target = $region40
      $region39: #{generator_forward.13} parent=27 // pred_region
        _
      $region40: #{generator_forward.13} parent=27 // pred_fallthru
        _
    $region28: #{generator_forward.13} parent=5 // pred_fallthru
      _
    %p377 = scmp.le.s32.totalorder 2, %s11
    // Predicated region
    $region41: #{generator_forward.13} parent=5 // pred_check
      %p378 = pneg %p377
    $region42: #{generator_forward.13} parent=5 // pred_check_branch
      %380 = sbr.rel (%p378) target = $region44
    $region43: #{generator_forward.13} parent=5 // pred_region
      %s381 = ssub.s32 %s11, 2
      // Predicated region
      $region45: #{generator_forward.13} parent=43 // pred_check
        %p382 = pneg %p92
      $region46: #{generator_forward.13} parent=43 // pred_check_branch
        %384 = sbr.rel (%p382) target = $region48
      $region47: #{generator_forward.13} parent=43 // pred_region
        %p385 = scmp.lt.s32.totalorder %s17, 3
        %s386 = scalar_select %p385, %s17, 3
        %s387 = smul.addr %s386, 2
        %s388 = smul.addr %s387, 8
        %s389 = scalar_lea.vmem %s2, %s388
      $region48: #{generator_forward.13} parent=43 // pred_fallthru
        _
      // Predicated region
      $region49: #{generator_forward.13} parent=43 // pred_check
        %p390 = pneg %p118
      $region50: #{generator_forward.13} parent=43 // pred_check_branch
        %392 = sbr.rel (%p390) target = $region52
      $region51: #{generator_forward.13} parent=43 // pred_region
        %p393 = scmp.lt.s32.totalorder %s17, 3
        %s394 = scalar_select %p393, %s17, 3
        %s395 = smul.addr %s394, 2
        %s396 = smul.addr %s395, 8
        %s397 = scalar_lea.vmem %s3, %s396
      $region52: #{generator_forward.13} parent=43 // pred_fallthru
        _
      // Predicated region
      $region53: #{generator_forward.13} parent=43 // pred_check
        %p398 = pneg %p144
      $region54: #{generator_forward.13} parent=43 // pred_check_branch
        %400 = sbr.rel (%p398) target = $region56
      $region55: #{generator_forward.13} parent=43 // pred_region
        %p401 = scmp.lt.s32.totalorder %s17, 3
        %s402 = scalar_select %p401, %s17, 3
        %s403 = smul.addr %s402, 2
        %s404 = smul.addr %s403, 8
        %s405 = scalar_lea.vmem %s4, %s404
      $region56: #{generator_forward.13} parent=43 // pred_fallthru
        _
    $region44: #{generator_forward.13} parent=5 // pred_fallthru
      _
  $region6: #{generator_forward.13} parent=0 // loop_footer
    %s15 = sadd.s32 1, %s11
  $region7: #{generator_forward.13} parent=0 // loop_footer_branch
    %10 = sbr.rel target = $region3
  $region8: #{generator_forward.13} parent=0 // loop_exit
    _

// kernel: generator_forward.14
$region0: #{generator_forward.14}
  #allocation0 [shape = 'u32[]', space=smem, size = 0x4, offset = 0x4, fixed_abs, tag = 'smem constant byte address 0x4 - core index']
  #allocation1 [shape = 'u32[144,128]{1,0:T(1,128)}', space=vmem, size = 0x12000, scoped, tag = 'internal scratch']
  %s0 = inlined_call_operand.vmem [shape: f32[16,512], index: 0, kind: input, shape index: {}]
  %s1 = inlined_call_operand.vmem [shape: f32[16,1], index: 1, kind: input, shape index: {}]
  %s2 = inlined_call_operand.vmem [shape: f32[16,1], index: 2, kind: input, shape index: {}]
  %s3 = inlined_call_operand.vmem [shape: f32[16,512], index: 3, kind: output, shape index: {}]
  %s4 = sld [smem:[#allocation0]]
  $region22: #{generator_forward.14} parent=0
    _
  %s6 = ssub.s32 1, %s4
  %s7 = scalar_select 0, %s6, %s4
  // Predicated region
  $region2: #{generator_forward.14} parent=0 // pred_check
    _
  $region3: #{generator_forward.14} parent=0 // pred_check_branch
    %9 = sbr.rel (0) target = $region5
  $region4: #{generator_forward.14} parent=0 // pred_region
    _
  $region5: #{generator_forward.14} parent=0 // pred_fallthru
    _
  // Predicated region
  $region6: #{generator_forward.14} parent=0 // pred_check
    _
  $region7: #{generator_forward.14} parent=0 // pred_check_branch
    %11 = sbr.rel (0) target = $region9
  $region8: #{generator_forward.14} parent=0 // pred_region
    _
  $region9: #{generator_forward.14} parent=0 // pred_fallthru
    _
  // Predicated region
  $region10: #{generator_forward.14} parent=0 // pred_check
    _
  $region11: #{generator_forward.14} parent=0 // pred_check_branch
    %13 = sbr.rel (0) target = $region13
  $region12: #{generator_forward.14} parent=0 // pred_region
    _
  $region13: #{generator_forward.14} parent=0 // pred_fallthru
    _
  %v14 = vld [vmem:[%s0] sm:$0xff]
  %v15 = vld [vmem:[%s0 + $0x8] sm:$0xff]
  %v16 = vld [vmem:[%s0 + $0x10] sm:$0xff]
  %v17 = vld [vmem:[%s0 + $0x18] sm:$0xff]
  %v18 = vld [vmem:[%s0 + $0x20] sm:$0xff]
  %v19 = vld [vmem:[%s0 + $0x28] sm:$0xff]
  %v20 = vld [vmem:[%s0 + $0x30] sm:$0xff]
  %v21 = vld [vmem:[%s0 + $0x38] sm:$0xff]
  %v22 = vld [vmem:[%s1] sm:$0xff]
  %v23 = vld [vmem:[%s1 + $0x8] sm:$0xff]
  %25 = vset.pattern.permute.xlu0 0
  %26 = vperm.xlu0 %25, %v22
  %v27 = vpop.permute.xlu0 %26
  %30 = vset.pattern.permute.xlu0 0
  %31 = vperm.xlu0 %30, %v23
  %v32 = vpop.permute.xlu0 %31
  %v34 = vmul.f32 %v14, %v27
  %v35 = vmul.f32 %v15, %v27
  %v36 = vmul.f32 %v16, %v27
  %v37 = vmul.f32 %v17, %v27
  %v38 = vmul.f32 %v18, %v32
  %v39 = vmul.f32 %v19, %v32
  %v40 = vmul.f32 %v20, %v32
  %v41 = vmul.f32 %v21, %v32
  %v42 = vld [vmem:[%s2] sm:$0xff]
  %v43 = vld [vmem:[%s2 + $0x8] sm:$0xff]
  %45 = vset.pattern.permute.xlu0 0
  %46 = vperm.xlu0 %45, %v42
  %v47 = vpop.permute.xlu0 %46
  %50 = vset.pattern.permute.xlu0 0
  %51 = vperm.xlu0 %50, %v43
  %v52 = vpop.permute.xlu0 %51
  %v54 = vadd.f32 %v34, %v47
  %v55 = vadd.f32 %v35, %v47
  %v56 = vadd.f32 %v36, %v47
  %v57 = vadd.f32 %v37, %v47
  %v58 = vadd.f32 %v38, %v52
  %v59 = vadd.f32 %v39, %v52
  %v60 = vadd.f32 %v40, %v52
  %v61 = vadd.f32 %v41, %v52
  %v62 = vmax.f32 %v54, 0.0
  %v63 = vmax.f32 %v55, 0.0
  %v64 = vmax.f32 %v56, 0.0
  %v65 = vmax.f32 %v57, 0.0
  %v66 = vmax.f32 %v58, 0.0
  %v67 = vmax.f32 %v59, 0.0
  %v68 = vmax.f32 %v60, 0.0
  %v69 = vmax.f32 %v61, 0.0
  %70 = vst [vmem:[%s3] sm:$0xff] %v62
  %71 = vst [vmem:[%s3 + $0x8] sm:$0xff] %v63
  %72 = vst [vmem:[%s3 + $0x10] sm:$0xff] %v64
  %73 = vst [vmem:[%s3 + $0x18] sm:$0xff] %v65
  %74 = vst [vmem:[%s3 + $0x20] sm:$0xff] %v66
  %75 = vst [vmem:[%s3 + $0x28] sm:$0xff] %v67
  %76 = vst [vmem:[%s3 + $0x30] sm:$0xff] %v68
  %77 = vst [vmem:[%s3 + $0x38] sm:$0xff] %v69
  // Predicated region
  $region14: #{generator_forward.14} parent=0 // pred_check
    _
  $region15: #{generator_forward.14} parent=0 // pred_check_branch
    %79 = sbr.rel (0) target = $region17
  $region16: #{generator_forward.14} parent=0 // pred_region
    _
  $region17: #{generator_forward.14} parent=0 // pred_fallthru
    _
  // Predicated region
  $region18: #{generator_forward.14} parent=0 // pred_check
    _
  $region19: #{generator_forward.14} parent=0 // pred_check_branch
    %81 = sbr.rel (0) target = $region21
  $region20: #{generator_forward.14} parent=0 // pred_region
    _
  $region21: #{generator_forward.14} parent=0 // pred_fallthru
    _

// kernel: mul.79
$region0: #{mul.79}
  #allocation0 [shape = 's32[1]{0}', space=sflag, size = 0x4, scoped, tag = 'scoped memory for mul.79']
  %s0 = inlined_call_operand.vmem [shape: f32[8,1], index: 0, kind: input, shape index: {}]
  %s1 = inlined_call_operand.vmem [shape: f32[8,1], index: 1, kind: input, shape index: {}]
  %s2 = inlined_call_operand.vmem [shape: f32[8,1], index: 2, kind: output, shape index: {}]
  %v3 = vld [vmem:[%s0] sm:$0xff]
  %v4 = vld [vmem:[%s1] sm:$0xff]
  %5 = xla_tuple %v3, %v4
  %6 = xla_tuple %5
  %v7 = vmul.f32 %v3, %v4
  %8 = xla_tuple %v7
  %9 = vst [vmem:[%s2] sm:$0xff] %v7

// kernel: generator_forward.15
$region0: #{generator_forward.15}
  #allocation0 [shape = 'u32[]', space=smem, size = 0x4, offset = 0x4, fixed_abs, tag = 'smem constant byte address 0x4 - core index']
  #allocation1 [shape = 'u32[144,128]{1,0:T(1,128)}', space=vmem, size = 0x12000, scoped, tag = 'internal scratch']
  %s0 = inlined_call_operand.vmem [shape: f32[4,8,64], index: 0, kind: input, shape index: {}]
  %s1 = inlined_call_operand.vmem [shape: f32[4,64,512], index: 1, kind: input, shape index: {}]
  %s2 = inlined_call_operand.vmem [shape: f32[4,8,512], index: 2, kind: output, shape index: {0}]
  %s3 = inlined_call_operand.vmem [shape: f32[4,8,1], index: 3, kind: output, shape index: {1}]
  %s4 = inlined_call_operand.vmem [shape: f32[4,8,1], index: 4, kind: output, shape index: {2}]
  %5 = xla_tuple %s2, %s3, %s4
  %s6 = sld [smem:[#allocation0]]
  $region57: #{generator_forward.15} parent=0
    _
  %s8 = ssub.s32 1, %s6
  %s9 = scalar_select 0, %s8, %s6
  loop: start=0, step=1, limit=6
  $region2: #{generator_forward.15} parent=0 // loop_pre_header
    _
  $region3: #{generator_forward.15} parent=0 // loop_header
    %s11 = sphi 0, %s15
    %p12 = scmp.ge.s32.totalorder %s11, 6
    %s21 = sphi 0, %s23
    %s24 = sphi 0, %s21
    %s25 = sphi 0, %s24
    %s41 = sphi 0, %s25
    %s47 = sphi 0, %s49
    %s50 = sphi 0, %s47
    %s51 = sphi 0, %s50
    %s67 = sphi 0, %s51
    %s73 = sphi 0, %s75
    %s76 = sphi 0, %s73
    %s77 = sphi 0, %s76
    %s93 = sphi 0, %s77
    %s99 = sphi 0, %s101
    %s102 = sphi 0, %s99
    %s103 = sphi 0, %s102
    %s119 = sphi 0, %s103
    %s125 = sphi 0, %s127
    %s128 = sphi 0, %s125
    %s129 = sphi 0, %s128
    %s145 = sphi 0, %s129
  $region4: #{generator_forward.15} parent=0 // loop_header_branch
    %14 = sbr.rel (%p12) target = $region8
  $region5: #{generator_forward.15} parent=0 // loop_body
    %s16 = ssub.s32 %s11, 1
    %s17 = ssub.s32 %s11, 2
    %s18 = sadd.s32 %s11, 1
    %s19 = ssub.s32 %s11, %s18
    %p20 = scmp.eq.s32.totalorder %s19, 0
    %s22 = sadd.s32 %s21, 1
    %s23 = scalar_select %p20, %s21, %s22
    %p26 = pneg %p20
    %p27 = scmp.eq.s32.totalorder %s11, 3
    %p28 = por %p26, %p27
    %p29 = scmp.ne.s32.totalorder %s21, %s24
    %p30 = scmp.eq.s32.totalorder %s11, 0
    %p31 = por %p29, %p30
    %p32 = scmp.ne.s32.totalorder %s21, %s24
    %p33 = scmp.eq.s32.totalorder %s16, 3
    %p34 = por %p32, %p33
    %p35 = scmp.ne.s32.totalorder %s24, %s25
    %p36 = scmp.eq.s32.totalorder %s16, 0
    %p37 = por %p35, %p36
    %p38 = scmp.ne.s32.totalorder %s24, %s25
    %p39 = scmp.eq.s32.totalorder %s17, 3
    %p40 = por %p38, %p39
    %p42 = scmp.ne.s32.totalorder %s25, %s41
    %p43 = scmp.eq.s32.totalorder %s17, 0
    %p44 = por %p42, %p43
    %s45 = ssub.s32 %s11, %s18
    %p46 = scmp.eq.s32.totalorder %s45, 0
    %s48 = sadd.s32 %s47, 1
    %s49 = scalar_select %p46, %s47, %s48
    %p52 = pneg %p46
    %p53 = scmp.eq.s32.totalorder %s11, 3
    %p54 = por %p52, %p53
    %p55 = scmp.ne.s32.totalorder %s47, %s50
    %p56 = scmp.eq.s32.totalorder %s11, 0
    %p57 = por %p55, %p56
    %p58 = scmp.ne.s32.totalorder %s47, %s50
    %p59 = scmp.eq.s32.totalorder %s16, 3
    %p60 = por %p58, %p59
    %p61 = scmp.ne.s32.totalorder %s50, %s51
    %p62 = scmp.eq.s32.totalorder %s16, 0
    %p63 = por %p61, %p62
    %p64 = scmp.ne.s32.totalorder %s50, %s51
    %p65 = scmp.eq.s32.totalorder %s17, 3
    %p66 = por %p64, %p65
    %p68 = scmp.ne.s32.totalorder %s51, %s67
    %p69 = scmp.eq.s32.totalorder %s17, 0
    %p70 = por %p68, %p69
    %s71 = ssub.s32 %s11, %s18
    %p72 = scmp.eq.s32.totalorder %s71, 0
    %s74 = sadd.s32 %s73, 1
    %s75 = scalar_select %p72, %s73, %s74
    %p78 = pneg %p72
    %p79 = scmp.eq.s32.totalorder %s11, 3
    %p80 = por %p78, %p79
    %p81 = scmp.ne.s32.totalorder %s73, %s76
    %p82 = scmp.eq.s32.totalorder %s11, 0
    %p83 = por %p81, %p82
    %p84 = scmp.ne.s32.totalorder %s73, %s76
    %p85 = scmp.eq.s32.totalorder %s16, 3
    %p86 = por %p84, %p85
    %p87 = scmp.ne.s32.totalorder %s76, %s77
    %p88 = scmp.eq.s32.totalorder %s16, 0
    %p89 = por %p87, %p88
    %p90 = scmp.ne.s32.totalorder %s76, %s77
    %p91 = scmp.eq.s32.totalorder %s17, 3
    %p92 = por %p90, %p91
    %p94 = scmp.ne.s32.totalorder %s77, %s93
    %p95 = scmp.eq.s32.totalorder %s17, 0
    %p96 = por %p94, %p95
    %s97 = ssub.s32 %s11, %s18
    %p98 = scmp.eq.s32.totalorder %s97, 0
    %s100 = sadd.s32 %s99, 1
    %s101 = scalar_select %p98, %s99, %s100
    %p104 = pneg %p98
    %p105 = scmp.eq.s32.totalorder %s11, 3
    %p106 = por %p104, %p105
    %p107 = scmp.ne.s32.totalorder %s99, %s102
    %p108 = scmp.eq.s32.totalorder %s11, 0
    %p109 = por %p107, %p108
    %p110 = scmp.ne.s32.totalorder %s99, %s102
    %p111 = scmp.eq.s32.totalorder %s16, 3
    %p112 = por %p110, %p111
    %p113 = scmp.ne.s32.totalorder %s102, %s103
    %p114 = scmp.eq.s32.totalorder %s16, 0
    %p115 = por %p113, %p114
    %p116 = scmp.ne.s32.totalorder %s102, %s103
    %p117 = scmp.eq.s32.totalorder %s17, 3
    %p118 = por %p116, %p117
    %p120 = scmp.ne.s32.totalorder %s103, %s119
    %p121 = scmp.eq.s32.totalorder %s17, 0
    %p122 = por %p120, %p121
    %s123 = ssub.s32 %s11, %s18
    %p124 = scmp.eq.s32.totalorder %s123, 0
    %s126 = sadd.s32 %s125, 1
    %s127 = scalar_select %p124, %s125, %s126
    %p130 = pneg %p124
    %p131 = scmp.eq.s32.totalorder %s11, 3
    %p132 = por %p130, %p131
    %p133 = scmp.ne.s32.totalorder %s125, %s128
    %p134 = scmp.eq.s32.totalorder %s11, 0
    %p135 = por %p133, %p134
    %p136 = scmp.ne.s32.totalorder %s125, %s128
    %p137 = scmp.eq.s32.totalorder %s16, 3
    %p138 = por %p136, %p137
    %p139 = scmp.ne.s32.totalorder %s128, %s129
    %p140 = scmp.eq.s32.totalorder %s16, 0
    %p141 = por %p139, %p140
    %p142 = scmp.ne.s32.totalorder %s128, %s129
    %p143 = scmp.eq.s32.totalorder %s17, 3
    %p144 = por %p142, %p143
    %p146 = scmp.ne.s32.totalorder %s129, %s145
    %p147 = scmp.eq.s32.totalorder %s17, 0
    %p148 = por %p146, %p147
    %p149 = scmp.le.s32.totalorder 1, %s11
    %p150 = scmp.lt.s32.totalorder %s11, 5
    %p151 = pnand %p149, %p150
    %p152 = pneg %p151
    // Predicated region
    $region9: #{generator_forward.15} parent=5 // pred_check
      _
    $region10: #{generator_forward.15} parent=5 // pred_check_branch
      %154 = sbr.rel (%p151) target = $region12
    $region11: #{generator_forward.15} parent=5 // pred_region
      %s155 = ssub.s32 %s11, 1
    $region12: #{generator_forward.15} parent=5 // pred_fallthru
      _
    %p156 = scmp.lt.s32.totalorder %s11, 4
    // Predicated region
    $region13: #{generator_forward.15} parent=5 // pred_check
      %p157 = pneg %p156
    $region14: #{generator_forward.15} parent=5 // pred_check_branch
      %159 = sbr.rel (%p157) target = $region16
    $region15: #{generator_forward.15} parent=5 // pred_region
      // Predicated region
      $region17: #{generator_forward.15} parent=15 // pred_check
        %p160 = pneg %p31
      $region18: #{generator_forward.15} parent=15 // pred_check_branch
        %162 = sbr.rel (%p160) target = $region20
      $region19: #{generator_forward.15} parent=15 // pred_region
        %p163 = scmp.lt.s32.totalorder %s11, 3
        %s164 = scalar_select %p163, %s11, 3
        %s165 = smul.addr %s164, 8
        %s166 = scalar_lea.vmem %s0, %s165
      $region20: #{generator_forward.15} parent=15 // pred_fallthru
        _
      // Predicated region
      $region21: #{generator_forward.15} parent=15 // pred_check
        %p167 = pneg %p57
      $region22: #{generator_forward.15} parent=15 // pred_check_branch
        %169 = sbr.rel (%p167) target = $region24
      $region23: #{generator_forward.15} parent=15 // pred_region
        %p170 = scmp.lt.s32.totalorder %s11, 3
        %s171 = scalar_select %p170, %s11, 3
        %s172 = smul.addr %s171, 32
        %s173 = smul.addr %s172, 8
        %s174 = scalar_lea.vmem %s1, %s173
      $region24: #{generator_forward.15} parent=15 // pred_fallthru
        _
    $region16: #{generator_forward.15} parent=5 // pred_fallthru
      _
    %p175 = scmp.le.s32.totalorder 1, %s11
    %p176 = scmp.lt.s32.totalorder %s11, 5
    %p177 = pnand %p175, %p176
    %p178 = pneg %p177
    // Predicated region
    $region25: #{generator_forward.15} parent=5 // pred_check
      _
    $region26: #{generator_forward.15} parent=5 // pred_check_branch
      %180 = sbr.rel (%p177) target = $region28
    $region27: #{generator_forward.15} parent=5 // pred_region
      %s181 = ssub.s32 %s11, 1
      %p182 = scmp.lt.s32.totalorder %s16, 3
      %s183 = scalar_select %p182, %s16, 3
      %s184 = smul.addr %s183, 8
      %s185 = scalar_lea.vmem %s0, %s184
      %p186 = pneg %p37
      %p187 = pneg %p34
      %p188 = scmp.lt.s32.totalorder %s16, 3
      %s189 = scalar_select %p188, %s16, 3
      %s190 = smul.addr %s189, 32
      %s191 = smul.addr %s190, 8
      %s192 = scalar_lea.vmem %s1, %s191
      %p193 = pneg %p63
      %p194 = pneg %p60
      %p195 = pneg %p89
      %p196 = pneg %p86
      %p197 = scmp.lt.s32.totalorder %s16, 3
      %s198 = scalar_select %p197, %s16, 3
      %s199 = smul.addr %s198, 4
      %s200 = smul.addr %s199, 8
      %s201 = scalar_lea.vmem %s2, %s200
      %p202 = pneg %p115
      %p203 = pneg %p112
      %p204 = scmp.lt.s32.totalorder %s16, 3
      %s205 = scalar_select %p204, %s16, 3
      %s206 = smul.addr %s205, 8
      %s207 = scalar_lea.vmem %s3, %s206
      %p208 = pneg %p141
      %p209 = pneg %p138
      %p210 = scmp.lt.s32.totalorder %s16, 3
      %s211 = scalar_select %p210, %s16, 3
      %s212 = smul.addr %s211, 8
      %s213 = scalar_lea.vmem %s4, %s212
      %p214 = scmp.lt.s32.totalorder %s16, 3
      %s215 = scalar_select %p214, %s16, 3
      %s216 = smul.addr %s215, 8
      %s217 = scalar_lea.vmem %s0, %s216
      %p218 = scmp.lt.s32.totalorder %s16, 3
      %s219 = scalar_select %p218, %s16, 3
      %s220 = smul.addr %s219, 32
      %s221 = smul.addr %s220, 8
      %s222 = scalar_lea.vmem %s1, %s221
      %p223 = scmp.lt.s32.totalorder %s16, 3
      %s224 = scalar_select %p223, %s16, 3
      %s225 = smul.addr %s224, 4
      %s226 = smul.addr %s225, 8
      %s227 = scalar_lea.vmem %s2, %s226
      %p228 = scmp.lt.s32.totalorder %s16, 3
      %s229 = scalar_select %p228, %s16, 3
      %s230 = smul.addr %s229, 8
      %s231 = scalar_lea.vmem %s3, %s230
      %p232 = scmp.lt.s32.totalorder %s16, 3
      %s233 = scalar_select %p232, %s16, 3
      %s234 = smul.addr %s233, 8
      %s235 = scalar_lea.vmem %s4, %s234
      %v236 = vld [vmem:[%s217] sm:$0xff]
      %v237 = vld [vmem:[%s222] sm:$0xff]
      %v238 = vld [vmem:[%s222 + $0x8] sm:$0xff]
      %v239 = vld [vmem:[%s222 + $0x10] sm:$0xff]
      %v240 = vld [vmem:[%s222 + $0x18] sm:$0xff]
      %v241 = vld [vmem:[%s222 + $0x20] sm:$0xff]
      %v242 = vld [vmem:[%s222 + $0x28] sm:$0xff]
      %v243 = vld [vmem:[%s222 + $0x30] sm:$0xff]
      %v244 = vld [vmem:[%s222 + $0x38] sm:$0xff]
      %v245 = vld [vmem:[%s222 + $0x40] sm:$0xff]
      %v246 = vld [vmem:[%s222 + $0x48] sm:$0xff]
      %v247 = vld [vmem:[%s222 + $0x50] sm:$0xff]
      %v248 = vld [vmem:[%s222 + $0x58] sm:$0xff]
      %v249 = vld [vmem:[%s222 + $0x60] sm:$0xff]
      %v250 = vld [vmem:[%s222 + $0x68] sm:$0xff]
      %v251 = vld [vmem:[%s222 + $0x70] sm:$0xff]
      %v252 = vld [vmem:[%s222 + $0x78] sm:$0xff]
      %v253 = vld [vmem:[%s222 + $0x80] sm:$0xff]
      %v254 = vld [vmem:[%s222 + $0x88] sm:$0xff]
      %v255 = vld [vmem:[%s222 + $0x90] sm:$0xff]
      %v256 = vld [vmem:[%s222 + $0x98] sm:$0xff]
      %v257 = vld [vmem:[%s222 + $0xa0] sm:$0xff]
      %v258 = vld [vmem:[%s222 + $0xa8] sm:$0xff]
      %v259 = vld [vmem:[%s222 + $0xb0] sm:$0xff]
      %v260 = vld [vmem:[%s222 + $0xb8] sm:$0xff]
      %v261 = vld [vmem:[%s222 + $0xc0] sm:$0xff]
      %v262 = vld [vmem:[%s222 + $0xc8] sm:$0xff]
      %v263 = vld [vmem:[%s222 + $0xd0] sm:$0xff]
      %v264 = vld [vmem:[%s222 + $0xd8] sm:$0xff]
      %v265 = vld [vmem:[%s222 + $0xe0] sm:$0xff]
      %v266 = vld [vmem:[%s222 + $0xe8] sm:$0xff]
      %v267 = vld [vmem:[%s222 + $0xf0] sm:$0xff]
      %v268 = vld [vmem:[%s222 + $0xf8] sm:$0xff]
      %vm269 = vcmask 523264
      %v271 = vsel %vm269, %v236, 0
      %273 = vmatprep.subr.mxu0 %v238
      %274 = vmatpush1.msra.mxu0 %v237
      %275 = vmatprep.subr.mxu0 %v242
      %276 = vmatpush1.msra.mxu0 %v241
      %277 = vmatprep.subr.mxu0 %v246
      %278 = vmatpush1.msra.mxu0 %v245
      %279 = vmatprep.subr.mxu0 %v250
      %280 = vmatpush1.msra.mxu0 %v249
      %281 = vmatprep.subr.mxu0 %v254
      %282 = vmatpush1.msra.mxu0 %v253
      %283 = vmatprep.subr.mxu0 %v258
      %284 = vmatpush1.msra.mxu0 %v257
      %285 = vmatprep.subr.mxu0 %v262
      %286 = vmatpush1.msra.mxu0 %v261
      %287 = vmatprep.subr.mxu0 %v266
      %288 = vmatpush1.msra.mxu0 %v265
      %289 = vmatprep.subr.mxu0 0.0
      %290 = vmatpush1.msra.mxu0 0.0
      %291 = vmatprep.subr.mxu0 0.0
      %292 = vmatpush1.msra.mxu0 0.0
      %293 = vmatprep.subr.mxu0 0.0
      %294 = vmatpush1.msra.mxu0 0.0
      %295 = vmatprep.subr.mxu0 0.0
      %296 = vmatpush1.msra.mxu0 0.0
      %297 = vmatprep.subr.mxu0 0.0
      %298 = vmatpush1.msra.mxu0 0.0
      %299 = vmatprep.subr.mxu0 0.0
      %300 = vmatpush1.msra.mxu0 0.0
      %301 = vmatprep.subr.mxu0 0.0
      %302 = vmatpush1.msra.mxu0 0.0
      %303 = vmatprep.subr.mxu0 0.0
      %304 = vmatpush1.msra.mxu0 0.0
      %305 = vmatprep.subr.mxu0 0.0
      %306 = vmatpush1.msra.mxu0 0.0
      %307 = vmatprep.subr.mxu0 0.0
      %308 = vmatpush1.msra.mxu0 0.0
      %309 = vmatprep.subr.mxu0 0.0
      %310 = vmatpush1.msra.mxu0 0.0
      %311 = vmatprep.subr.mxu0 0.0
      %312 = vmatpush1.msra.mxu0 0.0
      %313 = vmatprep.subr.mxu0 0.0
      %314 = vmatpush1.msra.mxu0 0.0
      %315 = vmatprep.subr.mxu0 0.0
      %316 = vmatpush1.msra.mxu0 0.0
      %317 = vmatprep.subr.mxu0 0.0
      %318 = vmatpush1.msra.mxu0 0.0
      %319 = vmatprep.subr.mxu0 0.0
      %320 = vmatpush1.msra.mxu0 0.0
      %321 = vmatprep.subr.mxu0 0.0
      %322 = vmatpush1.msra.mxu0 0.0
      %323 = vmatprep.subr.mxu0 0.0
      %324 = vmatpush1.msra.mxu0 0.0
      %325 = vmatprep.subr.mxu0 0.0
      %326 = vmatpush1.msra.mxu0 0.0
      %327 = vmatprep.subr.mxu0 0.0
      %328 = vmatpush1.msra.mxu0 0.0
      %329 = vmatprep.subr.mxu0 0.0
      %330 = vmatpush1.msra.mxu0 0.0
      %331 = vmatprep.subr.mxu0 0.0
      %332 = vmatpush1.msra.mxu0 0.0
      %333 = vmatprep.subr.mxu0 0.0
      %334 = vmatpush1.msra.mxu0 0.0
      %335 = vmatprep.subr.mxu0 0.0
      %336 = vmatpush1.msra.mxu0 0.0
      %337 = vmatprep.mubr.f32.mxu0 0.0
      %338 = vmatmul.mubr.f32.gmra.mrb[0].mxu0 %v271
      %v339 = vpop.f32.mrb[0].mxu0
      %v340 = vadd.f32 0.0, %v339
      %v341 = vpop.f32.mrb[0].mxu0
      %v342 = vadd.f32 0.0, %v341
      %343 = vdwg.mxu0
      %344 = vmatprep.subr.mxu0 %v240
      %345 = vmatpush1.msra.mxu0 %v239
      %346 = vmatprep.subr.mxu0 %v244
      %347 = vmatpush1.msra.mxu0 %v243
      %348 = vmatprep.subr.mxu0 %v248
      %349 = vmatpush1.msra.mxu0 %v247
      %350 = vmatprep.subr.mxu0 %v252
      %351 = vmatpush1.msra.mxu0 %v251
      %352 = vmatprep.subr.mxu0 %v256
      %353 = vmatpush1.msra.mxu0 %v255
      %354 = vmatprep.subr.mxu0 %v260
      %355 = vmatpush1.msra.mxu0 %v259
      %356 = vmatprep.subr.mxu0 %v264
      %357 = vmatpush1.msra.mxu0 %v263
      %358 = vmatprep.subr.mxu0 %v268
      %359 = vmatpush1.msra.mxu0 %v267
      %360 = vmatprep.subr.mxu0 0.0
      %361 = vmatpush1.msra.mxu0 0.0
      %362 = vmatprep.subr.mxu0 0.0
      %363 = vmatpush1.msra.mxu0 0.0
      %364 = vmatprep.subr.mxu0 0.0
      %365 = vmatpush1.msra.mxu0 0.0
      %366 = vmatprep.subr.mxu0 0.0
      %367 = vmatpush1.msra.mxu0 0.0
      %368 = vmatprep.subr.mxu0 0.0
      %369 = vmatpush1.msra.mxu0 0.0
      %370 = vmatprep.subr.mxu0 0.0
      %371 = vmatpush1.msra.mxu0 0.0
      %372 = vmatprep.subr.mxu0 0.0
      %373 = vmatpush1.msra.mxu0 0.0
      %374 = vmatprep.subr.mxu0 0.0
      %375 = vmatpush1.msra.mxu0 0.0
      %376 = vmatprep.subr.mxu0 0.0
      %377 = vmatpush1.msra.mxu0 0.0
      %378 = vmatprep.subr.mxu0 0.0
      %379 = vmatpush1.msra.mxu0 0.0
      %380 = vmatprep.subr.mxu0 0.0
      %381 = vmatpush1.msra.mxu0 0.0
      %382 = vmatprep.subr.mxu0 0.0
      %383 = vmatpush1.msra.mxu0 0.0
      %384 = vmatprep.subr.mxu0 0.0
      %385 = vmatpush1.msra.mxu0 0.0
      %386 = vmatprep.subr.mxu0 0.0
      %387 = vmatpush1.msra.mxu0 0.0
      %388 = vmatprep.subr.mxu0 0.0
      %389 = vmatpush1.msra.mxu0 0.0
      %390 = vmatprep.subr.mxu0 0.0
      %391 = vmatpush1.msra.mxu0 0.0
      %392 = vmatprep.subr.mxu0 0.0
      %393 = vmatpush1.msra.mxu0 0.0
      %394 = vmatprep.subr.mxu0 0.0
      %395 = vmatpush1.msra.mxu0 0.0
      %396 = vmatprep.subr.mxu0 0.0
      %397 = vmatpush1.msra.mxu0 0.0
      %398 = vmatprep.subr.mxu0 0.0
      %399 = vmatpush1.msra.mxu0 0.0
      %400 = vmatprep.subr.mxu0 0.0
      %401 = vmatpush1.msra.mxu0 0.0
      %402 = vmatprep.subr.mxu0 0.0
      %403 = vmatpush1.msra.mxu0 0.0
      %404 = vmatprep.subr.mxu0 0.0
      %405 = vmatpush1.msra.mxu0 0.0
      %406 = vmatprep.subr.mxu0 0.0
      %407 = vmatpush1.msra.mxu0 0.0
      %408 = vmatprep.mubr.f32.mxu0 0.0
      %409 = vmatmul.mubr.f32.gmra.mrb[0].mxu0 %v271
      %v410 = vpop.f32.mrb[0].mxu0
      %v411 = vadd.f32 0.0, %v410
      %v412 = vpop.f32.mrb[0].mxu0
      %v413 = vadd.f32 0.0, %v412
      %414 = vdwg.mxu0
      %415 = vst [vmem:[%s227] sm:$0xff] %v340
      %416 = vst [vmem:[%s227 + $0x8] sm:$0xff] %v342
      %417 = vst [vmem:[%s227 + $0x10] sm:$0xff] %v411
      %418 = vst [vmem:[%s227 + $0x18] sm:$0xff] %v413
      %v419 = vadd.f32 %v340, %v342
      %v420 = vadd.f32 %v419, %v411
      %v421 = vadd.f32 %v420, %v413
      %422 = vadd.xlane.f32.xlu0 %v421
      %v423 = vpop.xlane.xlu0 %422
      %vm424 = vcmask 7168
      %425 = vst.msk [vmem:[%s231] sm:$0xff] %vm424, %v423
      %v426 = vmul.f32 %v340, %v340
      %v427 = vmul.f32 %v342, %v342
      %v428 = vmul.f32 %v411, %v411
      %v429 = vmul.f32 %v413, %v413
      %v430 = vadd.f32 %v426, %v427
      %v431 = vadd.f32 %v430, %v428
      %v432 = vadd.f32 %v431, %v429
      %433 = vadd.xlane.f32.xlu0 %v432
      %v434 = vpop.xlane.xlu0 %433
      %435 = vst.msk [vmem:[%s235] sm:$0xff] %vm424, %v434
      %p436 = scmp.lt.s32.totalorder %s16, 3
      %s437 = scalar_select %p436, %s16, 3
      %s438 = smul.addr %s437, 4
      %s439 = smul.addr %s438, 8
      %s440 = scalar_lea.vmem %s2, %s439
      %p441 = scmp.lt.s32.totalorder %s16, 3
      %s442 = scalar_select %p441, %s16, 3
      %s443 = smul.addr %s442, 8
      %s444 = scalar_lea.vmem %s3, %s443
      %p445 = scmp.lt.s32.totalorder %s16, 3
      %s446 = scalar_select %p445, %s16, 3
      %s447 = smul.addr %s446, 8
      %s448 = scalar_lea.vmem %s4, %s447
      // Predicated region
      $region29: #{generator_forward.15} parent=27 // pred_check
        %p449 = pneg %p86
      $region30: #{generator_forward.15} parent=27 // pred_check_branch
        %451 = sbr.rel (%p449) target = $region32
      $region31: #{generator_forward.15} parent=27 // pred_region
        _
      $region32: #{generator_forward.15} parent=27 // pred_fallthru
        _
      // Predicated region
      $region33: #{generator_forward.15} parent=27 // pred_check
        %p452 = pneg %p112
      $region34: #{generator_forward.15} parent=27 // pred_check_branch
        %454 = sbr.rel (%p452) target = $region36
      $region35: #{generator_forward.15} parent=27 // pred_region
        _
      $region36: #{generator_forward.15} parent=27 // pred_fallthru
        _
      // Predicated region
      $region37: #{generator_forward.15} parent=27 // pred_check
        %p455 = pneg %p138
      $region38: #{generator_forward.15} parent=27 // pred_check_branch
        %457 = sbr.rel (%p455) target = $region40
      $region39: #{generator_forward.15} parent=27 // pred_region
        _
      $region40: #{generator_forward.15} parent=27 // pred_fallthru
        _
    $region28: #{generator_forward.15} parent=5 // pred_fallthru
      _
    %p458 = scmp.le.s32.totalorder 2, %s11
    // Predicated region
    $region41: #{generator_forward.15} parent=5 // pred_check
      %p459 = pneg %p458
    $region42: #{generator_forward.15} parent=5 // pred_check_branch
      %461 = sbr.rel (%p459) target = $region44
    $region43: #{generator_forward.15} parent=5 // pred_region
      %s462 = ssub.s32 %s11, 2
      // Predicated region
      $region45: #{generator_forward.15} parent=43 // pred_check
        %p463 = pneg %p92
      $region46: #{generator_forward.15} parent=43 // pred_check_branch
        %465 = sbr.rel (%p463) target = $region48
      $region47: #{generator_forward.15} parent=43 // pred_region
        %p466 = scmp.lt.s32.totalorder %s17, 3
        %s467 = scalar_select %p466, %s17, 3
        %s468 = smul.addr %s467, 4
        %s469 = smul.addr %s468, 8
        %s470 = scalar_lea.vmem %s2, %s469
      $region48: #{generator_forward.15} parent=43 // pred_fallthru
        _
      // Predicated region
      $region49: #{generator_forward.15} parent=43 // pred_check
        %p471 = pneg %p118
      $region50: #{generator_forward.15} parent=43 // pred_check_branch
        %473 = sbr.rel (%p471) target = $region52
      $region51: #{generator_forward.15} parent=43 // pred_region
        %p474 = scmp.lt.s32.totalorder %s17, 3
        %s475 = scalar_select %p474, %s17, 3
        %s476 = smul.addr %s475, 8
        %s477 = scalar_lea.vmem %s3, %s476
      $region52: #{generator_forward.15} parent=43 // pred_fallthru
        _
      // Predicated region
      $region53: #{generator_forward.15} parent=43 // pred_check
        %p478 = pneg %p144
      $region54: #{generator_forward.15} parent=43 // pred_check_branch
        %480 = sbr.rel (%p478) target = $region56
      $region55: #{generator_forward.15} parent=43 // pred_region
        %p481 = scmp.lt.s32.totalorder %s17, 3
        %s482 = scalar_select %p481, %s17, 3
        %s483 = smul.addr %s482, 8
        %s484 = scalar_lea.vmem %s4, %s483
      $region56: #{generator_forward.15} parent=43 // pred_fallthru
        _
    $region44: #{generator_forward.15} parent=5 // pred_fallthru
      _
  $region6: #{generator_forward.15} parent=0 // loop_footer
    %s15 = sadd.s32 1, %s11
  $region7: #{generator_forward.15} parent=0 // loop_footer_branch
    %10 = sbr.rel target = $region3
  $region8: #{generator_forward.15} parent=0 // loop_exit
    _

// kernel: generator_forward.16
$region0: #{generator_forward.16}
  #allocation0 [shape = 'u32[]', space=smem, size = 0x4, offset = 0x4, fixed_abs, tag = 'smem constant byte address 0x4 - core index']
  #allocation1 [shape = 'u32[144,128]{1,0:T(1,128)}', space=vmem, size = 0x12000, scoped, tag = 'internal scratch']
  %s0 = inlined_call_operand.vmem [shape: f32[8,2048], index: 0, kind: input, shape index: {}]
  %s1 = inlined_call_operand.vmem [shape: f32[8,1], index: 1, kind: input, shape index: {}]
  %s2 = inlined_call_operand.vmem [shape: f32[8,1], index: 2, kind: input, shape index: {}]
  %s3 = inlined_call_operand.vmem [shape: f32[8,2048], index: 3, kind: output, shape index: {}]
  %s4 = sld [smem:[#allocation0]]
  $region45: #{generator_forward.16} parent=0
    _
  %s6 = ssub.s32 1, %s4
  %s7 = scalar_select 0, %s6, %s4
  loop: start=0, step=1, limit=4
  $region2: #{generator_forward.16} parent=0 // loop_pre_header
    _
  $region3: #{generator_forward.16} parent=0 // loop_header
    %s9 = sphi 0, %s13
    %p10 = scmp.ge.s32.totalorder %s9, 4
    %s19 = sphi 0, %s21
    %s22 = sphi 0, %s19
    %s23 = sphi 0, %s22
    %s39 = sphi 0, %s23
    %s43 = sphi 0, %s43
    %s45 = sphi 0, %s43
    %s46 = sphi 0, %s45
    %s60 = sphi 0, %s46
    %s64 = sphi 0, %s64
    %s66 = sphi 0, %s64
    %s67 = sphi 0, %s66
    %s81 = sphi 0, %s67
    %s87 = sphi 0, %s89
    %s90 = sphi 0, %s87
    %s91 = sphi 0, %s90
    %s107 = sphi 0, %s91
  $region4: #{generator_forward.16} parent=0 // loop_header_branch
    %12 = sbr.rel (%p10) target = $region8
  $region5: #{generator_forward.16} parent=0 // loop_body
    %s14 = ssub.s32 %s9, 1
    %s15 = ssub.s32 %s9, 2
    %s16 = sadd.s32 %s9, 1
    %s17 = ssub.s32 %s9, %s16
    %p18 = scmp.eq.s32.totalorder %s17, 0
    %s20 = sadd.s32 %s19, 1
    %s21 = scalar_select %p18, %s19, %s20
    %p24 = pneg %p18
    %p25 = scmp.eq.s32.totalorder %s9, 1
    %p26 = por %p24, %p25
    %p27 = scmp.ne.s32.totalorder %s19, %s22
    %p28 = scmp.eq.s32.totalorder %s9, 0
    %p29 = por %p27, %p28
    %p30 = scmp.ne.s32.totalorder %s19, %s22
    %p31 = scmp.eq.s32.totalorder %s14, 1
    %p32 = por %p30, %p31
    %p33 = scmp.ne.s32.totalorder %s22, %s23
    %p34 = scmp.eq.s32.totalorder %s14, 0
    %p35 = por %p33, %p34
    %p36 = scmp.ne.s32.totalorder %s22, %s23
    %p37 = scmp.eq.s32.totalorder %s15, 1
    %p38 = por %p36, %p37
    %p40 = scmp.ne.s32.totalorder %s23, %s39
    %p41 = scmp.eq.s32.totalorder %s15, 0
    %p42 = por %p40, %p41
    %s44 = sadd.s32 %s43, 1
    %p47 = scmp.eq.s32.totalorder %s9, 1
    %p48 = scmp.ne.s32.totalorder %s43, %s45
    %p49 = scmp.eq.s32.totalorder %s9, 0
    %p50 = por %p48, %p49
    %p51 = scmp.ne.s32.totalorder %s43, %s45
    %p52 = scmp.eq.s32.totalorder %s14, 1
    %p53 = por %p51, %p52
    %p54 = scmp.ne.s32.totalorder %s45, %s46
    %p55 = scmp.eq.s32.totalorder %s14, 0
    %p56 = por %p54, %p55
    %p57 = scmp.ne.s32.totalorder %s45, %s46
    %p58 = scmp.eq.s32.totalorder %s15, 1
    %p59 = por %p57, %p58
    %p61 = scmp.ne.s32.totalorder %s46, %s60
    %p62 = scmp.eq.s32.totalorder %s15, 0
    %p63 = por %p61, %p62
    %s65 = sadd.s32 %s64, 1
    %p68 = scmp.eq.s32.totalorder %s9, 1
    %p69 = scmp.ne.s32.totalorder %s64, %s66
    %p70 = scmp.eq.s32.totalorder %s9, 0
    %p71 = por %p69, %p70
    %p72 = scmp.ne.s32.totalorder %s64, %s66
    %p73 = scmp.eq.s32.totalorder %s14, 1
    %p74 = por %p72, %p73
    %p75 = scmp.ne.s32.totalorder %s66, %s67
    %p76 = scmp.eq.s32.totalorder %s14, 0
    %p77 = por %p75, %p76
    %p78 = scmp.ne.s32.totalorder %s66, %s67
    %p79 = scmp.eq.s32.totalorder %s15, 1
    %p80 = por %p78, %p79
    %p82 = scmp.ne.s32.totalorder %s67, %s81
    %p83 = scmp.eq.s32.totalorder %s15, 0
    %p84 = por %p82, %p83
    %s85 = ssub.s32 %s9, %s16
    %p86 = scmp.eq.s32.totalorder %s85, 0
    %s88 = sadd.s32 %s87, 1
    %s89 = scalar_select %p86, %s87, %s88
    %p92 = pneg %p86
    %p93 = scmp.eq.s32.totalorder %s9, 1
    %p94 = por %p92, %p93
    %p95 = scmp.ne.s32.totalorder %s87, %s90
    %p96 = scmp.eq.s32.totalorder %s9, 0
    %p97 = por %p95, %p96
    %p98 = scmp.ne.s32.totalorder %s87, %s90
    %p99 = scmp.eq.s32.totalorder %s14, 1
    %p100 = por %p98, %p99
    %p101 = scmp.ne.s32.totalorder %s90, %s91
    %p102 = scmp.eq.s32.totalorder %s14, 0
    %p103 = por %p101, %p102
    %p104 = scmp.ne.s32.totalorder %s90, %s91
    %p105 = scmp.eq.s32.totalorder %s15, 1
    %p106 = por %p104, %p105
    %p108 = scmp.ne.s32.totalorder %s91, %s107
    %p109 = scmp.eq.s32.totalorder %s15, 0
    %p110 = por %p108, %p109
    %p111 = scmp.le.s32.totalorder 1, %s9
    %p112 = scmp.lt.s32.totalorder %s9, 3
    %p113 = pnand %p111, %p112
    %p114 = pneg %p113
    // Predicated region
    $region9: #{generator_forward.16} parent=5 // pred_check
      _
    $region10: #{generator_forward.16} parent=5 // pred_check_branch
      %116 = sbr.rel (%p113) target = $region12
    $region11: #{generator_forward.16} parent=5 // pred_region
      %s117 = ssub.s32 %s9, 1
      // Predicated region
      $region13: #{generator_forward.16} parent=11 // pred_check
        %p118 = pneg %p56
      $region14: #{generator_forward.16} parent=11 // pred_check_branch
        %120 = sbr.rel (%p118) target = $region16
      $region15: #{generator_forward.16} parent=11 // pred_region
        _
      $region16: #{generator_forward.16} parent=11 // pred_fallthru
        _
      // Predicated region
      $region17: #{generator_forward.16} parent=11 // pred_check
        %p121 = pneg %p77
      $region18: #{generator_forward.16} parent=11 // pred_check_branch
        %123 = sbr.rel (%p121) target = $region20
      $region19: #{generator_forward.16} parent=11 // pred_region
        _
      $region20: #{generator_forward.16} parent=11 // pred_fallthru
        _
    $region12: #{generator_forward.16} parent=5 // pred_fallthru
      _
    %p124 = scmp.lt.s32.totalorder %s9, 2
    // Predicated region
    $region21: #{generator_forward.16} parent=5 // pred_check
      %p125 = pneg %p124
    $region22: #{generator_forward.16} parent=5 // pred_check_branch
      %127 = sbr.rel (%p125) target = $region24
    $region23: #{generator_forward.16} parent=5 // pred_region
      // Predicated region
      $region25: #{generator_forward.16} parent=23 // pred_check
        %p128 = pneg %p29
      $region26: #{generator_forward.16} parent=23 // pred_check_branch
        %130 = sbr.rel (%p128) target = $region28
      $region27: #{generator_forward.16} parent=23 // pred_region
        %s131 = smul.u32 8, %s9
        %p132 = scmp.lt.s32.totalorder %s131, 15
        %s133 = scalar_select %p132, %s131, 15
        %s134 = smul.addr %s133, 8
        %s135 = scalar_lea.vmem %s0, %s134
        %s136 = smul.u32 8, %s9
      $region28: #{generator_forward.16} parent=23 // pred_fallthru
        _
    $region24: #{generator_forward.16} parent=5 // pred_fallthru
      _
    %p137 = scmp.le.s32.totalorder 1, %s9
    %p138 = scmp.lt.s32.totalorder %s9, 3
    %p139 = pnand %p137, %p138
    %p140 = pneg %p139
    // Predicated region
    $region29: #{generator_forward.16} parent=5 // pred_check
      _
    $region30: #{generator_forward.16} parent=5 // pred_check_branch
      %142 = sbr.rel (%p139) target = $region32
    $region31: #{generator_forward.16} parent=5 // pred_region
      %s143 = ssub.s32 %s9, 1
      %s144 = smul.u32 8, %s14
      %p145 = scmp.lt.s32.totalorder %s144, 15
      %s146 = scalar_select %p145, %s144, 15
      %s147 = smul.addr %s146, 8
      %s148 = scalar_lea.vmem %s0, %s147
      %p149 = pneg %p35
      %p150 = pneg %p32
      %p151 = pneg %p56
      %p152 = pneg %p53
      %p153 = pneg %p77
      %p154 = pneg %p74
      %p155 = pneg %p103
      %p156 = pneg %p100
      %s157 = smul.u32 8, %s14
      %p158 = scmp.lt.s32.totalorder %s157, 15
      %s159 = scalar_select %p158, %s157, 15
      %s160 = smul.addr %s159, 8
      %s161 = scalar_lea.vmem %s3, %s160
      %s162 = smul.u32 8, %s14
      %p163 = scmp.lt.s32.totalorder %s162, 15
      %s164 = scalar_select %p163, %s162, 15
      %s165 = smul.addr %s164, 8
      %s166 = scalar_lea.vmem %s0, %s165
      %s167 = smul.u32 8, %s14
      %s168 = smul.u32 8, %s14
      %p169 = scmp.lt.s32.totalorder %s168, 15
      %s170 = scalar_select %p169, %s168, 15
      %s171 = smul.addr %s170, 8
      %s172 = scalar_lea.vmem %s3, %s171
      %s173 = smul.u32 8, %s14
      %v174 = vld [vmem:[%s166] sm:$0xff]
      %v175 = vld [vmem:[%s166 + $0x8] sm:$0xff]
      %v176 = vld [vmem:[%s166 + $0x10] sm:$0xff]
      %v177 = vld [vmem:[%s166 + $0x18] sm:$0xff]
      %v178 = vld [vmem:[%s166 + $0x20] sm:$0xff]
      %v179 = vld [vmem:[%s166 + $0x28] sm:$0xff]
      %v180 = vld [vmem:[%s166 + $0x30] sm:$0xff]
      %v181 = vld [vmem:[%s166 + $0x38] sm:$0xff]
      %v182 = vld [vmem:[%s1] sm:$0xff]
      %184 = vset.pattern.permute.xlu0 0
      %185 = vperm.xlu0 %184, %v182
      %v186 = vpop.permute.xlu0 %185
      %v188 = vmul.f32 %v174, %v186
      %v189 = vmul.f32 %v175, %v186
      %v190 = vmul.f32 %v176, %v186
      %v191 = vmul.f32 %v177, %v186
      %v192 = vmul.f32 %v178, %v186
      %v193 = vmul.f32 %v179, %v186
      %v194 = vmul.f32 %v180, %v186
      %v195 = vmul.f32 %v181, %v186
      %v196 = vld [vmem:[%s2] sm:$0xff]
      %198 = vset.pattern.permute.xlu0 0
      %199 = vperm.xlu0 %198, %v196
      %v200 = vpop.permute.xlu0 %199
      %v202 = vadd.f32 %v188, %v200
      %v203 = vadd.f32 %v189, %v200
      %v204 = vadd.f32 %v190, %v200
      %v205 = vadd.f32 %v191, %v200
      %v206 = vadd.f32 %v192, %v200
      %v207 = vadd.f32 %v193, %v200
      %v208 = vadd.f32 %v194, %v200
      %v209 = vadd.f32 %v195, %v200
      %v210 = vmax.f32 %v202, 0.0
      %v211 = vmax.f32 %v203, 0.0
      %v212 = vmax.f32 %v204, 0.0
      %v213 = vmax.f32 %v205, 0.0
      %v214 = vmax.f32 %v206, 0.0
      %v215 = vmax.f32 %v207, 0.0
      %v216 = vmax.f32 %v208, 0.0
      %v217 = vmax.f32 %v209, 0.0
      %218 = vst [vmem:[%s172] sm:$0xff] %v210
      %219 = vst [vmem:[%s172 + $0x8] sm:$0xff] %v211
      %220 = vst [vmem:[%s172 + $0x10] sm:$0xff] %v212
      %221 = vst [vmem:[%s172 + $0x18] sm:$0xff] %v213
      %222 = vst [vmem:[%s172 + $0x20] sm:$0xff] %v214
      %223 = vst [vmem:[%s172 + $0x28] sm:$0xff] %v215
      %224 = vst [vmem:[%s172 + $0x30] sm:$0xff] %v216
      %225 = vst [vmem:[%s172 + $0x38] sm:$0xff] %v217
      %s226 = smul.u32 8, %s14
      %p227 = scmp.lt.s32.totalorder %s226, 15
      %s228 = scalar_select %p227, %s226, 15
      %s229 = smul.addr %s228, 8
      %s230 = scalar_lea.vmem %s3, %s229
      // Predicated region
      $region33: #{generator_forward.16} parent=31 // pred_check
        %p231 = pneg %p100
      $region34: #{generator_forward.16} parent=31 // pred_check_branch
        %233 = sbr.rel (%p231) target = $region36
      $region35: #{generator_forward.16} parent=31 // pred_region
        %s234 = smul.u32 8, %s14
      $region36: #{generator_forward.16} parent=31 // pred_fallthru
        _
    $region32: #{generator_forward.16} parent=5 // pred_fallthru
      _
    %p235 = scmp.le.s32.totalorder 2, %s9
    // Predicated region
    $region37: #{generator_forward.16} parent=5 // pred_check
      %p236 = pneg %p235
    $region38: #{generator_forward.16} parent=5 // pred_check_branch
      %238 = sbr.rel (%p236) target = $region40
    $region39: #{generator_forward.16} parent=5 // pred_region
      %s239 = ssub.s32 %s9, 2
      // Predicated region
      $region41: #{generator_forward.16} parent=39 // pred_check
        %p240 = pneg %p106
      $region42: #{generator_forward.16} parent=39 // pred_check_branch
        %242 = sbr.rel (%p240) target = $region44
      $region43: #{generator_forward.16} parent=39 // pred_region
        %s243 = smul.u32 8, %s15
        %p244 = scmp.lt.s32.totalorder %s243, 15
        %s245 = scalar_select %p244, %s243, 15
        %s246 = smul.addr %s245, 8
        %s247 = scalar_lea.vmem %s3, %s246
      $region44: #{generator_forward.16} parent=39 // pred_fallthru
        _
    $region40: #{generator_forward.16} parent=5 // pred_fallthru
      _
  $region6: #{generator_forward.16} parent=0 // loop_footer
    %s13 = sadd.s32 1, %s9
  $region7: #{generator_forward.16} parent=0 // loop_footer_branch
    %8 = sbr.rel target = $region3
  $region8: #{generator_forward.16} parent=0 // loop_exit
    _

// kernel: generator_forward.17
$region0: #{generator_forward.17}
  #allocation0 [shape = 'u32[]', space=smem, size = 0x4, offset = 0x4, fixed_abs, tag = 'smem constant byte address 0x4 - core index']
  #allocation1 [shape = 'u32[144,128]{1,0:T(1,128)}', space=vmem, size = 0x12000, scoped, tag = 'internal scratch']
  %s0 = inlined_call_operand.vmem [shape: f32[4,3,32], index: 0, kind: input, shape index: {}]
  %s1 = inlined_call_operand.vmem [shape: f32[4,32,2048], index: 1, kind: input, shape index: {}]
  %s2 = inlined_call_operand.vmem [shape: f32[4,3,2048], index: 2, kind: output, shape index: {}]
  %s3 = sld [smem:[#allocation0]]
  $region41: #{generator_forward.17} parent=0
    _
  %s5 = ssub.s32 1, %s3
  %s6 = scalar_select 0, %s5, %s3
  loop: start=0, step=1, limit=6
  $region2: #{generator_forward.17} parent=0 // loop_pre_header
    _
  $region3: #{generator_forward.17} parent=0 // loop_header
    %s8 = sphi 0, %s12
    %p9 = scmp.ge.s32.totalorder %s8, 6
    %s18 = sphi 0, %s20
    %s21 = sphi 0, %s18
    %s22 = sphi 0, %s21
    %s38 = sphi 0, %s22
    %s44 = sphi 0, %s46
    %s47 = sphi 0, %s44
    %s48 = sphi 0, %s47
    %s64 = sphi 0, %s48
    %s70 = sphi 0, %s72
    %s73 = sphi 0, %s70
    %s74 = sphi 0, %s73
    %s90 = sphi 0, %s74
  $region4: #{generator_forward.17} parent=0 // loop_header_branch
    %11 = sbr.rel (%p9) target = $region8
  $region5: #{generator_forward.17} parent=0 // loop_body
    %s13 = ssub.s32 %s8, 1
    %s14 = ssub.s32 %s8, 2
    %s15 = sadd.s32 %s8, 1
    %s16 = ssub.s32 %s8, %s15
    %p17 = scmp.eq.s32.totalorder %s16, 0
    %s19 = sadd.s32 %s18, 1
    %s20 = scalar_select %p17, %s18, %s19
    %p23 = pneg %p17
    %p24 = scmp.eq.s32.totalorder %s8, 3
    %p25 = por %p23, %p24
    %p26 = scmp.ne.s32.totalorder %s18, %s21
    %p27 = scmp.eq.s32.totalorder %s8, 0
    %p28 = por %p26, %p27
    %p29 = scmp.ne.s32.totalorder %s18, %s21
    %p30 = scmp.eq.s32.totalorder %s13, 3
    %p31 = por %p29, %p30
    %p32 = scmp.ne.s32.totalorder %s21, %s22
    %p33 = scmp.eq.s32.totalorder %s13, 0
    %p34 = por %p32, %p33
    %p35 = scmp.ne.s32.totalorder %s21, %s22
    %p36 = scmp.eq.s32.totalorder %s14, 3
    %p37 = por %p35, %p36
    %p39 = scmp.ne.s32.totalorder %s22, %s38
    %p40 = scmp.eq.s32.totalorder %s14, 0
    %p41 = por %p39, %p40
    %s42 = ssub.s32 %s8, %s15
    %p43 = scmp.eq.s32.totalorder %s42, 0
    %s45 = sadd.s32 %s44, 1
    %s46 = scalar_select %p43, %s44, %s45
    %p49 = pneg %p43
    %p50 = scmp.eq.s32.totalorder %s8, 3
    %p51 = por %p49, %p50
    %p52 = scmp.ne.s32.totalorder %s44, %s47
    %p53 = scmp.eq.s32.totalorder %s8, 0
    %p54 = por %p52, %p53
    %p55 = scmp.ne.s32.totalorder %s44, %s47
    %p56 = scmp.eq.s32.totalorder %s13, 3
    %p57 = por %p55, %p56
    %p58 = scmp.ne.s32.totalorder %s47, %s48
    %p59 = scmp.eq.s32.totalorder %s13, 0
    %p60 = por %p58, %p59
    %p61 = scmp.ne.s32.totalorder %s47, %s48
    %p62 = scmp.eq.s32.totalorder %s14, 3
    %p63 = por %p61, %p62
    %p65 = scmp.ne.s32.totalorder %s48, %s64
    %p66 = scmp.eq.s32.totalorder %s14, 0
    %p67 = por %p65, %p66
    %s68 = ssub.s32 %s8, %s15
    %p69 = scmp.eq.s32.totalorder %s68, 0
    %s71 = sadd.s32 %s70, 1
    %s72 = scalar_select %p69, %s70, %s71
    %p75 = pneg %p69
    %p76 = scmp.eq.s32.totalorder %s8, 3
    %p77 = por %p75, %p76
    %p78 = scmp.ne.s32.totalorder %s70, %s73
    %p79 = scmp.eq.s32.totalorder %s8, 0
    %p80 = por %p78, %p79
    %p81 = scmp.ne.s32.totalorder %s70, %s73
    %p82 = scmp.eq.s32.totalorder %s13, 3
    %p83 = por %p81, %p82
    %p84 = scmp.ne.s32.totalorder %s73, %s74
    %p85 = scmp.eq.s32.totalorder %s13, 0
    %p86 = por %p84, %p85
    %p87 = scmp.ne.s32.totalorder %s73, %s74
    %p88 = scmp.eq.s32.totalorder %s14, 3
    %p89 = por %p87, %p88
    %p91 = scmp.ne.s32.totalorder %s74, %s90
    %p92 = scmp.eq.s32.totalorder %s14, 0
    %p93 = por %p91, %p92
    %p94 = scmp.le.s32.totalorder 1, %s8
    %p95 = scmp.lt.s32.totalorder %s8, 5
    %p96 = pnand %p94, %p95
    %p97 = pneg %p96
    // Predicated region
    $region9: #{generator_forward.17} parent=5 // pred_check
      _
    $region10: #{generator_forward.17} parent=5 // pred_check_branch
      %99 = sbr.rel (%p96) target = $region12
    $region11: #{generator_forward.17} parent=5 // pred_region
      %s100 = ssub.s32 %s8, 1
    $region12: #{generator_forward.17} parent=5 // pred_fallthru
      _
    %p101 = scmp.lt.s32.totalorder %s8, 4
    // Predicated region
    $region13: #{generator_forward.17} parent=5 // pred_check
      %p102 = pneg %p101
    $region14: #{generator_forward.17} parent=5 // pred_check_branch
      %104 = sbr.rel (%p102) target = $region16
    $region15: #{generator_forward.17} parent=5 // pred_region
      // Predicated region
      $region17: #{generator_forward.17} parent=15 // pred_check
        %p105 = pneg %p28
      $region18: #{generator_forward.17} parent=15 // pred_check_branch
        %107 = sbr.rel (%p105) target = $region20
      $region19: #{generator_forward.17} parent=15 // pred_region
        %p108 = scmp.lt.s32.totalorder %s8, 3
        %s109 = scalar_select %p108, %s8, 3
        %s110 = smul.addr %s109, 4
        %s111 = scalar_lea.vmem %s0, %s110
      $region20: #{generator_forward.17} parent=15 // pred_fallthru
        _
      // Predicated region
      $region21: #{generator_forward.17} parent=15 // pred_check
        %p112 = pneg %p54
      $region22: #{generator_forward.17} parent=15 // pred_check_branch
        %114 = sbr.rel (%p112) target = $region24
      $region23: #{generator_forward.17} parent=15 // pred_region
        %p115 = scmp.lt.s32.totalorder %s8, 3
        %s116 = scalar_select %p115, %s8, 3
        %s117 = smul.addr %s116, 64
        %s118 = smul.addr %s117, 8
        %s119 = scalar_lea.vmem %s1, %s118
      $region24: #{generator_forward.17} parent=15 // pred_fallthru
        _
    $region16: #{generator_forward.17} parent=5 // pred_fallthru
      _
    %p120 = scmp.le.s32.totalorder 1, %s8
    %p121 = scmp.lt.s32.totalorder %s8, 5
    %p122 = pnand %p120, %p121
    %p123 = pneg %p122
    // Predicated region
    $region25: #{generator_forward.17} parent=5 // pred_check
      _
    $region26: #{generator_forward.17} parent=5 // pred_check_branch
      %125 = sbr.rel (%p122) target = $region28
    $region27: #{generator_forward.17} parent=5 // pred_region
      %s126 = ssub.s32 %s8, 1
      %p127 = scmp.lt.s32.totalorder %s13, 3
      %s128 = scalar_select %p127, %s13, 3
      %s129 = smul.addr %s128, 4
      %s130 = scalar_lea.vmem %s0, %s129
      %p131 = pneg %p34
      %p132 = pneg %p31
      %p133 = scmp.lt.s32.totalorder %s13, 3
      %s134 = scalar_select %p133, %s13, 3
      %s135 = smul.addr %s134, 64
      %s136 = smul.addr %s135, 8
      %s137 = scalar_lea.vmem %s1, %s136
      %p138 = pneg %p60
      %p139 = pneg %p57
      %p140 = pneg %p86
      %p141 = pneg %p83
      %p142 = scmp.lt.s32.totalorder %s13, 3
      %s143 = scalar_select %p142, %s13, 3
      %s144 = smul.addr %s143, 16
      %s145 = smul.addr %s144, 4
      %s146 = scalar_lea.vmem %s2, %s145
      %p147 = scmp.lt.s32.totalorder %s13, 3
      %s148 = scalar_select %p147, %s13, 3
      %s149 = smul.addr %s148, 4
      %s150 = scalar_lea.vmem %s0, %s149
      %p151 = scmp.lt.s32.totalorder %s13, 3
      %s152 = scalar_select %p151, %s13, 3
      %s153 = smul.addr %s152, 64
      %s154 = smul.addr %s153, 8
      %s155 = scalar_lea.vmem %s1, %s154
      %p156 = scmp.lt.s32.totalorder %s13, 3
      %s157 = scalar_select %p156, %s13, 3
      %s158 = smul.addr %s157, 16
      %s159 = smul.addr %s158, 4
      %s160 = scalar_lea.vmem %s2, %s159
      %v161 = vld [vmem:[%s150] sm:$0x7]
      %v162 = vld [vmem:[%s155] sm:$0xff]
      %v163 = vld [vmem:[%s155 + $0x8] sm:$0xff]
      %v164 = vld [vmem:[%s155 + $0x10] sm:$0xff]
      %v165 = vld [vmem:[%s155 + $0x18] sm:$0xff]
      %v166 = vld [vmem:[%s155 + $0x20] sm:$0xff]
      %v167 = vld [vmem:[%s155 + $0x28] sm:$0xff]
      %v168 = vld [vmem:[%s155 + $0x30] sm:$0xff]
      %v169 = vld [vmem:[%s155 + $0x38] sm:$0xff]
      %v170 = vld [vmem:[%s155 + $0x40] sm:$0xff]
      %v171 = vld [vmem:[%s155 + $0x48] sm:$0xff]
      %v172 = vld [vmem:[%s155 + $0x50] sm:$0xff]
      %v173 = vld [vmem:[%s155 + $0x58] sm:$0xff]
      %v174 = vld [vmem:[%s155 + $0x60] sm:$0xff]
      %v175 = vld [vmem:[%s155 + $0x68] sm:$0xff]
      %v176 = vld [vmem:[%s155 + $0x70] sm:$0xff]
      %v177 = vld [vmem:[%s155 + $0x78] sm:$0xff]
      %v178 = vld [vmem:[%s155 + $0x80] sm:$0xff]
      %v179 = vld [vmem:[%s155 + $0x88] sm:$0xff]
      %v180 = vld [vmem:[%s155 + $0x90] sm:$0xff]
      %v181 = vld [vmem:[%s155 + $0x98] sm:$0xff]
      %v182 = vld [vmem:[%s155 + $0xa0] sm:$0xff]
      %v183 = vld [vmem:[%s155 + $0xa8] sm:$0xff]
      %v184 = vld [vmem:[%s155 + $0xb0] sm:$0xff]
      %v185 = vld [vmem:[%s155 + $0xb8] sm:$0xff]
      %v186 = vld [vmem:[%s155 + $0xc0] sm:$0xff]
      %v187 = vld [vmem:[%s155 + $0xc8] sm:$0xff]
      %v188 = vld [vmem:[%s155 + $0xd0] sm:$0xff]
      %v189 = vld [vmem:[%s155 + $0xd8] sm:$0xff]
      %v190 = vld [vmem:[%s155 + $0xe0] sm:$0xff]
      %v191 = vld [vmem:[%s155 + $0xe8] sm:$0xff]
      %v192 = vld [vmem:[%s155 + $0xf0] sm:$0xff]
      %v193 = vld [vmem:[%s155 + $0xf8] sm:$0xff]
      %v194 = vld [vmem:[%s155 + $0x100] sm:$0xff]
      %v195 = vld [vmem:[%s155 + $0x108] sm:$0xff]
      %v196 = vld [vmem:[%s155 + $0x110] sm:$0xff]
      %v197 = vld [vmem:[%s155 + $0x118] sm:$0xff]
      %v198 = vld [vmem:[%s155 + $0x120] sm:$0xff]
      %v199 = vld [vmem:[%s155 + $0x128] sm:$0xff]
      %v200 = vld [vmem:[%s155 + $0x130] sm:$0xff]
      %v201 = vld [vmem:[%s155 + $0x138] sm:$0xff]
      %v202 = vld [vmem:[%s155 + $0x140] sm:$0xff]
      %v203 = vld [vmem:[%s155 + $0x148] sm:$0xff]
      %v204 = vld [vmem:[%s155 + $0x150] sm:$0xff]
      %v205 = vld [vmem:[%s155 + $0x158] sm:$0xff]
      %v206 = vld [vmem:[%s155 + $0x160] sm:$0xff]
      %v207 = vld [vmem:[%s155 + $0x168] sm:$0xff]
      %v208 = vld [vmem:[%s155 + $0x170] sm:$0xff]
      %v209 = vld [vmem:[%s155 + $0x178] sm:$0xff]
      %v210 = vld [vmem:[%s155 + $0x180] sm:$0xff]
      %v211 = vld [vmem:[%s155 + $0x188] sm:$0xff]
      %v212 = vld [vmem:[%s155 + $0x190] sm:$0xff]
      %v213 = vld [vmem:[%s155 + $0x198] sm:$0xff]
      %v214 = vld [vmem:[%s155 + $0x1a0] sm:$0xff]
      %v215 = vld [vmem:[%s155 + $0x1a8] sm:$0xff]
      %v216 = vld [vmem:[%s155 + $0x1b0] sm:$0xff]
      %v217 = vld [vmem:[%s155 + $0x1b8] sm:$0xff]
      %v218 = vld [vmem:[%s155 + $0x1c0] sm:$0xff]
      %v219 = vld [vmem:[%s155 + $0x1c8] sm:$0xff]
      %v220 = vld [vmem:[%s155 + $0x1d0] sm:$0xff]
      %v221 = vld [vmem:[%s155 + $0x1d8] sm:$0xff]
      %v222 = vld [vmem:[%s155 + $0x1e0] sm:$0xff]
      %v223 = vld [vmem:[%s155 + $0x1e8] sm:$0xff]
      %v224 = vld [vmem:[%s155 + $0x1f0] sm:$0xff]
      %v225 = vld [vmem:[%s155 + $0x1f8] sm:$0xff]
      %vm226 = vcmask 261120
      %v228 = vsel %vm226, %v161, 0
      %230 = vmatprep.subr.mxu0 %v163
      %231 = vmatpush1.msra.mxu0 %v162
      %232 = vmatprep.subr.mxu0 %v179
      %233 = vmatpush1.msra.mxu0 %v178
      %234 = vmatprep.subr.mxu0 %v195
      %235 = vmatpush1.msra.mxu0 %v194
      %236 = vmatprep.subr.mxu0 %v211
      %237 = vmatpush1.msra.mxu0 %v210
      %238 = vmatprep.subr.mxu0 0.0
      %239 = vmatpush1.msra.mxu0 0.0
      %240 = vmatprep.subr.mxu0 0.0
      %241 = vmatpush1.msra.mxu0 0.0
      %242 = vmatprep.subr.mxu0 0.0
      %243 = vmatpush1.msra.mxu0 0.0
      %244 = vmatprep.subr.mxu0 0.0
      %245 = vmatpush1.msra.mxu0 0.0
      %246 = vmatprep.subr.mxu0 0.0
      %247 = vmatpush1.msra.mxu0 0.0
      %248 = vmatprep.subr.mxu0 0.0
      %249 = vmatpush1.msra.mxu0 0.0
      %250 = vmatprep.subr.mxu0 0.0
      %251 = vmatpush1.msra.mxu0 0.0
      %252 = vmatprep.subr.mxu0 0.0
      %253 = vmatpush1.msra.mxu0 0.0
      %254 = vmatprep.subr.mxu0 0.0
      %255 = vmatpush1.msra.mxu0 0.0
      %256 = vmatprep.subr.mxu0 0.0
      %257 = vmatpush1.msra.mxu0 0.0
      %258 = vmatprep.subr.mxu0 0.0
      %259 = vmatpush1.msra.mxu0 0.0
      %260 = vmatprep.subr.mxu0 0.0
      %261 = vmatpush1.msra.mxu0 0.0
      %262 = vmatprep.subr.mxu0 0.0
      %263 = vmatpush1.msra.mxu0 0.0
      %264 = vmatprep.subr.mxu0 0.0
      %265 = vmatpush1.msra.mxu0 0.0
      %266 = vmatprep.subr.mxu0 0.0
      %267 = vmatpush1.msra.mxu0 0.0
      %268 = vmatprep.subr.mxu0 0.0
      %269 = vmatpush1.msra.mxu0 0.0
      %270 = vmatprep.subr.mxu0 0.0
      %271 = vmatpush1.msra.mxu0 0.0
      %272 = vmatprep.subr.mxu0 0.0
      %273 = vmatpush1.msra.mxu0 0.0
      %274 = vmatprep.subr.mxu0 0.0
      %275 = vmatpush1.msra.mxu0 0.0
      %276 = vmatprep.subr.mxu0 0.0
      %277 = vmatpush1.msra.mxu0 0.0
      %278 = vmatprep.subr.mxu0 0.0
      %279 = vmatpush1.msra.mxu0 0.0
      %280 = vmatprep.subr.mxu0 0.0
      %281 = vmatpush1.msra.mxu0 0.0
      %282 = vmatprep.subr.mxu0 0.0
      %283 = vmatpush1.msra.mxu0 0.0
      %284 = vmatprep.subr.mxu0 0.0
      %285 = vmatpush1.msra.mxu0 0.0
      %286 = vmatprep.subr.mxu0 0.0
      %287 = vmatpush1.msra.mxu0 0.0
      %288 = vmatprep.subr.mxu0 0.0
      %289 = vmatpush1.msra.mxu0 0.0
      %290 = vmatprep.subr.mxu0 0.0
      %291 = vmatpush1.msra.mxu0 0.0
      %292 = vmatprep.subr.mxu0 0.0
      %293 = vmatpush1.msra.mxu0 0.0
      %294 = vmatprep.mubr.f32.mxu0 0.0
      %295 = vmatmul.mubr.f32.gmra.mrb[0].mxu0 %v228
      %v296 = vpop.f32.mrb[0].mxu0
      %v297 = vadd.f32 0.0, %v296
      %v298 = vpop.f32.mrb[0].mxu0
      %v299 = vadd.f32 0.0, %v298
      %300 = vdwg.mxu0
      %301 = vmatprep.subr.mxu0 %v165
      %302 = vmatpush1.msra.mxu0 %v164
      %303 = vmatprep.subr.mxu0 %v181
      %304 = vmatpush1.msra.mxu0 %v180
      %305 = vmatprep.subr.mxu0 %v197
      %306 = vmatpush1.msra.mxu0 %v196
      %307 = vmatprep.subr.mxu0 %v213
      %308 = vmatpush1.msra.mxu0 %v212
      %309 = vmatprep.subr.mxu0 0.0
      %310 = vmatpush1.msra.mxu0 0.0
      %311 = vmatprep.subr.mxu0 0.0
      %312 = vmatpush1.msra.mxu0 0.0
      %313 = vmatprep.subr.mxu0 0.0
      %314 = vmatpush1.msra.mxu0 0.0
      %315 = vmatprep.subr.mxu0 0.0
      %316 = vmatpush1.msra.mxu0 0.0
      %317 = vmatprep.subr.mxu0 0.0
      %318 = vmatpush1.msra.mxu0 0.0
      %319 = vmatprep.subr.mxu0 0.0
      %320 = vmatpush1.msra.mxu0 0.0
      %321 = vmatprep.subr.mxu0 0.0
      %322 = vmatpush1.msra.mxu0 0.0
      %323 = vmatprep.subr.mxu0 0.0
      %324 = vmatpush1.msra.mxu0 0.0
      %325 = vmatprep.subr.mxu0 0.0
      %326 = vmatpush1.msra.mxu0 0.0
      %327 = vmatprep.subr.mxu0 0.0
      %328 = vmatpush1.msra.mxu0 0.0
      %329 = vmatprep.subr.mxu0 0.0
      %330 = vmatpush1.msra.mxu0 0.0
      %331 = vmatprep.subr.mxu0 0.0
      %332 = vmatpush1.msra.mxu0 0.0
      %333 = vmatprep.subr.mxu0 0.0
      %334 = vmatpush1.msra.mxu0 0.0
      %335 = vmatprep.subr.mxu0 0.0
      %336 = vmatpush1.msra.mxu0 0.0
      %337 = vmatprep.subr.mxu0 0.0
      %338 = vmatpush1.msra.mxu0 0.0
      %339 = vmatprep.subr.mxu0 0.0
      %340 = vmatpush1.msra.mxu0 0.0
      %341 = vmatprep.subr.mxu0 0.0
      %342 = vmatpush1.msra.mxu0 0.0
      %343 = vmatprep.subr.mxu0 0.0
      %344 = vmatpush1.msra.mxu0 0.0
      %345 = vmatprep.subr.mxu0 0.0
      %346 = vmatpush1.msra.mxu0 0.0
      %347 = vmatprep.subr.mxu0 0.0
      %348 = vmatpush1.msra.mxu0 0.0
      %349 = vmatprep.subr.mxu0 0.0
      %350 = vmatpush1.msra.mxu0 0.0
      %351 = vmatprep.subr.mxu0 0.0
      %352 = vmatpush1.msra.mxu0 0.0
      %353 = vmatprep.subr.mxu0 0.0
      %354 = vmatpush1.msra.mxu0 0.0
      %355 = vmatprep.subr.mxu0 0.0
      %356 = vmatpush1.msra.mxu0 0.0
      %357 = vmatprep.subr.mxu0 0.0
      %358 = vmatpush1.msra.mxu0 0.0
      %359 = vmatprep.subr.mxu0 0.0
      %360 = vmatpush1.msra.mxu0 0.0
      %361 = vmatprep.subr.mxu0 0.0
      %362 = vmatpush1.msra.mxu0 0.0
      %363 = vmatprep.subr.mxu0 0.0
      %364 = vmatpush1.msra.mxu0 0.0
      %365 = vmatprep.mubr.f32.mxu0 0.0
      %366 = vmatmul.mubr.f32.gmra.mrb[0].mxu0 %v228
      %v367 = vpop.f32.mrb[0].mxu0
      %v368 = vadd.f32 0.0, %v367
      %v369 = vpop.f32.mrb[0].mxu0
      %v370 = vadd.f32 0.0, %v369
      %371 = vdwg.mxu0
      %372 = vmatprep.subr.mxu0 %v167
      %373 = vmatpush1.msra.mxu0 %v166
      %374 = vmatprep.subr.mxu0 %v183
      %375 = vmatpush1.msra.mxu0 %v182
      %376 = vmatprep.subr.mxu0 %v199
      %377 = vmatpush1.msra.mxu0 %v198
      %378 = vmatprep.subr.mxu0 %v215
      %379 = vmatpush1.msra.mxu0 %v214
      %380 = vmatprep.subr.mxu0 0.0
      %381 = vmatpush1.msra.mxu0 0.0
      %382 = vmatprep.subr.mxu0 0.0
      %383 = vmatpush1.msra.mxu0 0.0
      %384 = vmatprep.subr.mxu0 0.0
      %385 = vmatpush1.msra.mxu0 0.0
      %386 = vmatprep.subr.mxu0 0.0
      %387 = vmatpush1.msra.mxu0 0.0
      %388 = vmatprep.subr.mxu0 0.0
      %389 = vmatpush1.msra.mxu0 0.0
      %390 = vmatprep.subr.mxu0 0.0
      %391 = vmatpush1.msra.mxu0 0.0
      %392 = vmatprep.subr.mxu0 0.0
      %393 = vmatpush1.msra.mxu0 0.0
      %394 = vmatprep.subr.mxu0 0.0
      %395 = vmatpush1.msra.mxu0 0.0
      %396 = vmatprep.subr.mxu0 0.0
      %397 = vmatpush1.msra.mxu0 0.0
      %398 = vmatprep.subr.mxu0 0.0
      %399 = vmatpush1.msra.mxu0 0.0
      %400 = vmatprep.subr.mxu0 0.0
      %401 = vmatpush1.msra.mxu0 0.0
      %402 = vmatprep.subr.mxu0 0.0
      %403 = vmatpush1.msra.mxu0 0.0
      %404 = vmatprep.subr.mxu0 0.0
      %405 = vmatpush1.msra.mxu0 0.0
      %406 = vmatprep.subr.mxu0 0.0
      %407 = vmatpush1.msra.mxu0 0.0
      %408 = vmatprep.subr.mxu0 0.0
      %409 = vmatpush1.msra.mxu0 0.0
      %410 = vmatprep.subr.mxu0 0.0
      %411 = vmatpush1.msra.mxu0 0.0
      %412 = vmatprep.subr.mxu0 0.0
      %413 = vmatpush1.msra.mxu0 0.0
      %414 = vmatprep.subr.mxu0 0.0
      %415 = vmatpush1.msra.mxu0 0.0
      %416 = vmatprep.subr.mxu0 0.0
      %417 = vmatpush1.msra.mxu0 0.0
      %418 = vmatprep.subr.mxu0 0.0
      %419 = vmatpush1.msra.mxu0 0.0
      %420 = vmatprep.subr.mxu0 0.0
      %421 = vmatpush1.msra.mxu0 0.0
      %422 = vmatprep.subr.mxu0 0.0
      %423 = vmatpush1.msra.mxu0 0.0
      %424 = vmatprep.subr.mxu0 0.0
      %425 = vmatpush1.msra.mxu0 0.0
      %426 = vmatprep.subr.mxu0 0.0
      %427 = vmatpush1.msra.mxu0 0.0
      %428 = vmatprep.subr.mxu0 0.0
      %429 = vmatpush1.msra.mxu0 0.0
      %430 = vmatprep.subr.mxu0 0.0
      %431 = vmatpush1.msra.mxu0 0.0
      %432 = vmatprep.subr.mxu0 0.0
      %433 = vmatpush1.msra.mxu0 0.0
      %434 = vmatprep.subr.mxu0 0.0
      %435 = vmatpush1.msra.mxu0 0.0
      %436 = vmatprep.mubr.f32.mxu0 0.0
      %437 = vmatmul.mubr.f32.gmra.mrb[0].mxu0 %v228
      %v438 = vpop.f32.mrb[0].mxu0
      %v439 = vadd.f32 0.0, %v438
      %v440 = vpop.f32.mrb[0].mxu0
      %v441 = vadd.f32 0.0, %v440
      %442 = vdwg.mxu0
      %443 = vmatprep.subr.mxu0 %v169
      %444 = vmatpush1.msra.mxu0 %v168
      %445 = vmatprep.subr.mxu0 %v185
      %446 = vmatpush1.msra.mxu0 %v184
      %447 = vmatprep.subr.mxu0 %v201
      %448 = vmatpush1.msra.mxu0 %v200
      %449 = vmatprep.subr.mxu0 %v217
      %450 = vmatpush1.msra.mxu0 %v216
      %451 = vmatprep.subr.mxu0 0.0
      %452 = vmatpush1.msra.mxu0 0.0
      %453 = vmatprep.subr.mxu0 0.0
      %454 = vmatpush1.msra.mxu0 0.0
      %455 = vmatprep.subr.mxu0 0.0
      %456 = vmatpush1.msra.mxu0 0.0
      %457 = vmatprep.subr.mxu0 0.0
      %458 = vmatpush1.msra.mxu0 0.0
      %459 = vmatprep.subr.mxu0 0.0
      %460 = vmatpush1.msra.mxu0 0.0
      %461 = vmatprep.subr.mxu0 0.0
      %462 = vmatpush1.msra.mxu0 0.0
      %463 = vmatprep.subr.mxu0 0.0
      %464 = vmatpush1.msra.mxu0 0.0
      %465 = vmatprep.subr.mxu0 0.0
      %466 = vmatpush1.msra.mxu0 0.0
      %467 = vmatprep.subr.mxu0 0.0
      %468 = vmatpush1.msra.mxu0 0.0
      %469 = vmatprep.subr.mxu0 0.0
      %470 = vmatpush1.msra.mxu0 0.0
      %471 = vmatprep.subr.mxu0 0.0
      %472 = vmatpush1.msra.mxu0 0.0
      %473 = vmatprep.subr.mxu0 0.0
      %474 = vmatpush1.msra.mxu0 0.0
      %475 = vmatprep.subr.mxu0 0.0
      %476 = vmatpush1.msra.mxu0 0.0
      %477 = vmatprep.subr.mxu0 0.0
      %478 = vmatpush1.msra.mxu0 0.0
      %479 = vmatprep.subr.mxu0 0.0
      %480 = vmatpush1.msra.mxu0 0.0
      %481 = vmatprep.subr.mxu0 0.0
      %482 = vmatpush1.msra.mxu0 0.0
      %483 = vmatprep.subr.mxu0 0.0
      %484 = vmatpush1.msra.mxu0 0.0
      %485 = vmatprep.subr.mxu0 0.0
      %486 = vmatpush1.msra.mxu0 0.0
      %487 = vmatprep.subr.mxu0 0.0
      %488 = vmatpush1.msra.mxu0 0.0
      %489 = vmatprep.subr.mxu0 0.0
      %490 = vmatpush1.msra.mxu0 0.0
      %491 = vmatprep.subr.mxu0 0.0
      %492 = vmatpush1.msra.mxu0 0.0
      %493 = vmatprep.subr.mxu0 0.0
      %494 = vmatpush1.msra.mxu0 0.0
      %495 = vmatprep.subr.mxu0 0.0
      %496 = vmatpush1.msra.mxu0 0.0
      %497 = vmatprep.subr.mxu0 0.0
      %498 = vmatpush1.msra.mxu0 0.0
      %499 = vmatprep.subr.mxu0 0.0
      %500 = vmatpush1.msra.mxu0 0.0
      %501 = vmatprep.subr.mxu0 0.0
      %502 = vmatpush1.msra.mxu0 0.0
      %503 = vmatprep.subr.mxu0 0.0
      %504 = vmatpush1.msra.mxu0 0.0
      %505 = vmatprep.subr.mxu0 0.0
      %506 = vmatpush1.msra.mxu0 0.0
      %507 = vmatprep.mubr.f32.mxu0 0.0
      %508 = vmatmul.mubr.f32.gmra.mrb[0].mxu0 %v228
      %v509 = vpop.f32.mrb[0].mxu0
      %v510 = vadd.f32 0.0, %v509
      %v511 = vpop.f32.mrb[0].mxu0
      %v512 = vadd.f32 0.0, %v511
      %513 = vdwg.mxu0
      %514 = vmatprep.subr.mxu0 %v171
      %515 = vmatpush1.msra.mxu0 %v170
      %516 = vmatprep.subr.mxu0 %v187
      %517 = vmatpush1.msra.mxu0 %v186
      %518 = vmatprep.subr.mxu0 %v203
      %519 = vmatpush1.msra.mxu0 %v202
      %520 = vmatprep.subr.mxu0 %v219
      %521 = vmatpush1.msra.mxu0 %v218
      %522 = vmatprep.subr.mxu0 0.0
      %523 = vmatpush1.msra.mxu0 0.0
      %524 = vmatprep.subr.mxu0 0.0
      %525 = vmatpush1.msra.mxu0 0.0
      %526 = vmatprep.subr.mxu0 0.0
      %527 = vmatpush1.msra.mxu0 0.0
      %528 = vmatprep.subr.mxu0 0.0
      %529 = vmatpush1.msra.mxu0 0.0
      %530 = vmatprep.subr.mxu0 0.0
      %531 = vmatpush1.msra.mxu0 0.0
      %532 = vmatprep.subr.mxu0 0.0
      %533 = vmatpush1.msra.mxu0 0.0
      %534 = vmatprep.subr.mxu0 0.0
      %535 = vmatpush1.msra.mxu0 0.0
      %536 = vmatprep.subr.mxu0 0.0
      %537 = vmatpush1.msra.mxu0 0.0
      %538 = vmatprep.subr.mxu0 0.0
      %539 = vmatpush1.msra.mxu0 0.0
      %540 = vmatprep.subr.mxu0 0.0
      %541 = vmatpush1.msra.mxu0 0.0
      %542 = vmatprep.subr.mxu0 0.0
      %543 = vmatpush1.msra.mxu0 0.0
      %544 = vmatprep.subr.mxu0 0.0
      %545 = vmatpush1.msra.mxu0 0.0
      %546 = vmatprep.subr.mxu0 0.0
      %547 = vmatpush1.msra.mxu0 0.0
      %548 = vmatprep.subr.mxu0 0.0
      %549 = vmatpush1.msra.mxu0 0.0
      %550 = vmatprep.subr.mxu0 0.0
      %551 = vmatpush1.msra.mxu0 0.0
      %552 = vmatprep.subr.mxu0 0.0
      %553 = vmatpush1.msra.mxu0 0.0
      %554 = vmatprep.subr.mxu0 0.0
      %555 = vmatpush1.msra.mxu0 0.0
      %556 = vmatprep.subr.mxu0 0.0
      %557 = vmatpush1.msra.mxu0 0.0
      %558 = vmatprep.subr.mxu0 0.0
      %559 = vmatpush1.msra.mxu0 0.0
      %560 = vmatprep.subr.mxu0 0.0
      %561 = vmatpush1.msra.mxu0 0.0
      %562 = vmatprep.subr.mxu0 0.0
      %563 = vmatpush1.msra.mxu0 0.0
      %564 = vmatprep.subr.mxu0 0.0
      %565 = vmatpush1.msra.mxu0 0.0
      %566 = vmatprep.subr.mxu0 0.0
      %567 = vmatpush1.msra.mxu0 0.0
      %568 = vmatprep.subr.mxu0 0.0
      %569 = vmatpush1.msra.mxu0 0.0
      %570 = vmatprep.subr.mxu0 0.0
      %571 = vmatpush1.msra.mxu0 0.0
      %572 = vmatprep.subr.mxu0 0.0
      %573 = vmatpush1.msra.mxu0 0.0
      %574 = vmatprep.subr.mxu0 0.0
      %575 = vmatpush1.msra.mxu0 0.0
      %576 = vmatprep.subr.mxu0 0.0
      %577 = vmatpush1.msra.mxu0 0.0
      %578 = vmatprep.mubr.f32.mxu0 0.0
      %579 = vmatmul.mubr.f32.gmra.mrb[0].mxu0 %v228
      %v580 = vpop.f32.mrb[0].mxu0
      %v581 = vadd.f32 0.0, %v580
      %v582 = vpop.f32.mrb[0].mxu0
      %v583 = vadd.f32 0.0, %v582
      %584 = vdwg.mxu0
      %585 = vmatprep.subr.mxu0 %v173
      %586 = vmatpush1.msra.mxu0 %v172
      %587 = vmatprep.subr.mxu0 %v189
      %588 = vmatpush1.msra.mxu0 %v188
      %589 = vmatprep.subr.mxu0 %v205
      %590 = vmatpush1.msra.mxu0 %v204
      %591 = vmatprep.subr.mxu0 %v221
      %592 = vmatpush1.msra.mxu0 %v220
      %593 = vmatprep.subr.mxu0 0.0
      %594 = vmatpush1.msra.mxu0 0.0
      %595 = vmatprep.subr.mxu0 0.0
      %596 = vmatpush1.msra.mxu0 0.0
      %597 = vmatprep.subr.mxu0 0.0
      %598 = vmatpush1.msra.mxu0 0.0
      %599 = vmatprep.subr.mxu0 0.0
      %600 = vmatpush1.msra.mxu0 0.0
      %601 = vmatprep.subr.mxu0 0.0
      %602 = vmatpush1.msra.mxu0 0.0
      %603 = vmatprep.subr.mxu0 0.0
      %604 = vmatpush1.msra.mxu0 0.0
      %605 = vmatprep.subr.mxu0 0.0
      %606 = vmatpush1.msra.mxu0 0.0
      %607 = vmatprep.subr.mxu0 0.0
      %608 = vmatpush1.msra.mxu0 0.0
      %609 = vmatprep.subr.mxu0 0.0
      %610 = vmatpush1.msra.mxu0 0.0
      %611 = vmatprep.subr.mxu0 0.0
      %612 = vmatpush1.msra.mxu0 0.0
      %613 = vmatprep.subr.mxu0 0.0
      %614 = vmatpush1.msra.mxu0 0.0
      %615 = vmatprep.subr.mxu0 0.0
      %616 = vmatpush1.msra.mxu0 0.0
      %617 = vmatprep.subr.mxu0 0.0
      %618 = vmatpush1.msra.mxu0 0.0
      %619 = vmatprep.subr.mxu0 0.0
      %620 = vmatpush1.msra.mxu0 0.0
      %621 = vmatprep.subr.mxu0 0.0
      %622 = vmatpush1.msra.mxu0 0.0
      %623 = vmatprep.subr.mxu0 0.0
      %624 = vmatpush1.msra.mxu0 0.0
      %625 = vmatprep.subr.mxu0 0.0
      %626 = vmatpush1.msra.mxu0 0.0
      %627 = vmatprep.subr.mxu0 0.0
      %628 = vmatpush1.msra.mxu0 0.0
      %629 = vmatprep.subr.mxu0 0.0
      %630 = vmatpush1.msra.mxu0 0.0
      %631 = vmatprep.subr.mxu0 0.0
      %632 = vmatpush1.msra.mxu0 0.0
      %633 = vmatprep.subr.mxu0 0.0
      %634 = vmatpush1.msra.mxu0 0.0
      %635 = vmatprep.subr.mxu0 0.0
      %636 = vmatpush1.msra.mxu0 0.0
      %637 = vmatprep.subr.mxu0 0.0
      %638 = vmatpush1.msra.mxu0 0.0
      %639 = vmatprep.subr.mxu0 0.0
      %640 = vmatpush1.msra.mxu0 0.0
      %641 = vmatprep.subr.mxu0 0.0
      %642 = vmatpush1.msra.mxu0 0.0
      %643 = vmatprep.subr.mxu0 0.0
      %644 = vmatpush1.msra.mxu0 0.0
      %645 = vmatprep.subr.mxu0 0.0
      %646 = vmatpush1.msra.mxu0 0.0
      %647 = vmatprep.subr.mxu0 0.0
      %648 = vmatpush1.msra.mxu0 0.0
      %649 = vmatprep.mubr.f32.mxu0 0.0
      %650 = vmatmul.mubr.f32.gmra.mrb[0].mxu0 %v228
      %v651 = vpop.f32.mrb[0].mxu0
      %v652 = vadd.f32 0.0, %v651
      %v653 = vpop.f32.mrb[0].mxu0
      %v654 = vadd.f32 0.0, %v653
      %655 = vdwg.mxu0
      %656 = vmatprep.subr.mxu0 %v175
      %657 = vmatpush1.msra.mxu0 %v174
      %658 = vmatprep.subr.mxu0 %v191
      %659 = vmatpush1.msra.mxu0 %v190
      %660 = vmatprep.subr.mxu0 %v207
      %661 = vmatpush1.msra.mxu0 %v206
      %662 = vmatprep.subr.mxu0 %v223
      %663 = vmatpush1.msra.mxu0 %v222
      %664 = vmatprep.subr.mxu0 0.0
      %665 = vmatpush1.msra.mxu0 0.0
      %666 = vmatprep.subr.mxu0 0.0
      %667 = vmatpush1.msra.mxu0 0.0
      %668 = vmatprep.subr.mxu0 0.0
      %669 = vmatpush1.msra.mxu0 0.0
      %670 = vmatprep.subr.mxu0 0.0
      %671 = vmatpush1.msra.mxu0 0.0
      %672 = vmatprep.subr.mxu0 0.0
      %673 = vmatpush1.msra.mxu0 0.0
      %674 = vmatprep.subr.mxu0 0.0
      %675 = vmatpush1.msra.mxu0 0.0
      %676 = vmatprep.subr.mxu0 0.0
      %677 = vmatpush1.msra.mxu0 0.0
      %678 = vmatprep.subr.mxu0 0.0
      %679 = vmatpush1.msra.mxu0 0.0
      %680 = vmatprep.subr.mxu0 0.0
      %681 = vmatpush1.msra.mxu0 0.0
      %682 = vmatprep.subr.mxu0 0.0
      %683 = vmatpush1.msra.mxu0 0.0
      %684 = vmatprep.subr.mxu0 0.0
      %685 = vmatpush1.msra.mxu0 0.0
      %686 = vmatprep.subr.mxu0 0.0
      %687 = vmatpush1.msra.mxu0 0.0
      %688 = vmatprep.subr.mxu0 0.0
      %689 = vmatpush1.msra.mxu0 0.0
      %690 = vmatprep.subr.mxu0 0.0
      %691 = vmatpush1.msra.mxu0 0.0
      %692 = vmatprep.subr.mxu0 0.0
      %693 = vmatpush1.msra.mxu0 0.0
      %694 = vmatprep.subr.mxu0 0.0
      %695 = vmatpush1.msra.mxu0 0.0
      %696 = vmatprep.subr.mxu0 0.0
      %697 = vmatpush1.msra.mxu0 0.0
      %698 = vmatprep.subr.mxu0 0.0
      %699 = vmatpush1.msra.mxu0 0.0
      %700 = vmatprep.subr.mxu0 0.0
      %701 = vmatpush1.msra.mxu0 0.0
      %702 = vmatprep.subr.mxu0 0.0
      %703 = vmatpush1.msra.mxu0 0.0
      %704 = vmatprep.subr.mxu0 0.0
      %705 = vmatpush1.msra.mxu0 0.0
      %706 = vmatprep.subr.mxu0 0.0
      %707 = vmatpush1.msra.mxu0 0.0
      %708 = vmatprep.subr.mxu0 0.0
      %709 = vmatpush1.msra.mxu0 0.0
      %710 = vmatprep.subr.mxu0 0.0
      %711 = vmatpush1.msra.mxu0 0.0
      %712 = vmatprep.subr.mxu0 0.0
      %713 = vmatpush1.msra.mxu0 0.0
      %714 = vmatprep.subr.mxu0 0.0
      %715 = vmatpush1.msra.mxu0 0.0
      %716 = vmatprep.subr.mxu0 0.0
      %717 = vmatpush1.msra.mxu0 0.0
      %718 = vmatprep.subr.mxu0 0.0
      %719 = vmatpush1.msra.mxu0 0.0
      %720 = vmatprep.mubr.f32.mxu0 0.0
      %721 = vmatmul.mubr.f32.gmra.mrb[0].mxu0 %v228
      %v722 = vpop.f32.mrb[0].mxu0
      %v723 = vadd.f32 0.0, %v722
      %v724 = vpop.f32.mrb[0].mxu0
      %v725 = vadd.f32 0.0, %v724
      %726 = vdwg.mxu0
      %727 = vmatprep.subr.mxu0 %v177
      %728 = vmatpush1.msra.mxu0 %v176
      %729 = vmatprep.subr.mxu0 %v193
      %730 = vmatpush1.msra.mxu0 %v192
      %731 = vmatprep.subr.mxu0 %v209
      %732 = vmatpush1.msra.mxu0 %v208
      %733 = vmatprep.subr.mxu0 %v225
      %734 = vmatpush1.msra.mxu0 %v224
      %735 = vmatprep.subr.mxu0 0.0
      %736 = vmatpush1.msra.mxu0 0.0
      %737 = vmatprep.subr.mxu0 0.0
      %738 = vmatpush1.msra.mxu0 0.0
      %739 = vmatprep.subr.mxu0 0.0
      %740 = vmatpush1.msra.mxu0 0.0
      %741 = vmatprep.subr.mxu0 0.0
      %742 = vmatpush1.msra.mxu0 0.0
      %743 = vmatprep.subr.mxu0 0.0
      %744 = vmatpush1.msra.mxu0 0.0
      %745 = vmatprep.subr.mxu0 0.0
      %746 = vmatpush1.msra.mxu0 0.0
      %747 = vmatprep.subr.mxu0 0.0
      %748 = vmatpush1.msra.mxu0 0.0
      %749 = vmatprep.subr.mxu0 0.0
      %750 = vmatpush1.msra.mxu0 0.0
      %751 = vmatprep.subr.mxu0 0.0
      %752 = vmatpush1.msra.mxu0 0.0
      %753 = vmatprep.subr.mxu0 0.0
      %754 = vmatpush1.msra.mxu0 0.0
      %755 = vmatprep.subr.mxu0 0.0
      %756 = vmatpush1.msra.mxu0 0.0
      %757 = vmatprep.subr.mxu0 0.0
      %758 = vmatpush1.msra.mxu0 0.0
      %759 = vmatprep.subr.mxu0 0.0
      %760 = vmatpush1.msra.mxu0 0.0
      %761 = vmatprep.subr.mxu0 0.0
      %762 = vmatpush1.msra.mxu0 0.0
      %763 = vmatprep.subr.mxu0 0.0
      %764 = vmatpush1.msra.mxu0 0.0
      %765 = vmatprep.subr.mxu0 0.0
      %766 = vmatpush1.msra.mxu0 0.0
      %767 = vmatprep.subr.mxu0 0.0
      %768 = vmatpush1.msra.mxu0 0.0
      %769 = vmatprep.subr.mxu0 0.0
      %770 = vmatpush1.msra.mxu0 0.0
      %771 = vmatprep.subr.mxu0 0.0
      %772 = vmatpush1.msra.mxu0 0.0
      %773 = vmatprep.subr.mxu0 0.0
      %774 = vmatpush1.msra.mxu0 0.0
      %775 = vmatprep.subr.mxu0 0.0
      %776 = vmatpush1.msra.mxu0 0.0
      %777 = vmatprep.subr.mxu0 0.0
      %778 = vmatpush1.msra.mxu0 0.0
      %779 = vmatprep.subr.mxu0 0.0
      %780 = vmatpush1.msra.mxu0 0.0
      %781 = vmatprep.subr.mxu0 0.0
      %782 = vmatpush1.msra.mxu0 0.0
      %783 = vmatprep.subr.mxu0 0.0
      %784 = vmatpush1.msra.mxu0 0.0
      %785 = vmatprep.subr.mxu0 0.0
      %786 = vmatpush1.msra.mxu0 0.0
      %787 = vmatprep.subr.mxu0 0.0
      %788 = vmatpush1.msra.mxu0 0.0
      %789 = vmatprep.subr.mxu0 0.0
      %790 = vmatpush1.msra.mxu0 0.0
      %791 = vmatprep.mubr.f32.mxu0 0.0
      %792 = vmatmul.mubr.f32.gmra.mrb[0].mxu0 %v228
      %v793 = vpop.f32.mrb[0].mxu0
      %v794 = vadd.f32 0.0, %v793
      %v795 = vpop.f32.mrb[0].mxu0
      %v796 = vadd.f32 0.0, %v795
      %797 = vdwg.mxu0
      %v798 = vtanh.pop %v297
      %v799 = vtanh.pop %v299
      %v800 = vtanh.pop %v368
      %v801 = vtanh.pop %v370
      %v802 = vtanh.pop %v439
      %v803 = vtanh.pop %v441
      %v804 = vtanh.pop %v510
      %v805 = vtanh.pop %v512
      %v806 = vtanh.pop %v581
      %v807 = vtanh.pop %v583
      %v808 = vtanh.pop %v652
      %v809 = vtanh.pop %v654
      %v810 = vtanh.pop %v723
      %v811 = vtanh.pop %v725
      %v812 = vtanh.pop %v794
      %v813 = vtanh.pop %v796
      %v830 = vcombine.low %v798, %v799
      %v831 = vcombine.low %v800, %v801
      %v832 = vcombine.low %v802, %v803
      %v833 = vcombine.low %v804, %v805
      %v834 = vcombine.low %v806, %v807
      %v835 = vcombine.low %v808, %v809
      %v836 = vcombine.low %v810, %v811
      %v837 = vcombine.low %v812, %v813
      %846 = vst [vmem:[%s160] sm:$0x77] %v830
      %847 = vst [vmem:[%s160 + $0x8] sm:$0x77] %v831
      %848 = vst [vmem:[%s160 + $0x10] sm:$0x77] %v832
      %849 = vst [vmem:[%s160 + $0x18] sm:$0x77] %v833
      %850 = vst [vmem:[%s160 + $0x20] sm:$0x77] %v834
      %851 = vst [vmem:[%s160 + $0x28] sm:$0x77] %v835
      %852 = vst [vmem:[%s160 + $0x30] sm:$0x77] %v836
      %853 = vst [vmem:[%s160 + $0x38] sm:$0x77] %v837
      %p854 = scmp.lt.s32.totalorder %s13, 3
      %s855 = scalar_select %p854, %s13, 3
      %s856 = smul.addr %s855, 16
      %s857 = smul.addr %s856, 4
      %s858 = scalar_lea.vmem %s2, %s857
      // Predicated region
      $region29: #{generator_forward.17} parent=27 // pred_check
        %p859 = pneg %p83
      $region30: #{generator_forward.17} parent=27 // pred_check_branch
        %861 = sbr.rel (%p859) target = $region32
      $region31: #{generator_forward.17} parent=27 // pred_region
        _
      $region32: #{generator_forward.17} parent=27 // pred_fallthru
        _
    $region28: #{generator_forward.17} parent=5 // pred_fallthru
      _
    %p862 = scmp.le.s32.totalorder 2, %s8
    // Predicated region
    $region33: #{generator_forward.17} parent=5 // pred_check
      %p863 = pneg %p862
    $region34: #{generator_forward.17} parent=5 // pred_check_branch
      %865 = sbr.rel (%p863) target = $region36
    $region35: #{generator_forward.17} parent=5 // pred_region
      %s866 = ssub.s32 %s8, 2
      // Predicated region
      $region37: #{generator_forward.17} parent=35 // pred_check
        %p867 = pneg %p89
      $region38: #{generator_forward.17} parent=35 // pred_check_branch
        %869 = sbr.rel (%p867) target = $region40
      $region39: #{generator_forward.17} parent=35 // pred_region
        %p870 = scmp.lt.s32.totalorder %s14, 3
        %s871 = scalar_select %p870, %s14, 3
        %s872 = smul.addr %s871, 16
        %s873 = smul.addr %s872, 4
        %s874 = scalar_lea.vmem %s2, %s873
      $region40: #{generator_forward.17} parent=35 // pred_fallthru
        _
    $region36: #{generator_forward.17} parent=5 // pred_fallthru
      _
  $region6: #{generator_forward.17} parent=0 // loop_footer
    %s12 = sadd.s32 1, %s8
  $region7: #{generator_forward.17} parent=0 // loop_footer_branch
    %7 = sbr.rel target = $region3
  $region8: #{generator_forward.17} parent=0 // loop_exit
    _

</llo_original>
